<compile_context>
chip_gen: v5e
topology: v5e:2x2
jax: 0.10.0
libtpu: 0.0.40
codegen_flags: <defaults>
</compile_context>

<pallas_src>
import functools

import jax
import jax.numpy as jnp
import numpy as np
from jax.experimental import pallas as pl
from jax.experimental.pallas import tpu as pltpu

LRELU_SLOPE = 0.01
BN_EPS = 1e-5


# ----------------------------------------------------------------------------
# small helpers
# ----------------------------------------------------------------------------
def _round_up(x, m):
    return ((x + m - 1) // m) * m


@functools.lru_cache(maxsize=None)
def _tpu_tuning():
    """(max_tile_rows, vmem_limit_bytes) per TPU generation.

    v7x: 64 MiB VMEM shared by 2 TensorCores -> stay conservative.
    v5e/v6e: 128 MiB VMEM, single TC -> 2048-row tiles / 64 MiB limit
    (measured ~87% of HBM roofline vs ~86% at 1024)."""
    try:
        kind = jax.devices()[0].device_kind.lower()
    except Exception:  # pragma: no cover - defensive; fall back to conservative
        kind = ""
    if "v6" in kind or ("v5" in kind and ("lite" in kind or "5e" in kind)):
        return 2048, 64 * 1024 * 1024
    return 1024, 32 * 1024 * 1024


def _choose_tile_rows(R, max_tile):
    """Row-tile heuristic.

    Big tiles (up to max_tile rows) hide the ~0.35us/step pipeline overhead and
    give the MXU a large M.  For R above one tile we always pick an EVEN number
    of grid steps so a 2-TensorCore chip (v7x) shards the 'parallel' grid axis
    evenly, while keeping row-padding waste minimal."""
    R8 = _round_up(R, 8)
    if R8 <= 256:
        return R8                      # tiny problem: single step is cheapest
    steps = 2
    while _round_up(-(-R8 // steps), 8) > max_tile:
        steps += 2                     # keep the step count even
    return _round_up(-(-R8 // steps), 8)


def _pad_rows(x, tile):
    R = x.shape[0]
    Rp = _round_up(R, tile)
    if Rp != R:
        x = jnp.pad(x, ((0, Rp - R), (0, 0)))
    return x


def bilinear_matrix(out_size, in_size):
    """align_corners=True bilinear interpolation matrix (out_size, in_size)."""
    if in_size == 1:
        return jnp.ones((out_size, 1), jnp.float32)
    pos = jnp.arange(out_size, dtype=jnp.float32) * (in_size - 1) / (out_size - 1)
    i0 = jnp.clip(jnp.floor(pos).astype(jnp.int32), 0, in_size - 1)
    i1 = jnp.clip(i0 + 1, 0, in_size - 1)
    frac = pos - i0.astype(jnp.float32)
    return (jax.nn.one_hot(i0, in_size, dtype=jnp.float32) * (1.0 - frac)[:, None]
            + jax.nn.one_hot(i1, in_size, dtype=jnp.float32) * frac[:, None])


def fold_bn(gamma, beta, mean, var):
    scale = gamma / jnp.sqrt(var + BN_EPS)
    bias = beta - mean * scale
    return scale[None, :], bias[None, :]


# ----------------------------------------------------------------------------
# Kernel 1: 1x1 conv (BN-scale pre-folded into W) + bias + leaky_relu
# ----------------------------------------------------------------------------
def _conv_bias_lrelu_kernel(x_ref, w_ref, b_ref, o_ref):
    y = jnp.dot(x_ref[...], w_ref[...], preferred_element_type=jnp.float32)
    y = y + b_ref[...]
    o_ref[...] = jnp.where(y >= 0, y, LRELU_SLOPE * y).astype(o_ref.dtype)


def conv1x1_bias_lrelu(x_rows, w, bias, *, out_dtype=jnp.bfloat16):
    R0, Cin = x_rows.shape
    Cout = w.shape[1]
    max_tile, vmem_limit = _tpu_tuning()
    tile = _choose_tile_rows(R0, max_tile)
    x_rows = _pad_rows(x_rows, tile)
    Rp = x_rows.shape[0]
    out = pl.pallas_call(
        _conv_bias_lrelu_kernel,
        out_shape=jax.ShapeDtypeStruct((Rp, Cout), out_dtype),
        grid=(Rp // tile,),
        in_specs=[
            pl.BlockSpec((tile, Cin), lambda i: (i, 0)),
            pl.BlockSpec((Cin, Cout), lambda i: (0, 0)),
            pl.BlockSpec((1, Cout), lambda i: (0, 0)),
        ],
        out_specs=pl.BlockSpec((tile, Cout), lambda i: (i, 0)),
        compiler_params=pltpu.CompilerParams(
            dimension_semantics=("parallel",),
            vmem_limit_bytes=vmem_limit),
    )(x_rows, w, bias)
    return out[:R0]


# ----------------------------------------------------------------------------
# Kernel 2: fused decoder tail
#   conv2(xl)+BN+lrelu (kept in VMEM, never hits HBM)
#   -> cat([xt_up, xl_c2]) as split matmul -> conv3a+BN+lrelu -> conv3b+BN+lrelu
#   -> * sigmoid(xfg) -> conv4 (+bias, output channels padded to 128 lanes)
#   All accumulation / epilogue math in f32; both outputs stored as bf16.
# ----------------------------------------------------------------------------
def _decoder_tail_kernel(xt_ref, xl_ref, xfg_ref,
                         w2_ref, b2_ref,
                         w3at_ref, w3al_ref, b3a_ref,
                         w3b_ref, b3b_ref,
                         w4_ref, b4_ref,
                         x_out_ref, seg_out_ref):
    # conv2 + folded ABN + leaky_relu on the high-res xl tile (48-wide, stays in VMEM)
    xl_c2 = jnp.dot(xl_ref[...], w2_ref[...], preferred_element_type=jnp.float32)
    xl_c2 = xl_c2 + b2_ref[...]
    xl_c2 = jnp.where(xl_c2 >= 0, xl_c2, LRELU_SLOPE * xl_c2)

    # conv3a on concat([xt_up, xl_c2]) realised as a split matmul
    h = jnp.dot(xt_ref[...], w3at_ref[...], preferred_element_type=jnp.float32)
    h = h + jnp.dot(xl_c2.astype(jnp.bfloat16), w3al_ref[...],
                    preferred_element_type=jnp.float32)
    h = h + b3a_ref[...]
    h = jnp.where(h >= 0, h, LRELU_SLOPE * h)

    # conv3b + folded ABN + leaky_relu
    h = jnp.dot(h.astype(jnp.bfloat16), w3b_ref[...], preferred_element_type=jnp.float32)
    h = h + b3b_ref[...]
    h = jnp.where(h >= 0, h, LRELU_SLOPE * h)

    # foreground gating (f32 epilogue; EUP handles sigmoid)
    sig = jax.nn.sigmoid(xfg_ref[...])
    x = h * sig
    x_bf = x.astype(jnp.bfloat16)
    x_out_ref[...] = x_bf.astype(x_out_ref.dtype)

    # conv4 (seg head) with bias; N padded to 128 lanes for dense stores
    seg = jnp.dot(x_bf, w4_ref[...], preferred_element_type=jnp.float32)
    seg_out_ref[...] = (seg + b4_ref[...]).astype(seg_out_ref.dtype)


def decoder_tail(xt_rows, xl_rows, xfg_rows,
                 w2, b2, w3a_t, w3a_l, b3a, w3b, b3b, w4_pad, b4_pad, num_classes):
    R0 = xt_rows.shape[0]
    max_tile, vmem_limit = _tpu_tuning()
    tile = _choose_tile_rows(R0, max_tile)
    xt_rows = _pad_rows(xt_rows, tile)
    xl_rows = _pad_rows(xl_rows, tile)
    xfg_rows = _pad_rows(xfg_rows, tile)
    Rp = xt_rows.shape[0]
    Ct, Cl = xt_rows.shape[1], xl_rows.shape[1]
    C3 = w3b.shape[1]
    NCp = w4_pad.shape[1]

    # TODO(synk): broadcast weight/bias specs could be single-buffered
    # (pipeline_mode=pl.Buffered(1)) to shave ~0.4 MiB VMEM; kept double-buffered
    # for lowering safety.
    full = lambda shape: pl.BlockSpec(shape, lambda i: (0, 0))
    x_rows, seg_rows = pl.pallas_call(
        _decoder_tail_kernel,
        out_shape=(jax.ShapeDtypeStruct((Rp, C3), jnp.bfloat16),
                   jax.ShapeDtypeStruct((Rp, NCp), jnp.bfloat16)),
        grid=(Rp // tile,),
        in_specs=[
            pl.BlockSpec((tile, Ct), lambda i: (i, 0)),
            pl.BlockSpec((tile, Cl), lambda i: (i, 0)),
            pl.BlockSpec((tile, 1), lambda i: (i, 0)),
            full(w2.shape), full(b2.shape),
            full(w3a_t.shape), full(w3a_l.shape), full(b3a.shape),
            full(w3b.shape), full(b3b.shape),
            full(w4_pad.shape), full(b4_pad.shape),
        ],
        out_specs=(pl.BlockSpec((tile, C3), lambda i: (i, 0)),
                   pl.BlockSpec((tile, NCp), lambda i: (i, 0))),
        compiler_params=pltpu.CompilerParams(
            dimension_semantics=("parallel",),
            vmem_limit_bytes=vmem_limit),
    )(xt_rows, xl_rows, xfg_rows, w2, b2, w3a_t, w3a_l, b3a, w3b, b3b, w4_pad, b4_pad)
    return x_rows[:R0], seg_rows[:R0, :num_classes]


# ----------------------------------------------------------------------------
# Parameter construction (deterministic, synthetic)
# ----------------------------------------------------------------------------
def make_params(key, num_classes):
    ks = jax.random.split(key, 16)

    def conv_w(k, cin, cout):
        return 0.05 * jax.random.normal(k, (cin, cout), jnp.float32)  # (Cin, Cout)

    def bn(k, c):
        k1, k2, k3, k4 = jax.random.split(k, 4)
        gamma = 1.0 + 0.1 * jax.random.normal(k1, (c,), jnp.float32)
        beta = 0.1 * jax.random.normal(k2, (c,), jnp.float32)
        mean = 0.1 * jax.random.normal(k3, (c,), jnp.float32)
        var = 0.5 + jax.random.uniform(k4, (c,), jnp.float32)
        return fold_bn(gamma, beta, mean, var)

    p = {}
    p["w1"] = conv_w(ks[0], 512, 256)
    p["s1"], p["b1"] = bn(ks[1], 256)
    p["w2"] = conv_w(ks[2], 256, 48)
    p["s2"], p["b2"] = bn(ks[3], 48)
    w3a = conv_w(ks[4], 304, 256)            # concat order: [xt(256), xl(48)]
    p["w3a_t"], p["w3a_l"] = w3a[:256], w3a[256:]
    p["s3a"], p["b3a"] = bn(ks[5], 256)
    p["w3b"] = conv_w(ks[6], 256, 256)
    p["s3b"], p["b3b"] = bn(ks[7], 256)
    p["w4"] = conv_w(ks[8], 256, num_classes)
    p["b4"] = 0.1 * jax.random.normal(ks[9], (1, num_classes), jnp.float32)
    return p


# ----------------------------------------------------------------------------
# Full forward (matches Decoder_Module.forward; batch_num unused — it only
# controlled file-saving paths in the original module).  Outputs are NCHW
# (like the PyTorch module) in bf16; all wrapper layout ops stay in bf16.
# ----------------------------------------------------------------------------
def decoder_forward(params, xt, xl, xfg, *, num_classes):
    bf = jnp.bfloat16
    n, _, ht, wt = xt.shape
    _, _, h, w = xl.shape

    # fold the BN scales into the conv weights (constant-folded under jit)
    w1f = (params["w1"] * params["s1"]).astype(bf)
    w2f = (params["w2"] * params["s2"]).astype(bf)
    w3atf = (params["w3a_t"] * params["s3a"]).astype(bf)
    w3alf = (params["w3a_l"] * params["s3a"]).astype(bf)
    w3bf = (params["w3b"] * params["s3b"]).astype(bf)
    ncp = _round_up(num_classes, 128)
    w4p = jnp.pad(params["w4"], ((0, 0), (0, ncp - num_classes))).astype(bf)
    b4p = jnp.pad(params["b4"], ((0, 0), (0, ncp - num_classes)))

    # conv1 + ABN + leaky_relu on xt at its native resolution (bf16 in/out)
    xt_rows = jnp.transpose(xt.astype(bf), (0, 2, 3, 1)).reshape(n * ht * wt, 512)
    xt_c1 = conv1x1_bias_lrelu(xt_rows, w1f, params["b1"])         # (n*ht*wt, 256) bf16
    xt_c1 = xt_c1.reshape(n, ht, wt, 256)                          # stays bf16

    # bilinear upsample, align_corners=True, via tiny bf16 interpolation matrices
    # (f32 accumulation, single bf16 cast -> no f32 HBM intermediate).
    # TODO(synk): the separable upsample + conv1 could be fused into the tail
    # kernel (xt band DMA'd per output row-tile) to remove this HBM round-trip.
    mh = bilinear_matrix(h, ht).astype(bf)
    mw = bilinear_matrix(w, wt).astype(bf)
    xt_up = jnp.einsum("Hh,nhwc,Ww->nHWc", mh, xt_c1, mw,
                       preferred_element_type=jnp.float32)
    xt_up_rows = xt_up.reshape(n * h * w, 256).astype(bf)

    xl_rows = jnp.transpose(xl.astype(bf), (0, 2, 3, 1)).reshape(n * h * w, 256)
    xfg_rows = jnp.transpose(xfg, (0, 2, 3, 1)).reshape(n * h * w, 1)

    # fused: conv2 -> cat -> conv3(a,b) -> * sigmoid(xfg) -> conv4  (bf16 outputs)
    x_rows, seg_rows = decoder_tail(
        xt_up_rows, xl_rows, xfg_rows,
        w2f, params["b2"], w3atf, w3alf, params["b3a"],
        w3bf, params["b3b"], w4p, b4p, num_classes)

    # back to NCHW like the PyTorch module; transposes operate on bf16 data.
    # TODO(synk): if the consumer accepts NHWC, return x_rows/seg_rows reshaped
    # without these transposes to save the remaining wrapper HBM traffic.
    x = jnp.transpose(x_rows.reshape(n, h, w, 256), (0, 3, 1, 2))
    seg = jnp.transpose(seg_rows.reshape(n, h, w, num_classes), (0, 3, 1, 2))
    return seg, x


# ----------------------------------------------------------------------------
# Pure-JAX references
# ----------------------------------------------------------------------------
def reference_forward_f32(params, xt, xl, xfg):
    """Full-f32 reference of the PyTorch module semantics."""
    def lrelu(v):
        return jnp.where(v >= 0, v, LRELU_SLOPE * v)

    n, _, ht, wt = xt.shape
    _, _, h, w = xl.shape
    xt_r = jnp.transpose(xt, (0, 2, 3, 1)).reshape(-1, 512)
    xt_c1 = lrelu((xt_r @ params["w1"]) * params["s1"] + params["b1"]).reshape(n, ht, wt, 256)
    mh, mw = bilinear_matrix(h, ht), bilinear_matrix(w, wt)
    xt_up = jnp.einsum("Hh,nhwc,Ww->nHWc", mh, xt_c1, mw).reshape(-1, 256)
    xl_r = jnp.transpose(xl, (0, 2, 3, 1)).reshape(-1, 256)
    xl_c2 = lrelu((xl_r @ params["w2"]) * params["s2"] + params["b2"])
    hcat = xt_up @ params["w3a_t"] + xl_c2 @ params["w3a_l"]
    hcat = lrelu(hcat * params["s3a"] + params["b3a"])
    hcat = lrelu((hcat @ params["w3b"]) * params["s3b"] + params["b3b"])
    sig = jax.nn.sigmoid(jnp.transpose(xfg, (0, 2, 3, 1)).reshape(-1, 1))
    xr = hcat * sig
    segr = xr @ params["w4"] + params["b4"]
    x = jnp.transpose(xr.reshape(n, h, w, 256), (0, 3, 1, 2))
    seg = jnp.transpose(segr.reshape(n, h, w, -1), (0, 3, 1, 2))
    return seg, x


def reference_forward_bf16(params, xt, xl, xfg):
    """Mimics the Pallas numerics (bf16 operands + bf16 outputs, f32 accumulation,
    folded BN, bf16 upsample matrices)."""
    bf = jnp.bfloat16

    def lrelu(v):
        return jnp.where(v >= 0, v, LRELU_SLOPE * v)

    def mm(a, w):
        return jnp.dot(a, w, preferred_element_type=jnp.float32)

    n, _, ht, wt = xt.shape
    _, _, h, w = xl.shape
    w1f = (params["w1"] * params["s1"]).astype(bf)
    w2f = (params["w2"] * params["s2"]).astype(bf)
    w3atf = (params["w3a_t"] * params["s3a"]).astype(bf)
    w3alf = (params["w3a_l"] * params["s3a"]).astype(bf)
    w3bf = (params["w3b"] * params["s3b"]).astype(bf)
    w4f = params["w4"].astype(bf)

    xt_r = jnp.transpose(xt.astype(bf), (0, 2, 3, 1)).reshape(-1, 512)
    xt_c1 = lrelu(mm(xt_r, w1f) + params["b1"]).astype(bf).reshape(n, ht, wt, 256)
    mh = bilinear_matrix(h, ht).astype(bf)
    mw = bilinear_matrix(w, wt).astype(bf)
    xt_up = jnp.einsum("Hh,nhwc,Ww->nHWc", mh, xt_c1, mw,
                       preferred_element_type=jnp.float32)
    xt_up = xt_up.reshape(-1, 256).astype(bf)
    xl_r = jnp.transpose(xl.astype(bf), (0, 2, 3, 1)).reshape(-1, 256)
    xl_c2 = lrelu(mm(xl_r, w2f) + params["b2"]).astype(bf)
    hcat = lrelu(mm(xt_up, w3atf) + mm(xl_c2, w3alf) + params["b3a"]).astype(bf)
    h2 = lrelu(mm(hcat, w3bf) + params["b3b"])
    sig = jax.nn.sigmoid(jnp.transpose(xfg, (0, 2, 3, 1)).reshape(-1, 1))
    xr_bf = (h2 * sig).astype(bf)
    segr = (mm(xr_bf, w4f) + params["b4"]).astype(bf)
    x = jnp.transpose(xr_bf.reshape(n, h, w, 256), (0, 3, 1, 2))
    seg = jnp.transpose(segr.reshape(n, h, w, -1), (0, 3, 1, 2))
    return seg, x


if __name__ == "__main__":
    num_classes = 20
    key = jax.random.PRNGKey(0)
    k_p, k_xt, k_xl, k_fg = jax.random.split(key, 4)

    params = make_params(k_p, num_classes)

    # small shapes consistent with the module (NCHW inputs)
    xt = jax.random.normal(k_xt, (2, 512, 8, 8), jnp.float32)    # low-res, 512 ch
    xl = jax.random.normal(k_xl, (2, 256, 16, 16), jnp.float32)  # high-res, 256 ch
    xfg = jax.random.normal(k_fg, (2, 1, 16, 16), jnp.float32)   # foreground logits
    batch_num = 0  # unused (only controlled file saving in the original module)

    fwd = jax.jit(functools.partial(decoder_forward, params, num_classes=num_classes))
    seg, x = fwd(xt, xl, xfg)
    jax.block_until_ready((seg, x))

    assert seg.shape == (2, num_classes, 16, 16) and x.shape == (2, 256, 16, 16)

    def f32(a):
        return np.asarray(a).astype(np.float32)

    # tight check vs. a pure-JAX path with the same bf16/f32 numerics as the kernels
    seg_m, x_m = reference_forward_bf16(params, xt, xl, xfg)
    np.testing.assert_allclose(f32(seg), f32(seg_m), rtol=1e-2, atol=1e-2)
    np.testing.assert_allclose(f32(x), f32(x_m), rtol=1e-2, atol=1e-2)

    # looser check vs. the full-f32 module reference (bf16 matmul / output tolerance)
    seg_r, x_r = reference_forward_f32(params, xt, xl, xfg)
    np.testing.assert_allclose(f32(seg), f32(seg_r), rtol=7e-2, atol=7e-2)
    np.testing.assert_allclose(f32(x), f32(x_r), rtol=7e-2, atol=7e-2)

    print("KERNEL_OK")
</pallas_src>

<mosaic_0001>
module attributes {stable_mosaic.version = 11 : i64} {
  func.func @_conv_bias_lrelu_kernel(%arg0: i32, %arg1: memref<128x512xbf16, #tpu.memory_space<vmem>>, %arg2: memref<512x256xbf16, #tpu.memory_space<vmem>>, %arg3: memref<1x256xf32, #tpu.memory_space<vmem>>, %arg4: memref<128x256xbf16, #tpu.memory_space<vmem>>) attributes {dimension_semantics = [#tpu.dimension_semantics<parallel>], iteration_bounds = array<i64: 1>, scalar_prefetch = 0 : i64, scratch_operands = 0 : i64, tpu.core_type = #tpu.core_type<tc>, window_params = [{transform_indices = @transform_0, window_bounds = array<i64: 128, 512>}, {pipeline_mode = #tpu.pipeline_mode<synchronous>, transform_indices = @transform_1, window_bounds = array<i64: 512, 256>}, {pipeline_mode = #tpu.pipeline_mode<synchronous>, transform_indices = @transform_2, window_bounds = array<i64: 1, 256>}, {transform_indices = @transform_3, window_bounds = array<i64: 128, 256>}]} {
    %c0 = arith.constant 0 : index
    %c0_0 = arith.constant 0 : index
    %0 = vector.load %arg1[%c0, %c0_0] : memref<128x512xbf16, #tpu.memory_space<vmem>>, vector<128x512xbf16>
    %c0_1 = arith.constant 0 : index
    %c0_2 = arith.constant 0 : index
    %1 = vector.load %arg2[%c0_1, %c0_2] : memref<512x256xbf16, #tpu.memory_space<vmem>>, vector<512x256xbf16>
    %cst = arith.constant dense<0.000000e+00> : vector<128x256xf32>
    %2 = tpu.matmul %0, %1, %cst {dimension_numbers = #tpu.dot_dimension_numbers<[1], [0], [0], [1], [0, 0, 1, 1], [], []>} : vector<128x512xbf16>, vector<512x256xbf16>, vector<128x256xf32> -> vector<128x256xf32>
    %c0_3 = arith.constant 0 : index
    %c0_4 = arith.constant 0 : index
    %3 = vector.load %arg3[%c0_3, %c0_4] : memref<1x256xf32, #tpu.memory_space<vmem>>, vector<1x256xf32>
    %4 = vector.broadcast %3 : vector<1x256xf32> to vector<128x256xf32>
    %5 = arith.addf %2, %4 : vector<128x256xf32>
    %cst_5 = arith.constant 0.000000e+00 : f32
    %6 = vector.broadcast %cst_5 : f32 to vector<128x256xf32>
    %7 = arith.cmpf oge, %5, %6 : vector<128x256xf32>
    %cst_6 = arith.constant 0.00999999977 : f32
    %8 = vector.broadcast %cst_6 : f32 to vector<128x256xf32>
    %9 = arith.mulf %8, %5 : vector<128x256xf32>
    %10 = arith.select %7, %5, %9 : vector<128x256xi1>, vector<128x256xf32>
    %11 = arith.truncf %10 : vector<128x256xf32> to vector<128x256xbf16>
    %c0_7 = arith.constant 0 : index
    %c0_8 = arith.constant 0 : index
    %12 = vector.load %arg4[%c0_7, %c0_8] : memref<128x256xbf16, #tpu.memory_space<vmem>>, vector<128x256xbf16>
    tpu.vector_store %arg4[%c0_7, %c0_8], %11 {strides = array<i32>} : memref<128x256xbf16, #tpu.memory_space<vmem>>, vector<128x256xbf16>,
    return
  }
  func.func @transform_0(%arg0: i32) -> (i32, i32) {
    %c0_i32 = arith.constant 0 : i32
    %c0_i32_0 = arith.constant 0 : i32
    return %arg0, %c0_i32 : i32, i32
  }
  func.func @transform_1(%arg0: i32) -> (i32, i32) {
    %c0_i32 = arith.constant 0 : i32
    %c0_i32_0 = arith.constant 0 : i32
    %c0_i32_1 = arith.constant 0 : i32
    return %c0_i32, %c0_i32_0 : i32, i32
  }
  func.func @transform_2(%arg0: i32) -> (i32, i32) {
    %c0_i32 = arith.constant 0 : i32
    %c0_i32_0 = arith.constant 0 : i32
    %c0_i32_1 = arith.constant 0 : i32
    return %c0_i32, %c0_i32_0 : i32, i32
  }
  func.func @transform_3(%arg0: i32) -> (i32, i32) {
    %c0_i32 = arith.constant 0 : i32
    %c0_i32_0 = arith.constant 0 : i32
    return %arg0, %c0_i32 : i32, i32
  }
}

module attributes {stable_mosaic.version = 11 : i64} {
  func.func @_decoder_tail_kernel(%arg0: i32, %arg1: memref<256x256xbf16, #tpu.memory_space<vmem>>, %arg2: memref<256x256xbf16, #tpu.memory_space<vmem>>, %arg3: memref<256x1xf32, #tpu.memory_space<vmem>>, %arg4: memref<256x48xbf16, #tpu.memory_space<vmem>>, %arg5: memref<1x48xf32, #tpu.memory_space<vmem>>, %arg6: memref<256x256xbf16, #tpu.memory_space<vmem>>, %arg7: memref<48x256xbf16, #tpu.memory_space<vmem>>, %arg8: memref<1x256xf32, #tpu.memory_space<vmem>>, %arg9: memref<256x256xbf16, #tpu.memory_space<vmem>>, %arg10: memref<1x256xf32, #tpu.memory_space<vmem>>, %arg11: memref<256x128xbf16, #tpu.memory_space<vmem>>, %arg12: memref<1x128xf32, #tpu.memory_space<vmem>>, %arg13: memref<256x256xbf16, #tpu.memory_space<vmem>>, %arg14: memref<256x128xbf16, #tpu.memory_space<vmem>>) attributes {dimension_semantics = [#tpu.dimension_semantics<parallel>], iteration_bounds = array<i64: 2>, scalar_prefetch = 0 : i64, scratch_operands = 0 : i64, tpu.core_type = #tpu.core_type<tc>, window_params = [{transform_indices = @transform_0, window_bounds = array<i64: 256, 256>}, {transform_indices = @transform_1, window_bounds = array<i64: 256, 256>}, {transform_indices = @transform_2, window_bounds = array<i64: 256, 1>}, {pipeline_mode = #tpu.pipeline_mode<synchronous>, transform_indices = @transform_3, window_bounds = array<i64: 256, 48>}, {pipeline_mode = #tpu.pipeline_mode<synchronous>, transform_indices = @transform_4, window_bounds = array<i64: 1, 48>}, {pipeline_mode = #tpu.pipeline_mode<synchronous>, transform_indices = @transform_5, window_bounds = array<i64: 256, 256>}, {pipeline_mode = #tpu.pipeline_mode<synchronous>, transform_indices = @transform_6, window_bounds = array<i64: 48, 256>}, {pipeline_mode = #tpu.pipeline_mode<synchronous>, transform_indices = @transform_7, window_bounds = array<i64: 1, 256>}, {pipeline_mode = #tpu.pipeline_mode<synchronous>, transform_indices = @transform_8, window_bounds = array<i64: 256, 256>}, {pipeline_mode = #tpu.pipeline_mode<synchronous>, transform_indices = @transform_9, window_bounds = array<i64: 1, 256>}, {pipeline_mode = #tpu.pipeline_mode<synchronous>, transform_indices = @transform_10, window_bounds = array<i64: 256, 128>}, {pipeline_mode = #tpu.pipeline_mode<synchronous>, transform_indices = @transform_11, window_bounds = array<i64: 1, 128>}, {transform_indices = @transform_12, window_bounds = array<i64: 256, 256>}, {transform_indices = @transform_13, window_bounds = array<i64: 256, 128>}]} {
    %c0 = arith.constant 0 : index
    %c0_0 = arith.constant 0 : index
    %0 = vector.load %arg2[%c0, %c0_0] : memref<256x256xbf16, #tpu.memory_space<vmem>>, vector<256x256xbf16>
    %c0_1 = arith.constant 0 : index
    %c0_2 = arith.constant 0 : index
    %1 = vector.load %arg4[%c0_1, %c0_2] : memref<256x48xbf16, #tpu.memory_space<vmem>>, vector<256x48xbf16>
    %cst = arith.constant dense<0.000000e+00> : vector<256x48xf32>
    %2 = tpu.matmul %0, %1, %cst {dimension_numbers = #tpu.dot_dimension_numbers<[1], [0], [0], [1], [0, 0, 1, 1], [], []>} : vector<256x256xbf16>, vector<256x48xbf16>, vector<256x48xf32> -> vector<256x48xf32>
    %c0_3 = arith.constant 0 : index
    %c0_4 = arith.constant 0 : index
    %3 = vector.load %arg5[%c0_3, %c0_4] : memref<1x48xf32, #tpu.memory_space<vmem>>, vector<1x48xf32>
    %4 = vector.broadcast %3 : vector<1x48xf32> to vector<256x48xf32>
    %5 = arith.addf %2, %4 : vector<256x48xf32>
    %cst_5 = arith.constant 0.000000e+00 : f32
    %6 = vector.broadcast %cst_5 : f32 to vector<256x48xf32>
    %7 = arith.cmpf oge, %5, %6 : vector<256x48xf32>
    %cst_6 = arith.constant 0.00999999977 : f32
    %8 = vector.broadcast %cst_6 : f32 to vector<256x48xf32>
    %9 = arith.mulf %8, %5 : vector<256x48xf32>
    %10 = arith.select %7, %5, %9 : vector<256x48xi1>, vector<256x48xf32>
    %c0_7 = arith.constant 0 : index
    %c0_8 = arith.constant 0 : index
    %11 = vector.load %arg1[%c0_7, %c0_8] : memref<256x256xbf16, #tpu.memory_space<vmem>>, vector<256x256xbf16>
    %c0_9 = arith.constant 0 : index
    %c0_10 = arith.constant 0 : index
    %12 = vector.load %arg6[%c0_9, %c0_10] : memref<256x256xbf16, #tpu.memory_space<vmem>>, vector<256x256xbf16>
    %cst_11 = arith.constant dense<0.000000e+00> : vector<256x256xf32>
    %13 = tpu.matmul %11, %12, %cst_11 {dimension_numbers = #tpu.dot_dimension_numbers<[1], [0], [0], [1], [0, 0, 1, 1], [], []>} : vector<256x256xbf16>, vector<256x256xbf16>, vector<256x256xf32> -> vector<256x256xf32>
    %14 = arith.truncf %10 : vector<256x48xf32> to vector<256x48xbf16>
    %c0_12 = arith.constant 0 : index
    %c0_13 = arith.constant 0 : index
    %15 = vector.load %arg7[%c0_12, %c0_13] : memref<48x256xbf16, #tpu.memory_space<vmem>>, vector<48x256xbf16>
    %cst_14 = arith.constant dense<0.000000e+00> : vector<256x256xf32>
    %16 = tpu.matmul %14, %15, %cst_14 {dimension_numbers = #tpu.dot_dimension_numbers<[1], [0], [0], [1], [0, 0, 1, 1], [], []>} : vector<256x48xbf16>, vector<48x256xbf16>, vector<256x256xf32> -> vector<256x256xf32>
    %17 = arith.addf %13, %16 : vector<256x256xf32>
    %c0_15 = arith.constant 0 : index
    %c0_16 = arith.constant 0 : index
    %18 = vector.load %arg8[%c0_15, %c0_16] : memref<1x256xf32, #tpu.memory_space<vmem>>, vector<1x256xf32>
    %19 = vector.broadcast %18 : vector<1x256xf32> to vector<256x256xf32>
    %20 = arith.addf %17, %19 : vector<256x256xf32>
    %cst_17 = arith.constant 0.000000e+00 : f32
    %21 = vector.broadcast %cst_17 : f32 to vector<256x256xf32>
    %22 = arith.cmpf oge, %20, %21 : vector<256x256xf32>
    %cst_18 = arith.constant 0.00999999977 : f32
    %23 = vector.broadcast %cst_18 : f32 to vector<256x256xf32>
    %24 = arith.mulf %23, %20 : vector<256x256xf32>
    %25 = arith.select %22, %20, %24 : vector<256x256xi1>, vector<256x256xf32>
    %26 = arith.truncf %25 : vector<256x256xf32> to vector<256x256xbf16>
    %c0_19 = arith.constant 0 : index
    %c0_20 = arith.constant 0 : index
    %27 = vector.load %arg9[%c0_19, %c0_20] : memref<256x256xbf16, #tpu.memory_space<vmem>>, vector<256x256xbf16>
    %cst_21 = arith.constant dense<0.000000e+00> : vector<256x256xf32>
    %28 = tpu.matmul %26, %27, %cst_21 {dimension_numbers = #tpu.dot_dimension_numbers<[1], [0], [0], [1], [0, 0, 1, 1], [], []>} : vector<256x256xbf16>, vector<256x256xbf16>, vector<256x256xf32> -> vector<256x256xf32>
    %c0_22 = arith.constant 0 : index
    %c0_23 = arith.constant 0 : index
    %29 = vector.load %arg10[%c0_22, %c0_23] : memref<1x256xf32, #tpu.memory_space<vmem>>, vector<1x256xf32>
    %30 = vector.broadcast %29 : vector<1x256xf32> to vector<256x256xf32>
    %31 = arith.addf %28, %30 : vector<256x256xf32>
    %cst_24 = arith.constant 0.000000e+00 : f32
    %32 = vector.broadcast %cst_24 : f32 to vector<256x256xf32>
    %33 = arith.cmpf oge, %31, %32 : vector<256x256xf32>
    %cst_25 = arith.constant 0.00999999977 : f32
    %34 = vector.broadcast %cst_25 : f32 to vector<256x256xf32>
    %35 = arith.mulf %34, %31 : vector<256x256xf32>
    %36 = arith.select %33, %31, %35 : vector<256x256xi1>, vector<256x256xf32>
    %c0_26 = arith.constant 0 : index
    %c0_27 = arith.constant 0 : index
    %37 = vector.load %arg3[%c0_26, %c0_27] : memref<256x1xf32, #tpu.memory_space<vmem>>, vector<256x1xf32>
    %38 = arith.negf %37 : vector<256x1xf32>
    %39 = math.exp %38 : vector<256x1xf32>
    %cst_28 = arith.constant 1.000000e+00 : f32
    %40 = vector.broadcast %cst_28 : f32 to vector<256x1xf32>
    %41 = arith.addf %40, %39 : vector<256x1xf32>
    %42 = arith.divf %40, %41 : vector<256x1xf32>
    %43 = vector.broadcast %42 : vector<256x1xf32> to vector<256x256xf32>
    %44 = arith.mulf %36, %43 : vector<256x256xf32>
    %45 = arith.truncf %44 : vector<256x256xf32> to vector<256x256xbf16>
    %c0_29 = arith.constant 0 : index
    %c0_30 = arith.constant 0 : index
    %46 = vector.load %arg13[%c0_29, %c0_30] : memref<256x256xbf16, #tpu.memory_space<vmem>>, vector<256x256xbf16>
    tpu.vector_store %arg13[%c0_29, %c0_30], %45 {strides = array<i32>} : memref<256x256xbf16, #tpu.memory_space<vmem>>, vector<256x256xbf16>,
    %c0_31 = arith.constant 0 : index
    %c0_32 = arith.constant 0 : index
    %47 = vector.load %arg11[%c0_31, %c0_32] : memref<256x128xbf16, #tpu.memory_space<vmem>>, vector<256x128xbf16>
    %cst_33 = arith.constant dense<0.000000e+00> : vector<256x128xf32>
    %48 = tpu.matmul %45, %47, %cst_33 {dimension_numbers = #tpu.dot_dimension_numbers<[1], [0], [0], [1], [0, 0, 1, 1], [], []>} : vector<256x256xbf16>, vector<256x128xbf16>, vector<256x128xf32> -> vector<256x128xf32>
    %c0_34 = arith.constant 0 : index
    %c0_35 = arith.constant 0 : index
    %49 = vector.load %arg12[%c0_34, %c0_35] : memref<1x128xf32, #tpu.memory_space<vmem>>, vector<1x128xf32>
    %50 = vector.broadcast %49 : vector<1x128xf32> to vector<256x128xf32>
    %51 = arith.addf %48, %50 : vector<256x128xf32>
    %52 = arith.truncf %51 : vector<256x128xf32> to vector<256x128xbf16>
    %c0_36 = arith.constant 0 : index
    %c0_37 = arith.constant 0 : index
    %53 = vector.load %arg14[%c0_36, %c0_37] : memref<256x128xbf16, #tpu.memory_space<vmem>>, vector<256x128xbf16>
    tpu.vector_store %arg14[%c0_36, %c0_37], %52 {strides = array<i32>} : memref<256x128xbf16, #tpu.memory_space<vmem>>, vector<256x128xbf16>,
    return
  }
  func.func @transform_0(%arg0: i32) -> (i32, i32) {
    %c0_i32 = arith.constant 0 : i32
    %c0_i32_0 = arith.constant 0 : i32
    return %arg0, %c0_i32 : i32, i32
  }
  func.func @transform_1(%arg0: i32) -> (i32, i32) {
    %c0_i32 = arith.constant 0 : i32
    %c0_i32_0 = arith.constant 0 : i32
    return %arg0, %c0_i32 : i32, i32
  }
  func.func @transform_2(%arg0: i32) -> (i32, i32) {
    %c0_i32 = arith.constant 0 : i32
    %c0_i32_0 = arith.constant 0 : i32
    return %arg0, %c0_i32 : i32, i32
  }
  func.func @transform_3(%arg0: i32) -> (i32, i32) {
    %c0_i32 = arith.constant 0 : i32
    %c0_i32_0 = arith.constant 0 : i32
    %c0_i32_1 = arith.constant 0 : i32
    return %c0_i32, %c0_i32_0 : i32, i32
  }
  func.func @transform_4(%arg0: i32) -> (i32, i32) {
    %c0_i32 = arith.constant 0 : i32
    %c0_i32_0 = arith.constant 0 : i32
    %c0_i32_1 = arith.constant 0 : i32
    return %c0_i32, %c0_i32_0 : i32, i32
  }
  func.func @transform_5(%arg0: i32) -> (i32, i32) {
    %c0_i32 = arith.constant 0 : i32
    %c0_i32_0 = arith.constant 0 : i32
    %c0_i32_1 = arith.constant 0 : i32
    return %c0_i32, %c0_i32_0 : i32, i32
  }
  func.func @transform_6(%arg0: i32) -> (i32, i32) {
    %c0_i32 = arith.constant 0 : i32
    %c0_i32_0 = arith.constant 0 : i32
    %c0_i32_1 = arith.constant 0 : i32
    return %c0_i32, %c0_i32_0 : i32, i32
  }
  func.func @transform_7(%arg0: i32) -> (i32, i32) {
    %c0_i32 = arith.constant 0 : i32
    %c0_i32_0 = arith.constant 0 : i32
    %c0_i32_1 = arith.constant 0 : i32
    return %c0_i32, %c0_i32_0 : i32, i32
  }
  func.func @transform_8(%arg0: i32) -> (i32, i32) {
    %c0_i32 = arith.constant 0 : i32
    %c0_i32_0 = arith.constant 0 : i32
    %c0_i32_1 = arith.constant 0 : i32
    return %c0_i32, %c0_i32_0 : i32, i32
  }
  func.func @transform_9(%arg0: i32) -> (i32, i32) {
    %c0_i32 = arith.constant 0 : i32
    %c0_i32_0 = arith.constant 0 : i32
    %c0_i32_1 = arith.constant 0 : i32
    return %c0_i32, %c0_i32_0 : i32, i32
  }
  func.func @transform_10(%arg0: i32) -> (i32, i32) {
    %c0_i32 = arith.constant 0 : i32
    %c0_i32_0 = arith.constant 0 : i32
    %c0_i32_1 = arith.constant 0 : i32
    return %c0_i32, %c0_i32_0 : i32, i32
  }
  func.func @transform_11(%arg0: i32) -> (i32, i32) {
    %c0_i32 = arith.constant 0 : i32
    %c0_i32_0 = arith.constant 0 : i32
    %c0_i32_1 = arith.constant 0 : i32
    return %c0_i32, %c0_i32_0 : i32, i32
  }
  func.func @transform_12(%arg0: i32) -> (i32, i32) {
    %c0_i32 = arith.constant 0 : i32
    %c0_i32_0 = arith.constant 0 : i32
    return %arg0, %c0_i32 : i32, i32
  }
  func.func @transform_13(%arg0: i32) -> (i32, i32) {
    %c0_i32 = arith.constant 0 : i32
    %c0_i32_0 = arith.constant 0 : i32
    return %arg0, %c0_i32 : i32, i32
  }
}

</mosaic_0001>

<llo_original>
// kernel: decoder_forward.2
$region0: #{decoder_forward.2}
  #allocation0 [shape = 'u32[]', space=smem, size = 0x4, offset = 0x4, fixed_abs, tag = 'smem constant byte address 0x4 - core index']
  #allocation1 [shape = 'u32[72,128]{1,0:T(1,128)}', space=vmem, size = 0x9000, scoped, tag = 'internal scratch']
  %s0 = inlined_call_operand.vmem [shape: bf16[128,512], index: 0, kind: input, shape index: {}]
  %s1 = inlined_call_operand.vmem [shape: bf16[512,256], index: 1, kind: input, shape index: {}]
  %s2 = inlined_call_operand.vmem [shape: f32[1,256], index: 2, kind: input, shape index: {}]
  %s3 = inlined_call_operand.vmem [shape: bf16[128,256], index: 3, kind: output, shape index: {}]
  %s4 = sld [smem:[#allocation0]]
  $region22: #{decoder_forward.2} parent=0
    _
  %s6 = ssub.s32 1, %s4
  %s7 = scalar_select 0, %s6, %s4
  // Predicated region
  $region2: #{decoder_forward.2} parent=0 // pred_check
    _
  $region3: #{decoder_forward.2} parent=0 // pred_check_branch
    %9 = sbr.rel (0) target = $region5
  $region4: #{decoder_forward.2} parent=0 // pred_region
    _
  $region5: #{decoder_forward.2} parent=0 // pred_fallthru
    _
  // Predicated region
  $region6: #{decoder_forward.2} parent=0 // pred_check
    _
  $region7: #{decoder_forward.2} parent=0 // pred_check_branch
    %11 = sbr.rel (0) target = $region9
  $region8: #{decoder_forward.2} parent=0 // pred_region
    _
  $region9: #{decoder_forward.2} parent=0 // pred_fallthru
    _
  // Predicated region
  $region10: #{decoder_forward.2} parent=0 // pred_check
    _
  $region11: #{decoder_forward.2} parent=0 // pred_check_branch
    %13 = sbr.rel (0) target = $region13
  $region12: #{decoder_forward.2} parent=0 // pred_region
    _
  $region13: #{decoder_forward.2} parent=0 // pred_fallthru
    _
  %v14 = vld [vmem:[%s0] sm:$0xff]
  %v15 = vld [vmem:[%s0 + $0x8] sm:$0xff]
  %v16 = vld [vmem:[%s0 + $0x10] sm:$0xff]
  %v17 = vld [vmem:[%s0 + $0x18] sm:$0xff]
  %v18 = vld [vmem:[%s0 + $0x20] sm:$0xff]
  %v19 = vld [vmem:[%s0 + $0x28] sm:$0xff]
  %v20 = vld [vmem:[%s0 + $0x30] sm:$0xff]
  %v21 = vld [vmem:[%s0 + $0x38] sm:$0xff]
  %v22 = vld [vmem:[%s0 + $0x40] sm:$0xff]
  %v23 = vld [vmem:[%s0 + $0x48] sm:$0xff]
  %v24 = vld [vmem:[%s0 + $0x50] sm:$0xff]
  %v25 = vld [vmem:[%s0 + $0x58] sm:$0xff]
  %v26 = vld [vmem:[%s0 + $0x60] sm:$0xff]
  %v27 = vld [vmem:[%s0 + $0x68] sm:$0xff]
  %v28 = vld [vmem:[%s0 + $0x70] sm:$0xff]
  %v29 = vld [vmem:[%s0 + $0x78] sm:$0xff]
  %v30 = vld [vmem:[%s0 + $0x80] sm:$0xff]
  %v31 = vld [vmem:[%s0 + $0x88] sm:$0xff]
  %v32 = vld [vmem:[%s0 + $0x90] sm:$0xff]
  %v33 = vld [vmem:[%s0 + $0x98] sm:$0xff]
  %v34 = vld [vmem:[%s0 + $0xa0] sm:$0xff]
  %v35 = vld [vmem:[%s0 + $0xa8] sm:$0xff]
  %v36 = vld [vmem:[%s0 + $0xb0] sm:$0xff]
  %v37 = vld [vmem:[%s0 + $0xb8] sm:$0xff]
  %v38 = vld [vmem:[%s0 + $0xc0] sm:$0xff]
  %v39 = vld [vmem:[%s0 + $0xc8] sm:$0xff]
  %v40 = vld [vmem:[%s0 + $0xd0] sm:$0xff]
  %v41 = vld [vmem:[%s0 + $0xd8] sm:$0xff]
  %v42 = vld [vmem:[%s0 + $0xe0] sm:$0xff]
  %v43 = vld [vmem:[%s0 + $0xe8] sm:$0xff]
  %v44 = vld [vmem:[%s0 + $0xf0] sm:$0xff]
  %v45 = vld [vmem:[%s0 + $0xf8] sm:$0xff]
  %v46 = vld [vmem:[%s1] sm:$0xff]
  %v47 = vld [vmem:[%s1 + $0x8] sm:$0xff]
  %v48 = vld [vmem:[%s1 + $0x10] sm:$0xff]
  %v49 = vld [vmem:[%s1 + $0x18] sm:$0xff]
  %v50 = vld [vmem:[%s1 + $0x20] sm:$0xff]
  %v51 = vld [vmem:[%s1 + $0x28] sm:$0xff]
  %v52 = vld [vmem:[%s1 + $0x30] sm:$0xff]
  %v53 = vld [vmem:[%s1 + $0x38] sm:$0xff]
  %v54 = vld [vmem:[%s1 + $0x40] sm:$0xff]
  %v55 = vld [vmem:[%s1 + $0x48] sm:$0xff]
  %v56 = vld [vmem:[%s1 + $0x50] sm:$0xff]
  %v57 = vld [vmem:[%s1 + $0x58] sm:$0xff]
  %v58 = vld [vmem:[%s1 + $0x60] sm:$0xff]
  %v59 = vld [vmem:[%s1 + $0x68] sm:$0xff]
  %v60 = vld [vmem:[%s1 + $0x70] sm:$0xff]
  %v61 = vld [vmem:[%s1 + $0x78] sm:$0xff]
  %v62 = vld [vmem:[%s1 + $0x80] sm:$0xff]
  %v63 = vld [vmem:[%s1 + $0x88] sm:$0xff]
  %v64 = vld [vmem:[%s1 + $0x90] sm:$0xff]
  %v65 = vld [vmem:[%s1 + $0x98] sm:$0xff]
  %v66 = vld [vmem:[%s1 + $0xa0] sm:$0xff]
  %v67 = vld [vmem:[%s1 + $0xa8] sm:$0xff]
  %v68 = vld [vmem:[%s1 + $0xb0] sm:$0xff]
  %v69 = vld [vmem:[%s1 + $0xb8] sm:$0xff]
  %v70 = vld [vmem:[%s1 + $0xc0] sm:$0xff]
  %v71 = vld [vmem:[%s1 + $0xc8] sm:$0xff]
  %v72 = vld [vmem:[%s1 + $0xd0] sm:$0xff]
  %v73 = vld [vmem:[%s1 + $0xd8] sm:$0xff]
  %v74 = vld [vmem:[%s1 + $0xe0] sm:$0xff]
  %v75 = vld [vmem:[%s1 + $0xe8] sm:$0xff]
  %v76 = vld [vmem:[%s1 + $0xf0] sm:$0xff]
  %v77 = vld [vmem:[%s1 + $0xf8] sm:$0xff]
  %v78 = vld [vmem:[%s1 + $0x100] sm:$0xff]
  %v79 = vld [vmem:[%s1 + $0x108] sm:$0xff]
  %v80 = vld [vmem:[%s1 + $0x110] sm:$0xff]
  %v81 = vld [vmem:[%s1 + $0x118] sm:$0xff]
  %v82 = vld [vmem:[%s1 + $0x120] sm:$0xff]
  %v83 = vld [vmem:[%s1 + $0x128] sm:$0xff]
  %v84 = vld [vmem:[%s1 + $0x130] sm:$0xff]
  %v85 = vld [vmem:[%s1 + $0x138] sm:$0xff]
  %v86 = vld [vmem:[%s1 + $0x140] sm:$0xff]
  %v87 = vld [vmem:[%s1 + $0x148] sm:$0xff]
  %v88 = vld [vmem:[%s1 + $0x150] sm:$0xff]
  %v89 = vld [vmem:[%s1 + $0x158] sm:$0xff]
  %v90 = vld [vmem:[%s1 + $0x160] sm:$0xff]
  %v91 = vld [vmem:[%s1 + $0x168] sm:$0xff]
  %v92 = vld [vmem:[%s1 + $0x170] sm:$0xff]
  %v93 = vld [vmem:[%s1 + $0x178] sm:$0xff]
  %v94 = vld [vmem:[%s1 + $0x180] sm:$0xff]
  %v95 = vld [vmem:[%s1 + $0x188] sm:$0xff]
  %v96 = vld [vmem:[%s1 + $0x190] sm:$0xff]
  %v97 = vld [vmem:[%s1 + $0x198] sm:$0xff]
  %v98 = vld [vmem:[%s1 + $0x1a0] sm:$0xff]
  %v99 = vld [vmem:[%s1 + $0x1a8] sm:$0xff]
  %v100 = vld [vmem:[%s1 + $0x1b0] sm:$0xff]
  %v101 = vld [vmem:[%s1 + $0x1b8] sm:$0xff]
  %v102 = vld [vmem:[%s1 + $0x1c0] sm:$0xff]
  %v103 = vld [vmem:[%s1 + $0x1c8] sm:$0xff]
  %v104 = vld [vmem:[%s1 + $0x1d0] sm:$0xff]
  %v105 = vld [vmem:[%s1 + $0x1d8] sm:$0xff]
  %v106 = vld [vmem:[%s1 + $0x1e0] sm:$0xff]
  %v107 = vld [vmem:[%s1 + $0x1e8] sm:$0xff]
  %v108 = vld [vmem:[%s1 + $0x1f0] sm:$0xff]
  %v109 = vld [vmem:[%s1 + $0x1f8] sm:$0xff]
  %v110 = vld [vmem:[%s2] sm:$0x3]
  %v112 = vperm.slane %v110, 0
  %v113 = vperm.slane %v110, 1
  %v148 = vunpack.c.l.b16 %v14
  %v149 = vunpack.c.h.b16 %v14
  %v150 = vunpack.c.l.b16 %v15
  %v151 = vunpack.c.h.b16 %v15
  %v152 = vunpack.c.l.b16 %v16
  %v153 = vunpack.c.h.b16 %v16
  %v154 = vunpack.c.l.b16 %v17
  %v155 = vunpack.c.h.b16 %v17
  %v156 = vunpack.c.l.b16 %v18
  %v157 = vunpack.c.h.b16 %v18
  %v158 = vunpack.c.l.b16 %v19
  %v159 = vunpack.c.h.b16 %v19
  %v160 = vunpack.c.l.b16 %v20
  %v161 = vunpack.c.h.b16 %v20
  %v162 = vunpack.c.l.b16 %v21
  %v163 = vunpack.c.h.b16 %v21
  %v164 = vunpack.c.l.b16 %v22
  %v165 = vunpack.c.h.b16 %v22
  %v166 = vunpack.c.l.b16 %v23
  %v167 = vunpack.c.h.b16 %v23
  %v168 = vunpack.c.l.b16 %v24
  %v169 = vunpack.c.h.b16 %v24
  %v170 = vunpack.c.l.b16 %v25
  %v171 = vunpack.c.h.b16 %v25
  %v172 = vunpack.c.l.b16 %v26
  %v173 = vunpack.c.h.b16 %v26
  %v174 = vunpack.c.l.b16 %v27
  %v175 = vunpack.c.h.b16 %v27
  %v176 = vunpack.c.l.b16 %v28
  %v177 = vunpack.c.h.b16 %v28
  %v178 = vunpack.c.l.b16 %v29
  %v179 = vunpack.c.h.b16 %v29
  %v180 = vunpack.c.l.b16 %v30
  %v181 = vunpack.c.h.b16 %v30
  %v182 = vunpack.c.l.b16 %v31
  %v183 = vunpack.c.h.b16 %v31
  %v184 = vunpack.c.l.b16 %v32
  %v185 = vunpack.c.h.b16 %v32
  %v186 = vunpack.c.l.b16 %v33
  %v187 = vunpack.c.h.b16 %v33
  %v188 = vunpack.c.l.b16 %v34
  %v189 = vunpack.c.h.b16 %v34
  %v190 = vunpack.c.l.b16 %v35
  %v191 = vunpack.c.h.b16 %v35
  %v192 = vunpack.c.l.b16 %v36
  %v193 = vunpack.c.h.b16 %v36
  %v194 = vunpack.c.l.b16 %v37
  %v195 = vunpack.c.h.b16 %v37
  %v196 = vunpack.c.l.b16 %v38
  %v197 = vunpack.c.h.b16 %v38
  %v198 = vunpack.c.l.b16 %v39
  %v199 = vunpack.c.h.b16 %v39
  %v200 = vunpack.c.l.b16 %v40
  %v201 = vunpack.c.h.b16 %v40
  %v202 = vunpack.c.l.b16 %v41
  %v203 = vunpack.c.h.b16 %v41
  %v204 = vunpack.c.l.b16 %v42
  %v205 = vunpack.c.h.b16 %v42
  %v206 = vunpack.c.l.b16 %v43
  %v207 = vunpack.c.h.b16 %v43
  %v208 = vunpack.c.l.b16 %v44
  %v209 = vunpack.c.h.b16 %v44
  %v210 = vunpack.c.l.b16 %v45
  %v211 = vunpack.c.h.b16 %v45
  %v212 = vpack.c.b16 %v152, %v148
  %v213 = vpack.c.b16 %v153, %v149
  %v214 = vpack.c.b16 %v154, %v150
  %v215 = vpack.c.b16 %v155, %v151
  %v216 = vpack.c.b16 %v160, %v156
  %v217 = vpack.c.b16 %v161, %v157
  %v218 = vpack.c.b16 %v162, %v158
  %v219 = vpack.c.b16 %v163, %v159
  %v220 = vpack.c.b16 %v168, %v164
  %v221 = vpack.c.b16 %v169, %v165
  %v222 = vpack.c.b16 %v170, %v166
  %v223 = vpack.c.b16 %v171, %v167
  %v224 = vpack.c.b16 %v176, %v172
  %v225 = vpack.c.b16 %v177, %v173
  %v226 = vpack.c.b16 %v178, %v174
  %v227 = vpack.c.b16 %v179, %v175
  %v228 = vpack.c.b16 %v184, %v180
  %v229 = vpack.c.b16 %v185, %v181
  %v230 = vpack.c.b16 %v186, %v182
  %v231 = vpack.c.b16 %v187, %v183
  %v232 = vpack.c.b16 %v192, %v188
  %v233 = vpack.c.b16 %v193, %v189
  %v234 = vpack.c.b16 %v194, %v190
  %v235 = vpack.c.b16 %v195, %v191
  %v236 = vpack.c.b16 %v200, %v196
  %v237 = vpack.c.b16 %v201, %v197
  %v238 = vpack.c.b16 %v202, %v198
  %v239 = vpack.c.b16 %v203, %v199
  %v240 = vpack.c.b16 %v208, %v204
  %v241 = vpack.c.b16 %v209, %v205
  %v242 = vpack.c.b16 %v210, %v206
  %v243 = vpack.c.b16 %v211, %v207
  %v340 = vunpack.c.l.b16 %v46
  %v341 = vunpack.c.h.b16 %v46
  %v342 = vunpack.c.l.b16 %v47
  %v343 = vunpack.c.h.b16 %v47
  %v344 = vunpack.c.l.b16 %v48
  %v345 = vunpack.c.h.b16 %v48
  %v346 = vunpack.c.l.b16 %v49
  %v347 = vunpack.c.h.b16 %v49
  %v348 = vunpack.c.l.b16 %v50
  %v349 = vunpack.c.h.b16 %v50
  %v350 = vunpack.c.l.b16 %v51
  %v351 = vunpack.c.h.b16 %v51
  %v352 = vunpack.c.l.b16 %v52
  %v353 = vunpack.c.h.b16 %v52
  %v354 = vunpack.c.l.b16 %v53
  %v355 = vunpack.c.h.b16 %v53
  %v356 = vunpack.c.l.b16 %v54
  %v357 = vunpack.c.h.b16 %v54
  %v358 = vunpack.c.l.b16 %v55
  %v359 = vunpack.c.h.b16 %v55
  %v360 = vunpack.c.l.b16 %v56
  %v361 = vunpack.c.h.b16 %v56
  %v362 = vunpack.c.l.b16 %v57
  %v363 = vunpack.c.h.b16 %v57
  %v364 = vunpack.c.l.b16 %v58
  %v365 = vunpack.c.h.b16 %v58
  %v366 = vunpack.c.l.b16 %v59
  %v367 = vunpack.c.h.b16 %v59
  %v368 = vunpack.c.l.b16 %v60
  %v369 = vunpack.c.h.b16 %v60
  %v370 = vunpack.c.l.b16 %v61
  %v371 = vunpack.c.h.b16 %v61
  %v372 = vunpack.c.l.b16 %v62
  %v373 = vunpack.c.h.b16 %v62
  %v374 = vunpack.c.l.b16 %v63
  %v375 = vunpack.c.h.b16 %v63
  %v376 = vunpack.c.l.b16 %v64
  %v377 = vunpack.c.h.b16 %v64
  %v378 = vunpack.c.l.b16 %v65
  %v379 = vunpack.c.h.b16 %v65
  %v380 = vunpack.c.l.b16 %v66
  %v381 = vunpack.c.h.b16 %v66
  %v382 = vunpack.c.l.b16 %v67
  %v383 = vunpack.c.h.b16 %v67
  %v384 = vunpack.c.l.b16 %v68
  %v385 = vunpack.c.h.b16 %v68
  %v386 = vunpack.c.l.b16 %v69
  %v387 = vunpack.c.h.b16 %v69
  %v388 = vunpack.c.l.b16 %v70
  %v389 = vunpack.c.h.b16 %v70
  %v390 = vunpack.c.l.b16 %v71
  %v391 = vunpack.c.h.b16 %v71
  %v392 = vunpack.c.l.b16 %v72
  %v393 = vunpack.c.h.b16 %v72
  %v394 = vunpack.c.l.b16 %v73
  %v395 = vunpack.c.h.b16 %v73
  %v396 = vunpack.c.l.b16 %v74
  %v397 = vunpack.c.h.b16 %v74
  %v398 = vunpack.c.l.b16 %v75
  %v399 = vunpack.c.h.b16 %v75
  %v400 = vunpack.c.l.b16 %v76
  %v401 = vunpack.c.h.b16 %v76
  %v402 = vunpack.c.l.b16 %v77
  %v403 = vunpack.c.h.b16 %v77
  %v404 = vunpack.c.l.b16 %v78
  %v405 = vunpack.c.h.b16 %v78
  %v406 = vunpack.c.l.b16 %v79
  %v407 = vunpack.c.h.b16 %v79
  %v408 = vunpack.c.l.b16 %v80
  %v409 = vunpack.c.h.b16 %v80
  %v410 = vunpack.c.l.b16 %v81
  %v411 = vunpack.c.h.b16 %v81
  %v412 = vunpack.c.l.b16 %v82
  %v413 = vunpack.c.h.b16 %v82
  %v414 = vunpack.c.l.b16 %v83
  %v415 = vunpack.c.h.b16 %v83
  %v416 = vunpack.c.l.b16 %v84
  %v417 = vunpack.c.h.b16 %v84
  %v418 = vunpack.c.l.b16 %v85
  %v419 = vunpack.c.h.b16 %v85
  %v420 = vunpack.c.l.b16 %v86
  %v421 = vunpack.c.h.b16 %v86
  %v422 = vunpack.c.l.b16 %v87
  %v423 = vunpack.c.h.b16 %v87
  %v424 = vunpack.c.l.b16 %v88
  %v425 = vunpack.c.h.b16 %v88
  %v426 = vunpack.c.l.b16 %v89
  %v427 = vunpack.c.h.b16 %v89
  %v428 = vunpack.c.l.b16 %v90
  %v429 = vunpack.c.h.b16 %v90
  %v430 = vunpack.c.l.b16 %v91
  %v431 = vunpack.c.h.b16 %v91
  %v432 = vunpack.c.l.b16 %v92
  %v433 = vunpack.c.h.b16 %v92
  %v434 = vunpack.c.l.b16 %v93
  %v435 = vunpack.c.h.b16 %v93
  %v436 = vunpack.c.l.b16 %v94
  %v437 = vunpack.c.h.b16 %v94
  %v438 = vunpack.c.l.b16 %v95
  %v439 = vunpack.c.h.b16 %v95
  %v440 = vunpack.c.l.b16 %v96
  %v441 = vunpack.c.h.b16 %v96
  %v442 = vunpack.c.l.b16 %v97
  %v443 = vunpack.c.h.b16 %v97
  %v444 = vunpack.c.l.b16 %v98
  %v445 = vunpack.c.h.b16 %v98
  %v446 = vunpack.c.l.b16 %v99
  %v447 = vunpack.c.h.b16 %v99
  %v448 = vunpack.c.l.b16 %v100
  %v449 = vunpack.c.h.b16 %v100
  %v450 = vunpack.c.l.b16 %v101
  %v451 = vunpack.c.h.b16 %v101
  %v452 = vunpack.c.l.b16 %v102
  %v453 = vunpack.c.h.b16 %v102
  %v454 = vunpack.c.l.b16 %v103
  %v455 = vunpack.c.h.b16 %v103
  %v456 = vunpack.c.l.b16 %v104
  %v457 = vunpack.c.h.b16 %v104
  %v458 = vunpack.c.l.b16 %v105
  %v459 = vunpack.c.h.b16 %v105
  %v460 = vunpack.c.l.b16 %v106
  %v461 = vunpack.c.h.b16 %v106
  %v462 = vunpack.c.l.b16 %v107
  %v463 = vunpack.c.h.b16 %v107
  %v464 = vunpack.c.l.b16 %v108
  %v465 = vunpack.c.h.b16 %v108
  %v466 = vunpack.c.l.b16 %v109
  %v467 = vunpack.c.h.b16 %v109
  %v468 = vpack.c.b16 %v342, %v340
  %v469 = vpack.c.b16 %v343, %v341
  %v470 = vpack.c.b16 %v346, %v344
  %v471 = vpack.c.b16 %v347, %v345
  %v472 = vpack.c.b16 %v350, %v348
  %v473 = vpack.c.b16 %v351, %v349
  %v474 = vpack.c.b16 %v354, %v352
  %v475 = vpack.c.b16 %v355, %v353
  %v476 = vpack.c.b16 %v358, %v356
  %v477 = vpack.c.b16 %v359, %v357
  %v478 = vpack.c.b16 %v362, %v360
  %v479 = vpack.c.b16 %v363, %v361
  %v480 = vpack.c.b16 %v366, %v364
  %v481 = vpack.c.b16 %v367, %v365
  %v482 = vpack.c.b16 %v370, %v368
  %v483 = vpack.c.b16 %v371, %v369
  %v484 = vpack.c.b16 %v374, %v372
  %v485 = vpack.c.b16 %v375, %v373
  %v486 = vpack.c.b16 %v378, %v376
  %v487 = vpack.c.b16 %v379, %v377
  %v488 = vpack.c.b16 %v382, %v380
  %v489 = vpack.c.b16 %v383, %v381
  %v490 = vpack.c.b16 %v386, %v384
  %v491 = vpack.c.b16 %v387, %v385
  %v492 = vpack.c.b16 %v390, %v388
  %v493 = vpack.c.b16 %v391, %v389
  %v494 = vpack.c.b16 %v394, %v392
  %v495 = vpack.c.b16 %v395, %v393
  %v496 = vpack.c.b16 %v398, %v396
  %v497 = vpack.c.b16 %v399, %v397
  %v498 = vpack.c.b16 %v402, %v400
  %v499 = vpack.c.b16 %v403, %v401
  %v500 = vpack.c.b16 %v406, %v404
  %v501 = vpack.c.b16 %v407, %v405
  %v502 = vpack.c.b16 %v410, %v408
  %v503 = vpack.c.b16 %v411, %v409
  %v504 = vpack.c.b16 %v414, %v412
  %v505 = vpack.c.b16 %v415, %v413
  %v506 = vpack.c.b16 %v418, %v416
  %v507 = vpack.c.b16 %v419, %v417
  %v508 = vpack.c.b16 %v422, %v420
  %v509 = vpack.c.b16 %v423, %v421
  %v510 = vpack.c.b16 %v426, %v424
  %v511 = vpack.c.b16 %v427, %v425
  %v512 = vpack.c.b16 %v430, %v428
  %v513 = vpack.c.b16 %v431, %v429
  %v514 = vpack.c.b16 %v434, %v432
  %v515 = vpack.c.b16 %v435, %v433
  %v516 = vpack.c.b16 %v438, %v436
  %v517 = vpack.c.b16 %v439, %v437
  %v518 = vpack.c.b16 %v442, %v440
  %v519 = vpack.c.b16 %v443, %v441
  %v520 = vpack.c.b16 %v446, %v444
  %v521 = vpack.c.b16 %v447, %v445
  %v522 = vpack.c.b16 %v450, %v448
  %v523 = vpack.c.b16 %v451, %v449
  %v524 = vpack.c.b16 %v454, %v452
  %v525 = vpack.c.b16 %v455, %v453
  %v526 = vpack.c.b16 %v458, %v456
  %v527 = vpack.c.b16 %v459, %v457
  %v528 = vpack.c.b16 %v462, %v460
  %v529 = vpack.c.b16 %v463, %v461
  %v530 = vpack.c.b16 %v466, %v464
  %v531 = vpack.c.b16 %v467, %v465
  %596 = vmatpush.bf16.msra.mxu0 %v482
  %597 = vmatpush.bf16.msra.mxu0 %v480
  %598 = vmatpush.bf16.msra.mxu0 %v478
  %599 = vmatpush.bf16.msra.mxu0 %v476
  %600 = vmatpush.bf16.msra.mxu0 %v474
  %601 = vmatpush.bf16.msra.mxu0 %v472
  %602 = vmatpush.bf16.msra.mxu0 %v470
  %603 = vmatpush.bf16.msra.mxu0 %v468
  %604 = vmatmul.bf16.gmra.mxu0 %v212
  %v605 = vpop.f32.mrf.mxu0
  %v606 = vadd.f32 %v112, %v605
  %v607 = vpop.f32.mrf.mxu0
  %v608 = vadd.f32 %v112, %v607
  %609 = vmatmul.bf16.gmra.mxu0 %v216
  %v610 = vpop.f32.mrf.mxu0
  %v611 = vadd.f32 %v112, %v610
  %v612 = vpop.f32.mrf.mxu0
  %v613 = vadd.f32 %v112, %v612
  %614 = vmatmul.bf16.gmra.mxu0 %v220
  %v615 = vpop.f32.mrf.mxu0
  %v616 = vadd.f32 %v112, %v615
  %v617 = vpop.f32.mrf.mxu0
  %v618 = vadd.f32 %v112, %v617
  %619 = vmatmul.bf16.gmra.mxu0 %v224
  %v620 = vpop.f32.mrf.mxu0
  %v621 = vadd.f32 %v112, %v620
  %v622 = vpop.f32.mrf.mxu0
  %v623 = vadd.f32 %v112, %v622
  %624 = vmatmul.bf16.gmra.mxu0 %v228
  %v625 = vpop.f32.mrf.mxu0
  %v626 = vadd.f32 %v112, %v625
  %v627 = vpop.f32.mrf.mxu0
  %v628 = vadd.f32 %v112, %v627
  %629 = vmatmul.bf16.gmra.mxu0 %v232
  %v630 = vpop.f32.mrf.mxu0
  %v631 = vadd.f32 %v112, %v630
  %v632 = vpop.f32.mrf.mxu0
  %v633 = vadd.f32 %v112, %v632
  %634 = vmatmul.bf16.gmra.mxu0 %v236
  %v635 = vpop.f32.mrf.mxu0
  %v636 = vadd.f32 %v112, %v635
  %v637 = vpop.f32.mrf.mxu0
  %v638 = vadd.f32 %v112, %v637
  %639 = vmatmul.bf16.gmra.mxu0 %v240
  %v640 = vpop.f32.mrf.mxu0
  %v641 = vadd.f32 %v112, %v640
  %v642 = vpop.f32.mrf.mxu0
  %v643 = vadd.f32 %v112, %v642
  %644 = vdwg.mxu0
  %645 = vmatpush.bf16.msra.mxu0 %v498
  %646 = vmatpush.bf16.msra.mxu0 %v496
  %647 = vmatpush.bf16.msra.mxu0 %v494
  %648 = vmatpush.bf16.msra.mxu0 %v492
  %649 = vmatpush.bf16.msra.mxu0 %v490
  %650 = vmatpush.bf16.msra.mxu0 %v488
  %651 = vmatpush.bf16.msra.mxu0 %v486
  %652 = vmatpush.bf16.msra.mxu0 %v484
  %653 = vmatmul.bf16.gmra.mxu0 %v213
  %v654 = vpop.f32.mrf.mxu0
  %v655 = vadd.f32 %v606, %v654
  %v656 = vpop.f32.mrf.mxu0
  %v657 = vadd.f32 %v608, %v656
  %658 = vmatmul.bf16.gmra.mxu0 %v217
  %v659 = vpop.f32.mrf.mxu0
  %v660 = vadd.f32 %v611, %v659
  %v661 = vpop.f32.mrf.mxu0
  %v662 = vadd.f32 %v613, %v661
  %663 = vmatmul.bf16.gmra.mxu0 %v221
  %v664 = vpop.f32.mrf.mxu0
  %v665 = vadd.f32 %v616, %v664
  %v666 = vpop.f32.mrf.mxu0
  %v667 = vadd.f32 %v618, %v666
  %668 = vmatmul.bf16.gmra.mxu0 %v225
  %v669 = vpop.f32.mrf.mxu0
  %v670 = vadd.f32 %v621, %v669
  %v671 = vpop.f32.mrf.mxu0
  %v672 = vadd.f32 %v623, %v671
  %673 = vmatmul.bf16.gmra.mxu0 %v229
  %v674 = vpop.f32.mrf.mxu0
  %v675 = vadd.f32 %v626, %v674
  %v676 = vpop.f32.mrf.mxu0
  %v677 = vadd.f32 %v628, %v676
  %678 = vmatmul.bf16.gmra.mxu0 %v233
  %v679 = vpop.f32.mrf.mxu0
  %v680 = vadd.f32 %v631, %v679
  %v681 = vpop.f32.mrf.mxu0
  %v682 = vadd.f32 %v633, %v681
  %683 = vmatmul.bf16.gmra.mxu0 %v237
  %v684 = vpop.f32.mrf.mxu0
  %v685 = vadd.f32 %v636, %v684
  %v686 = vpop.f32.mrf.mxu0
  %v687 = vadd.f32 %v638, %v686
  %688 = vmatmul.bf16.gmra.mxu0 %v241
  %v689 = vpop.f32.mrf.mxu0
  %v690 = vadd.f32 %v641, %v689
  %v691 = vpop.f32.mrf.mxu0
  %v692 = vadd.f32 %v643, %v691
  %693 = vdwg.mxu0
  %694 = vmatpush.bf16.msra.mxu0 %v514
  %695 = vmatpush.bf16.msra.mxu0 %v512
  %696 = vmatpush.bf16.msra.mxu0 %v510
  %697 = vmatpush.bf16.msra.mxu0 %v508
  %698 = vmatpush.bf16.msra.mxu0 %v506
  %699 = vmatpush.bf16.msra.mxu0 %v504
  %700 = vmatpush.bf16.msra.mxu0 %v502
  %701 = vmatpush.bf16.msra.mxu0 %v500
  %702 = vmatmul.bf16.gmra.mxu0 %v214
  %v703 = vpop.f32.mrf.mxu0
  %v704 = vadd.f32 %v655, %v703
  %v705 = vpop.f32.mrf.mxu0
  %v706 = vadd.f32 %v657, %v705
  %707 = vmatmul.bf16.gmra.mxu0 %v218
  %v708 = vpop.f32.mrf.mxu0
  %v709 = vadd.f32 %v660, %v708
  %v710 = vpop.f32.mrf.mxu0
  %v711 = vadd.f32 %v662, %v710
  %712 = vmatmul.bf16.gmra.mxu0 %v222
  %v713 = vpop.f32.mrf.mxu0
  %v714 = vadd.f32 %v665, %v713
  %v715 = vpop.f32.mrf.mxu0
  %v716 = vadd.f32 %v667, %v715
  %717 = vmatmul.bf16.gmra.mxu0 %v226
  %v718 = vpop.f32.mrf.mxu0
  %v719 = vadd.f32 %v670, %v718
  %v720 = vpop.f32.mrf.mxu0
  %v721 = vadd.f32 %v672, %v720
  %722 = vmatmul.bf16.gmra.mxu0 %v230
  %v723 = vpop.f32.mrf.mxu0
  %v724 = vadd.f32 %v675, %v723
  %v725 = vpop.f32.mrf.mxu0
  %v726 = vadd.f32 %v677, %v725
  %727 = vmatmul.bf16.gmra.mxu0 %v234
  %v728 = vpop.f32.mrf.mxu0
  %v729 = vadd.f32 %v680, %v728
  %v730 = vpop.f32.mrf.mxu0
  %v731 = vadd.f32 %v682, %v730
  %732 = vmatmul.bf16.gmra.mxu0 %v238
  %v733 = vpop.f32.mrf.mxu0
  %v734 = vadd.f32 %v685, %v733
  %v735 = vpop.f32.mrf.mxu0
  %v736 = vadd.f32 %v687, %v735
  %737 = vmatmul.bf16.gmra.mxu0 %v242
  %v738 = vpop.f32.mrf.mxu0
  %v739 = vadd.f32 %v690, %v738
  %v740 = vpop.f32.mrf.mxu0
  %v741 = vadd.f32 %v692, %v740
  %742 = vdwg.mxu0
  %743 = vmatpush.bf16.msra.mxu0 %v530
  %744 = vmatpush.bf16.msra.mxu0 %v528
  %745 = vmatpush.bf16.msra.mxu0 %v526
  %746 = vmatpush.bf16.msra.mxu0 %v524
  %747 = vmatpush.bf16.msra.mxu0 %v522
  %748 = vmatpush.bf16.msra.mxu0 %v520
  %749 = vmatpush.bf16.msra.mxu0 %v518
  %750 = vmatpush.bf16.msra.mxu0 %v516
  %751 = vmatmul.bf16.gmra.mxu0 %v215
  %v752 = vpop.f32.mrf.mxu0
  %v753 = vadd.f32 %v704, %v752
  %v754 = vpop.f32.mrf.mxu0
  %v755 = vadd.f32 %v706, %v754
  %756 = vmatmul.bf16.gmra.mxu0 %v219
  %v757 = vpop.f32.mrf.mxu0
  %v758 = vadd.f32 %v709, %v757
  %v759 = vpop.f32.mrf.mxu0
  %v760 = vadd.f32 %v711, %v759
  %761 = vmatmul.bf16.gmra.mxu0 %v223
  %v762 = vpop.f32.mrf.mxu0
  %v763 = vadd.f32 %v714, %v762
  %v764 = vpop.f32.mrf.mxu0
  %v765 = vadd.f32 %v716, %v764
  %766 = vmatmul.bf16.gmra.mxu0 %v227
  %v767 = vpop.f32.mrf.mxu0
  %v768 = vadd.f32 %v719, %v767
  %v769 = vpop.f32.mrf.mxu0
  %v770 = vadd.f32 %v721, %v769
  %771 = vmatmul.bf16.gmra.mxu0 %v231
  %v772 = vpop.f32.mrf.mxu0
  %v773 = vadd.f32 %v724, %v772
  %v774 = vpop.f32.mrf.mxu0
  %v775 = vadd.f32 %v726, %v774
  %776 = vmatmul.bf16.gmra.mxu0 %v235
  %v777 = vpop.f32.mrf.mxu0
  %v778 = vadd.f32 %v729, %v777
  %v779 = vpop.f32.mrf.mxu0
  %v780 = vadd.f32 %v731, %v779
  %781 = vmatmul.bf16.gmra.mxu0 %v239
  %v782 = vpop.f32.mrf.mxu0
  %v783 = vadd.f32 %v734, %v782
  %v784 = vpop.f32.mrf.mxu0
  %v785 = vadd.f32 %v736, %v784
  %786 = vmatmul.bf16.gmra.mxu0 %v243
  %v787 = vpop.f32.mrf.mxu0
  %v788 = vadd.f32 %v739, %v787
  %v789 = vpop.f32.mrf.mxu0
  %v790 = vadd.f32 %v741, %v789
  %791 = vdwg.mxu0
  %792 = vmatpush.bf16.msra.mxu0 %v483
  %793 = vmatpush.bf16.msra.mxu0 %v481
  %794 = vmatpush.bf16.msra.mxu0 %v479
  %795 = vmatpush.bf16.msra.mxu0 %v477
  %796 = vmatpush.bf16.msra.mxu0 %v475
  %797 = vmatpush.bf16.msra.mxu0 %v473
  %798 = vmatpush.bf16.msra.mxu0 %v471
  %799 = vmatpush.bf16.msra.mxu0 %v469
  %800 = vmatmul.bf16.gmra.mxu0 %v212
  %v801 = vpop.f32.mrf.mxu0
  %v802 = vadd.f32 %v113, %v801
  %v803 = vpop.f32.mrf.mxu0
  %v804 = vadd.f32 %v113, %v803
  %805 = vmatmul.bf16.gmra.mxu0 %v216
  %v806 = vpop.f32.mrf.mxu0
  %v807 = vadd.f32 %v113, %v806
  %v808 = vpop.f32.mrf.mxu0
  %v809 = vadd.f32 %v113, %v808
  %810 = vmatmul.bf16.gmra.mxu0 %v220
  %v811 = vpop.f32.mrf.mxu0
  %v812 = vadd.f32 %v113, %v811
  %v813 = vpop.f32.mrf.mxu0
  %v814 = vadd.f32 %v113, %v813
  %815 = vmatmul.bf16.gmra.mxu0 %v224
  %v816 = vpop.f32.mrf.mxu0
  %v817 = vadd.f32 %v113, %v816
  %v818 = vpop.f32.mrf.mxu0
  %v819 = vadd.f32 %v113, %v818
  %820 = vmatmul.bf16.gmra.mxu0 %v228
  %v821 = vpop.f32.mrf.mxu0
  %v822 = vadd.f32 %v113, %v821
  %v823 = vpop.f32.mrf.mxu0
  %v824 = vadd.f32 %v113, %v823
  %825 = vmatmul.bf16.gmra.mxu0 %v232
  %v826 = vpop.f32.mrf.mxu0
  %v827 = vadd.f32 %v113, %v826
  %v828 = vpop.f32.mrf.mxu0
  %v829 = vadd.f32 %v113, %v828
  %830 = vmatmul.bf16.gmra.mxu0 %v236
  %v831 = vpop.f32.mrf.mxu0
  %v832 = vadd.f32 %v113, %v831
  %v833 = vpop.f32.mrf.mxu0
  %v834 = vadd.f32 %v113, %v833
  %835 = vmatmul.bf16.gmra.mxu0 %v240
  %v836 = vpop.f32.mrf.mxu0
  %v837 = vadd.f32 %v113, %v836
  %v838 = vpop.f32.mrf.mxu0
  %v839 = vadd.f32 %v113, %v838
  %840 = vdwg.mxu0
  %841 = vmatpush.bf16.msra.mxu0 %v499
  %842 = vmatpush.bf16.msra.mxu0 %v497
  %843 = vmatpush.bf16.msra.mxu0 %v495
  %844 = vmatpush.bf16.msra.mxu0 %v493
  %845 = vmatpush.bf16.msra.mxu0 %v491
  %846 = vmatpush.bf16.msra.mxu0 %v489
  %847 = vmatpush.bf16.msra.mxu0 %v487
  %848 = vmatpush.bf16.msra.mxu0 %v485
  %849 = vmatmul.bf16.gmra.mxu0 %v213
  %v850 = vpop.f32.mrf.mxu0
  %v851 = vadd.f32 %v802, %v850
  %v852 = vpop.f32.mrf.mxu0
  %v853 = vadd.f32 %v804, %v852
  %854 = vmatmul.bf16.gmra.mxu0 %v217
  %v855 = vpop.f32.mrf.mxu0
  %v856 = vadd.f32 %v807, %v855
  %v857 = vpop.f32.mrf.mxu0
  %v858 = vadd.f32 %v809, %v857
  %859 = vmatmul.bf16.gmra.mxu0 %v221
  %v860 = vpop.f32.mrf.mxu0
  %v861 = vadd.f32 %v812, %v860
  %v862 = vpop.f32.mrf.mxu0
  %v863 = vadd.f32 %v814, %v862
  %864 = vmatmul.bf16.gmra.mxu0 %v225
  %v865 = vpop.f32.mrf.mxu0
  %v866 = vadd.f32 %v817, %v865
  %v867 = vpop.f32.mrf.mxu0
  %v868 = vadd.f32 %v819, %v867
  %869 = vmatmul.bf16.gmra.mxu0 %v229
  %v870 = vpop.f32.mrf.mxu0
  %v871 = vadd.f32 %v822, %v870
  %v872 = vpop.f32.mrf.mxu0
  %v873 = vadd.f32 %v824, %v872
  %874 = vmatmul.bf16.gmra.mxu0 %v233
  %v875 = vpop.f32.mrf.mxu0
  %v876 = vadd.f32 %v827, %v875
  %v877 = vpop.f32.mrf.mxu0
  %v878 = vadd.f32 %v829, %v877
  %879 = vmatmul.bf16.gmra.mxu0 %v237
  %v880 = vpop.f32.mrf.mxu0
  %v881 = vadd.f32 %v832, %v880
  %v882 = vpop.f32.mrf.mxu0
  %v883 = vadd.f32 %v834, %v882
  %884 = vmatmul.bf16.gmra.mxu0 %v241
  %v885 = vpop.f32.mrf.mxu0
  %v886 = vadd.f32 %v837, %v885
  %v887 = vpop.f32.mrf.mxu0
  %v888 = vadd.f32 %v839, %v887
  %889 = vdwg.mxu0
  %890 = vmatpush.bf16.msra.mxu0 %v515
  %891 = vmatpush.bf16.msra.mxu0 %v513
  %892 = vmatpush.bf16.msra.mxu0 %v511
  %893 = vmatpush.bf16.msra.mxu0 %v509
  %894 = vmatpush.bf16.msra.mxu0 %v507
  %895 = vmatpush.bf16.msra.mxu0 %v505
  %896 = vmatpush.bf16.msra.mxu0 %v503
  %897 = vmatpush.bf16.msra.mxu0 %v501
  %898 = vmatmul.bf16.gmra.mxu0 %v214
  %v899 = vpop.f32.mrf.mxu0
  %v900 = vadd.f32 %v851, %v899
  %v901 = vpop.f32.mrf.mxu0
  %v902 = vadd.f32 %v853, %v901
  %903 = vmatmul.bf16.gmra.mxu0 %v218
  %v904 = vpop.f32.mrf.mxu0
  %v905 = vadd.f32 %v856, %v904
  %v906 = vpop.f32.mrf.mxu0
  %v907 = vadd.f32 %v858, %v906
  %908 = vmatmul.bf16.gmra.mxu0 %v222
  %v909 = vpop.f32.mrf.mxu0
  %v910 = vadd.f32 %v861, %v909
  %v911 = vpop.f32.mrf.mxu0
  %v912 = vadd.f32 %v863, %v911
  %913 = vmatmul.bf16.gmra.mxu0 %v226
  %v914 = vpop.f32.mrf.mxu0
  %v915 = vadd.f32 %v866, %v914
  %v916 = vpop.f32.mrf.mxu0
  %v917 = vadd.f32 %v868, %v916
  %918 = vmatmul.bf16.gmra.mxu0 %v230
  %v919 = vpop.f32.mrf.mxu0
  %v920 = vadd.f32 %v871, %v919
  %v921 = vpop.f32.mrf.mxu0
  %v922 = vadd.f32 %v873, %v921
  %923 = vmatmul.bf16.gmra.mxu0 %v234
  %v924 = vpop.f32.mrf.mxu0
  %v925 = vadd.f32 %v876, %v924
  %v926 = vpop.f32.mrf.mxu0
  %v927 = vadd.f32 %v878, %v926
  %928 = vmatmul.bf16.gmra.mxu0 %v238
  %v929 = vpop.f32.mrf.mxu0
  %v930 = vadd.f32 %v881, %v929
  %v931 = vpop.f32.mrf.mxu0
  %v932 = vadd.f32 %v883, %v931
  %933 = vmatmul.bf16.gmra.mxu0 %v242
  %v934 = vpop.f32.mrf.mxu0
  %v935 = vadd.f32 %v886, %v934
  %v936 = vpop.f32.mrf.mxu0
  %v937 = vadd.f32 %v888, %v936
  %938 = vdwg.mxu0
  %939 = vmatpush.bf16.msra.mxu0 %v531
  %940 = vmatpush.bf16.msra.mxu0 %v529
  %941 = vmatpush.bf16.msra.mxu0 %v527
  %942 = vmatpush.bf16.msra.mxu0 %v525
  %943 = vmatpush.bf16.msra.mxu0 %v523
  %944 = vmatpush.bf16.msra.mxu0 %v521
  %945 = vmatpush.bf16.msra.mxu0 %v519
  %946 = vmatpush.bf16.msra.mxu0 %v517
  %947 = vmatmul.bf16.gmra.mxu0 %v215
  %v948 = vpop.f32.mrf.mxu0
  %v949 = vadd.f32 %v900, %v948
  %v950 = vpop.f32.mrf.mxu0
  %v951 = vadd.f32 %v902, %v950
  %952 = vmatmul.bf16.gmra.mxu0 %v219
  %v953 = vpop.f32.mrf.mxu0
  %v954 = vadd.f32 %v905, %v953
  %v955 = vpop.f32.mrf.mxu0
  %v956 = vadd.f32 %v907, %v955
  %957 = vmatmul.bf16.gmra.mxu0 %v223
  %v958 = vpop.f32.mrf.mxu0
  %v959 = vadd.f32 %v910, %v958
  %v960 = vpop.f32.mrf.mxu0
  %v961 = vadd.f32 %v912, %v960
  %962 = vmatmul.bf16.gmra.mxu0 %v227
  %v963 = vpop.f32.mrf.mxu0
  %v964 = vadd.f32 %v915, %v963
  %v965 = vpop.f32.mrf.mxu0
  %v966 = vadd.f32 %v917, %v965
  %967 = vmatmul.bf16.gmra.mxu0 %v231
  %v968 = vpop.f32.mrf.mxu0
  %v969 = vadd.f32 %v920, %v968
  %v970 = vpop.f32.mrf.mxu0
  %v971 = vadd.f32 %v922, %v970
  %972 = vmatmul.bf16.gmra.mxu0 %v235
  %v973 = vpop.f32.mrf.mxu0
  %v974 = vadd.f32 %v925, %v973
  %v975 = vpop.f32.mrf.mxu0
  %v976 = vadd.f32 %v927, %v975
  %977 = vmatmul.bf16.gmra.mxu0 %v239
  %v978 = vpop.f32.mrf.mxu0
  %v979 = vadd.f32 %v930, %v978
  %v980 = vpop.f32.mrf.mxu0
  %v981 = vadd.f32 %v932, %v980
  %982 = vmatmul.bf16.gmra.mxu0 %v243
  %v983 = vpop.f32.mrf.mxu0
  %v984 = vadd.f32 %v935, %v983
  %v985 = vpop.f32.mrf.mxu0
  %v986 = vadd.f32 %v937, %v985
  %987 = vdwg.mxu0
  %vm988 = vcmp.ge.f32.partialorder %v753, 0.0
  %vm989 = vcmp.ge.f32.partialorder %v949, 0.0
  %vm990 = vcmp.ge.f32.partialorder %v755, 0.0
  %vm991 = vcmp.ge.f32.partialorder %v951, 0.0
  %vm992 = vcmp.ge.f32.partialorder %v758, 0.0
  %vm993 = vcmp.ge.f32.partialorder %v954, 0.0
  %vm994 = vcmp.ge.f32.partialorder %v760, 0.0
  %vm995 = vcmp.ge.f32.partialorder %v956, 0.0
  %vm996 = vcmp.ge.f32.partialorder %v763, 0.0
  %vm997 = vcmp.ge.f32.partialorder %v959, 0.0
  %vm998 = vcmp.ge.f32.partialorder %v765, 0.0
  %vm999 = vcmp.ge.f32.partialorder %v961, 0.0
  %vm1000 = vcmp.ge.f32.partialorder %v768, 0.0
  %vm1001 = vcmp.ge.f32.partialorder %v964, 0.0
  %vm1002 = vcmp.ge.f32.partialorder %v770, 0.0
  %vm1003 = vcmp.ge.f32.partialorder %v966, 0.0
  %vm1004 = vcmp.ge.f32.partialorder %v773, 0.0
  %vm1005 = vcmp.ge.f32.partialorder %v969, 0.0
  %vm1006 = vcmp.ge.f32.partialorder %v775, 0.0
  %vm1007 = vcmp.ge.f32.partialorder %v971, 0.0
  %vm1008 = vcmp.ge.f32.partialorder %v778, 0.0
  %vm1009 = vcmp.ge.f32.partialorder %v974, 0.0
  %vm1010 = vcmp.ge.f32.partialorder %v780, 0.0
  %vm1011 = vcmp.ge.f32.partialorder %v976, 0.0
  %vm1012 = vcmp.ge.f32.partialorder %v783, 0.0
  %vm1013 = vcmp.ge.f32.partialorder %v979, 0.0
  %vm1014 = vcmp.ge.f32.partialorder %v785, 0.0
  %vm1015 = vcmp.ge.f32.partialorder %v981, 0.0
  %vm1016 = vcmp.ge.f32.partialorder %v788, 0.0
  %vm1017 = vcmp.ge.f32.partialorder %v984, 0.0
  %vm1018 = vcmp.ge.f32.partialorder %v790, 0.0
  %vm1019 = vcmp.ge.f32.partialorder %v986, 0.0
  %v1020 = vmul.f32 %v753, 0.01
  %v1021 = vmul.f32 %v949, 0.01
  %v1022 = vmul.f32 %v755, 0.01
  %v1023 = vmul.f32 %v951, 0.01
  %v1024 = vmul.f32 %v758, 0.01
  %v1025 = vmul.f32 %v954, 0.01
  %v1026 = vmul.f32 %v760, 0.01
  %v1027 = vmul.f32 %v956, 0.01
  %v1028 = vmul.f32 %v763, 0.01
  %v1029 = vmul.f32 %v959, 0.01
  %v1030 = vmul.f32 %v765, 0.01
  %v1031 = vmul.f32 %v961, 0.01
  %v1032 = vmul.f32 %v768, 0.01
  %v1033 = vmul.f32 %v964, 0.01
  %v1034 = vmul.f32 %v770, 0.01
  %v1035 = vmul.f32 %v966, 0.01
  %v1036 = vmul.f32 %v773, 0.01
  %v1037 = vmul.f32 %v969, 0.01
  %v1038 = vmul.f32 %v775, 0.01
  %v1039 = vmul.f32 %v971, 0.01
  %v1040 = vmul.f32 %v778, 0.01
  %v1041 = vmul.f32 %v974, 0.01
  %v1042 = vmul.f32 %v780, 0.01
  %v1043 = vmul.f32 %v976, 0.01
  %v1044 = vmul.f32 %v783, 0.01
  %v1045 = vmul.f32 %v979, 0.01
  %v1046 = vmul.f32 %v785, 0.01
  %v1047 = vmul.f32 %v981, 0.01
  %v1048 = vmul.f32 %v788, 0.01
  %v1049 = vmul.f32 %v984, 0.01
  %v1050 = vmul.f32 %v790, 0.01
  %v1051 = vmul.f32 %v986, 0.01
  %v1052 = vsel %vm988, %v753, %v1020
  %v1053 = vsel %vm989, %v949, %v1021
  %v1054 = vsel %vm990, %v755, %v1022
  %v1055 = vsel %vm991, %v951, %v1023
  %v1056 = vsel %vm992, %v758, %v1024
  %v1057 = vsel %vm993, %v954, %v1025
  %v1058 = vsel %vm994, %v760, %v1026
  %v1059 = vsel %vm995, %v956, %v1027
  %v1060 = vsel %vm996, %v763, %v1028
  %v1061 = vsel %vm997, %v959, %v1029
  %v1062 = vsel %vm998, %v765, %v1030
  %v1063 = vsel %vm999, %v961, %v1031
  %v1064 = vsel %vm1000, %v768, %v1032
  %v1065 = vsel %vm1001, %v964, %v1033
  %v1066 = vsel %vm1002, %v770, %v1034
  %v1067 = vsel %vm1003, %v966, %v1035
  %v1068 = vsel %vm1004, %v773, %v1036
  %v1069 = vsel %vm1005, %v969, %v1037
  %v1070 = vsel %vm1006, %v775, %v1038
  %v1071 = vsel %vm1007, %v971, %v1039
  %v1072 = vsel %vm1008, %v778, %v1040
  %v1073 = vsel %vm1009, %v974, %v1041
  %v1074 = vsel %vm1010, %v780, %v1042
  %v1075 = vsel %vm1011, %v976, %v1043
  %v1076 = vsel %vm1012, %v783, %v1044
  %v1077 = vsel %vm1013, %v979, %v1045
  %v1078 = vsel %vm1014, %v785, %v1046
  %v1079 = vsel %vm1015, %v981, %v1047
  %v1080 = vsel %vm1016, %v788, %v1048
  %v1081 = vsel %vm1017, %v984, %v1049
  %v1082 = vsel %vm1018, %v790, %v1050
  %v1083 = vsel %vm1019, %v986, %v1051
  %v1084 = vpack.c.bf16 %v1053, %v1052
  %v1085 = vpack.c.bf16 %v1055, %v1054
  %v1086 = vpack.c.bf16 %v1057, %v1056
  %v1087 = vpack.c.bf16 %v1059, %v1058
  %v1088 = vpack.c.bf16 %v1061, %v1060
  %v1089 = vpack.c.bf16 %v1063, %v1062
  %v1090 = vpack.c.bf16 %v1065, %v1064
  %v1091 = vpack.c.bf16 %v1067, %v1066
  %v1092 = vpack.c.bf16 %v1069, %v1068
  %v1093 = vpack.c.bf16 %v1071, %v1070
  %v1094 = vpack.c.bf16 %v1073, %v1072
  %v1095 = vpack.c.bf16 %v1075, %v1074
  %v1096 = vpack.c.bf16 %v1077, %v1076
  %v1097 = vpack.c.bf16 %v1079, %v1078
  %v1098 = vpack.c.bf16 %v1081, %v1080
  %v1099 = vpack.c.bf16 %v1083, %v1082
  %1100 = vst [vmem:[%s3] sm:$0xff] %v1084
  %1101 = vst [vmem:[%s3 + $0x8] sm:$0xff] %v1085
  %1102 = vst [vmem:[%s3 + $0x10] sm:$0xff] %v1086
  %1103 = vst [vmem:[%s3 + $0x18] sm:$0xff] %v1087
  %1104 = vst [vmem:[%s3 + $0x20] sm:$0xff] %v1088
  %1105 = vst [vmem:[%s3 + $0x28] sm:$0xff] %v1089
  %1106 = vst [vmem:[%s3 + $0x30] sm:$0xff] %v1090
  %1107 = vst [vmem:[%s3 + $0x38] sm:$0xff] %v1091
  %1108 = vst [vmem:[%s3 + $0x40] sm:$0xff] %v1092
  %1109 = vst [vmem:[%s3 + $0x48] sm:$0xff] %v1093
  %1110 = vst [vmem:[%s3 + $0x50] sm:$0xff] %v1094
  %1111 = vst [vmem:[%s3 + $0x58] sm:$0xff] %v1095
  %1112 = vst [vmem:[%s3 + $0x60] sm:$0xff] %v1096
  %1113 = vst [vmem:[%s3 + $0x68] sm:$0xff] %v1097
  %1114 = vst [vmem:[%s3 + $0x70] sm:$0xff] %v1098
  %1115 = vst [vmem:[%s3 + $0x78] sm:$0xff] %v1099
  // Predicated region
  $region14: #{decoder_forward.2} parent=0 // pred_check
    _
  $region15: #{decoder_forward.2} parent=0 // pred_check_branch
    %1117 = sbr.rel (0) target = $region17
  $region16: #{decoder_forward.2} parent=0 // pred_region
    _
  $region17: #{decoder_forward.2} parent=0 // pred_fallthru
    _
  // Predicated region
  $region18: #{decoder_forward.2} parent=0 // pred_check
    _
  $region19: #{decoder_forward.2} parent=0 // pred_check_branch
    %1119 = sbr.rel (0) target = $region21
  $region20: #{decoder_forward.2} parent=0 // pred_region
    _
  $region21: #{decoder_forward.2} parent=0 // pred_fallthru
    _

// kernel: decoder_forward.3
$region0: #{decoder_forward.3}
  #allocation0 [shape = 'u32[]', space=smem, size = 0x4, offset = 0x4, fixed_abs, tag = 'smem constant byte address 0x4 - core index']
  #allocation1 [shape = 'u32[72,128]{1,0:T(1,128)}', space=vmem, size = 0x9000, scoped, tag = 'internal scratch']
  %s0 = inlined_call_operand.vmem [shape: bf16[512,256], index: 0, kind: input, shape index: {}]
  %s1 = inlined_call_operand.vmem [shape: bf16[512,256], index: 1, kind: input, shape index: {}]
  %s2 = inlined_call_operand.vmem [shape: f32[512,1], index: 2, kind: input, shape index: {}]
  %s3 = inlined_call_operand.vmem [shape: bf16[256,48], index: 3, kind: input, shape index: {}]
  %s4 = inlined_call_operand.vmem [shape: f32[1,48], index: 4, kind: input, shape index: {}]
  %s5 = inlined_call_operand.vmem [shape: bf16[256,256], index: 5, kind: input, shape index: {}]
  %s6 = inlined_call_operand.vmem [shape: bf16[48,256], index: 6, kind: input, shape index: {}]
  %s7 = inlined_call_operand.vmem [shape: f32[1,256], index: 7, kind: input, shape index: {}]
  %s8 = inlined_call_operand.vmem [shape: bf16[256,256], index: 8, kind: input, shape index: {}]
  %s9 = inlined_call_operand.vmem [shape: f32[1,256], index: 9, kind: input, shape index: {}]
  %s10 = inlined_call_operand.vmem [shape: bf16[256,128], index: 10, kind: input, shape index: {}]
  %s11 = inlined_call_operand.vmem [shape: f32[1,128], index: 11, kind: input, shape index: {}]
  %s12 = inlined_call_operand.hbm [shape: bf16[512,256], index: 12, kind: output, shape index: {0}]
  %s13 = inlined_call_operand.hbm [shape: bf16[512,128], index: 13, kind: output, shape index: {1}]
  %14 = xla_tuple %s12, %s13
  %s15 = sld [smem:[#allocation0]]
  $region89: #{decoder_forward.3} parent=0
    _
  %s17 = ssub.s32 1, %s15
  %s18 = scalar_select 0, %s17, %s15
  $region1: #{decoder_forward.3} parent=0
    #allocation2 [shape = 'u8[262144]{0}', space=vmem, size = 0x40000, scoped, tag = 'output window, operand 0']
    #allocation3 [shape = 's32[2]{0}', space=sflag, size = 0x8, scoped, tag = 'scoped memory for decoder_forward.3']
    #allocation4 [shape = 'u8[131072]{0}', space=vmem, size = 0x20000, scoped, tag = 'output window, operand 1']
    #allocation5 [shape = 's32[2]{0}', space=sflag, size = 0x8, scoped, tag = 'scoped memory for decoder_forward.3']
    %19 = vsyncpa [#allocation3], 0
    %s20 = scalar_lea.sflag [#allocation3], 1
    %21 = vsyncpa %s20, 0
    %22 = vsyncpa [#allocation5], 0
    %s23 = scalar_lea.sflag [#allocation5], 1
    %24 = vsyncpa %s23, 0
    loop: start=0, step=1, limit=4
    $region2: #{decoder_forward.3} parent=1 // loop_pre_header
      _
    $region3: #{decoder_forward.3} parent=1 // loop_header
      %s26 = sphi 0, %s30
      %p27 = scmp.ge.s32.totalorder %s26, 4
      %s36 = sphi 0, %s38
      %s39 = sphi 0, %s36
      %s40 = sphi 0, %s39
      %s56 = sphi 0, %s40
      %s62 = sphi 0, %s64
      %s65 = sphi 0, %s62
      %s66 = sphi 0, %s65
      %s82 = sphi 0, %s66
      %s88 = sphi 0, %s90
      %s91 = sphi 0, %s88
      %s92 = sphi 0, %s91
      %s108 = sphi 0, %s92
      %s112 = sphi 0, %s112
      %s114 = sphi 0, %s112
      %s115 = sphi 0, %s114
      %s129 = sphi 0, %s115
      %s133 = sphi 0, %s133
      %s135 = sphi 0, %s133
      %s136 = sphi 0, %s135
      %s150 = sphi 0, %s136
      %s154 = sphi 0, %s154
      %s156 = sphi 0, %s154
      %s157 = sphi 0, %s156
      %s171 = sphi 0, %s157
      %s175 = sphi 0, %s175
      %s177 = sphi 0, %s175
      %s178 = sphi 0, %s177
      %s192 = sphi 0, %s178
      %s196 = sphi 0, %s196
      %s198 = sphi 0, %s196
      %s199 = sphi 0, %s198
      %s213 = sphi 0, %s199
      %s217 = sphi 0, %s217
      %s219 = sphi 0, %s217
      %s220 = sphi 0, %s219
      %s234 = sphi 0, %s220
      %s238 = sphi 0, %s238
      %s240 = sphi 0, %s238
      %s241 = sphi 0, %s240
      %s255 = sphi 0, %s241
      %s259 = sphi 0, %s259
      %s261 = sphi 0, %s259
      %s262 = sphi 0, %s261
      %s276 = sphi 0, %s262
      %s280 = sphi 0, %s280
      %s282 = sphi 0, %s280
      %s283 = sphi 0, %s282
      %s297 = sphi 0, %s283
      %s303 = sphi 0, %s305
      %s306 = sphi 0, %s303
      %s307 = sphi 0, %s306
      %s323 = sphi 0, %s307
      %s329 = sphi 0, %s331
      %s332 = sphi 0, %s329
      %s333 = sphi 0, %s332
      %s349 = sphi 0, %s333
    $region4: #{decoder_forward.3} parent=1 // loop_header_branch
      %29 = sbr.rel (%p27) target = $region8
    $region5: #{decoder_forward.3} parent=1 // loop_body
      %s31 = ssub.s32 %s26, 1
      %s32 = ssub.s32 %s26, 2
      %s33 = sadd.s32 %s26, 1
      %s34 = ssub.s32 %s26, %s33
      %p35 = scmp.eq.s32.totalorder %s34, 0
      %s37 = sadd.s32 %s36, 1
      %s38 = scalar_select %p35, %s36, %s37
      %p41 = pneg %p35
      %p42 = scmp.eq.s32.totalorder %s26, 1
      %p43 = por %p41, %p42
      %p44 = scmp.ne.s32.totalorder %s36, %s39
      %p45 = scmp.eq.s32.totalorder %s26, 0
      %p46 = por %p44, %p45
      %p47 = scmp.ne.s32.totalorder %s36, %s39
      %p48 = scmp.eq.s32.totalorder %s31, 1
      %p49 = por %p47, %p48
      %p50 = scmp.ne.s32.totalorder %s39, %s40
      %p51 = scmp.eq.s32.totalorder %s31, 0
      %p52 = por %p50, %p51
      %p53 = scmp.ne.s32.totalorder %s39, %s40
      %p54 = scmp.eq.s32.totalorder %s32, 1
      %p55 = por %p53, %p54
      %p57 = scmp.ne.s32.totalorder %s40, %s56
      %p58 = scmp.eq.s32.totalorder %s32, 0
      %p59 = por %p57, %p58
      %s60 = ssub.s32 %s26, %s33
      %p61 = scmp.eq.s32.totalorder %s60, 0
      %s63 = sadd.s32 %s62, 1
      %s64 = scalar_select %p61, %s62, %s63
      %p67 = pneg %p61
      %p68 = scmp.eq.s32.totalorder %s26, 1
      %p69 = por %p67, %p68
      %p70 = scmp.ne.s32.totalorder %s62, %s65
      %p71 = scmp.eq.s32.totalorder %s26, 0
      %p72 = por %p70, %p71
      %p73 = scmp.ne.s32.totalorder %s62, %s65
      %p74 = scmp.eq.s32.totalorder %s31, 1
      %p75 = por %p73, %p74
      %p76 = scmp.ne.s32.totalorder %s65, %s66
      %p77 = scmp.eq.s32.totalorder %s31, 0
      %p78 = por %p76, %p77
      %p79 = scmp.ne.s32.totalorder %s65, %s66
      %p80 = scmp.eq.s32.totalorder %s32, 1
      %p81 = por %p79, %p80
      %p83 = scmp.ne.s32.totalorder %s66, %s82
      %p84 = scmp.eq.s32.totalorder %s32, 0
      %p85 = por %p83, %p84
      %s86 = ssub.s32 %s26, %s33
      %p87 = scmp.eq.s32.totalorder %s86, 0
      %s89 = sadd.s32 %s88, 1
      %s90 = scalar_select %p87, %s88, %s89
      %p93 = pneg %p87
      %p94 = scmp.eq.s32.totalorder %s26, 1
      %p95 = por %p93, %p94
      %p96 = scmp.ne.s32.totalorder %s88, %s91
      %p97 = scmp.eq.s32.totalorder %s26, 0
      %p98 = por %p96, %p97
      %p99 = scmp.ne.s32.totalorder %s88, %s91
      %p100 = scmp.eq.s32.totalorder %s31, 1
      %p101 = por %p99, %p100
      %p102 = scmp.ne.s32.totalorder %s91, %s92
      %p103 = scmp.eq.s32.totalorder %s31, 0
      %p104 = por %p102, %p103
      %p105 = scmp.ne.s32.totalorder %s91, %s92
      %p106 = scmp.eq.s32.totalorder %s32, 1
      %p107 = por %p105, %p106
      %p109 = scmp.ne.s32.totalorder %s92, %s108
      %p110 = scmp.eq.s32.totalorder %s32, 0
      %p111 = por %p109, %p110
      %s113 = sadd.s32 %s112, 1
      %p116 = scmp.eq.s32.totalorder %s26, 1
      %p117 = scmp.ne.s32.totalorder %s112, %s114
      %p118 = scmp.eq.s32.totalorder %s26, 0
      %p119 = por %p117, %p118
      %p120 = scmp.ne.s32.totalorder %s112, %s114
      %p121 = scmp.eq.s32.totalorder %s31, 1
      %p122 = por %p120, %p121
      %p123 = scmp.ne.s32.totalorder %s114, %s115
      %p124 = scmp.eq.s32.totalorder %s31, 0
      %p125 = por %p123, %p124
      %p126 = scmp.ne.s32.totalorder %s114, %s115
      %p127 = scmp.eq.s32.totalorder %s32, 1
      %p128 = por %p126, %p127
      %p130 = scmp.ne.s32.totalorder %s115, %s129
      %p131 = scmp.eq.s32.totalorder %s32, 0
      %p132 = por %p130, %p131
      %s134 = sadd.s32 %s133, 1
      %p137 = scmp.eq.s32.totalorder %s26, 1
      %p138 = scmp.ne.s32.totalorder %s133, %s135
      %p139 = scmp.eq.s32.totalorder %s26, 0
      %p140 = por %p138, %p139
      %p141 = scmp.ne.s32.totalorder %s133, %s135
      %p142 = scmp.eq.s32.totalorder %s31, 1
      %p143 = por %p141, %p142
      %p144 = scmp.ne.s32.totalorder %s135, %s136
      %p145 = scmp.eq.s32.totalorder %s31, 0
      %p146 = por %p144, %p145
      %p147 = scmp.ne.s32.totalorder %s135, %s136
      %p148 = scmp.eq.s32.totalorder %s32, 1
      %p149 = por %p147, %p148
      %p151 = scmp.ne.s32.totalorder %s136, %s150
      %p152 = scmp.eq.s32.totalorder %s32, 0
      %p153 = por %p151, %p152
      %s155 = sadd.s32 %s154, 1
      %p158 = scmp.eq.s32.totalorder %s26, 1
      %p159 = scmp.ne.s32.totalorder %s154, %s156
      %p160 = scmp.eq.s32.totalorder %s26, 0
      %p161 = por %p159, %p160
      %p162 = scmp.ne.s32.totalorder %s154, %s156
      %p163 = scmp.eq.s32.totalorder %s31, 1
      %p164 = por %p162, %p163
      %p165 = scmp.ne.s32.totalorder %s156, %s157
      %p166 = scmp.eq.s32.totalorder %s31, 0
      %p167 = por %p165, %p166
      %p168 = scmp.ne.s32.totalorder %s156, %s157
      %p169 = scmp.eq.s32.totalorder %s32, 1
      %p170 = por %p168, %p169
      %p172 = scmp.ne.s32.totalorder %s157, %s171
      %p173 = scmp.eq.s32.totalorder %s32, 0
      %p174 = por %p172, %p173
      %s176 = sadd.s32 %s175, 1
      %p179 = scmp.eq.s32.totalorder %s26, 1
      %p180 = scmp.ne.s32.totalorder %s175, %s177
      %p181 = scmp.eq.s32.totalorder %s26, 0
      %p182 = por %p180, %p181
      %p183 = scmp.ne.s32.totalorder %s175, %s177
      %p184 = scmp.eq.s32.totalorder %s31, 1
      %p185 = por %p183, %p184
      %p186 = scmp.ne.s32.totalorder %s177, %s178
      %p187 = scmp.eq.s32.totalorder %s31, 0
      %p188 = por %p186, %p187
      %p189 = scmp.ne.s32.totalorder %s177, %s178
      %p190 = scmp.eq.s32.totalorder %s32, 1
      %p191 = por %p189, %p190
      %p193 = scmp.ne.s32.totalorder %s178, %s192
      %p194 = scmp.eq.s32.totalorder %s32, 0
      %p195 = por %p193, %p194
      %s197 = sadd.s32 %s196, 1
      %p200 = scmp.eq.s32.totalorder %s26, 1
      %p201 = scmp.ne.s32.totalorder %s196, %s198
      %p202 = scmp.eq.s32.totalorder %s26, 0
      %p203 = por %p201, %p202
      %p204 = scmp.ne.s32.totalorder %s196, %s198
      %p205 = scmp.eq.s32.totalorder %s31, 1
      %p206 = por %p204, %p205
      %p207 = scmp.ne.s32.totalorder %s198, %s199
      %p208 = scmp.eq.s32.totalorder %s31, 0
      %p209 = por %p207, %p208
      %p210 = scmp.ne.s32.totalorder %s198, %s199
      %p211 = scmp.eq.s32.totalorder %s32, 1
      %p212 = por %p210, %p211
      %p214 = scmp.ne.s32.totalorder %s199, %s213
      %p215 = scmp.eq.s32.totalorder %s32, 0
      %p216 = por %p214, %p215
      %s218 = sadd.s32 %s217, 1
      %p221 = scmp.eq.s32.totalorder %s26, 1
      %p222 = scmp.ne.s32.totalorder %s217, %s219
      %p223 = scmp.eq.s32.totalorder %s26, 0
      %p224 = por %p222, %p223
      %p225 = scmp.ne.s32.totalorder %s217, %s219
      %p226 = scmp.eq.s32.totalorder %s31, 1
      %p227 = por %p225, %p226
      %p228 = scmp.ne.s32.totalorder %s219, %s220
      %p229 = scmp.eq.s32.totalorder %s31, 0
      %p230 = por %p228, %p229
      %p231 = scmp.ne.s32.totalorder %s219, %s220
      %p232 = scmp.eq.s32.totalorder %s32, 1
      %p233 = por %p231, %p232
      %p235 = scmp.ne.s32.totalorder %s220, %s234
      %p236 = scmp.eq.s32.totalorder %s32, 0
      %p237 = por %p235, %p236
      %s239 = sadd.s32 %s238, 1
      %p242 = scmp.eq.s32.totalorder %s26, 1
      %p243 = scmp.ne.s32.totalorder %s238, %s240
      %p244 = scmp.eq.s32.totalorder %s26, 0
      %p245 = por %p243, %p244
      %p246 = scmp.ne.s32.totalorder %s238, %s240
      %p247 = scmp.eq.s32.totalorder %s31, 1
      %p248 = por %p246, %p247
      %p249 = scmp.ne.s32.totalorder %s240, %s241
      %p250 = scmp.eq.s32.totalorder %s31, 0
      %p251 = por %p249, %p250
      %p252 = scmp.ne.s32.totalorder %s240, %s241
      %p253 = scmp.eq.s32.totalorder %s32, 1
      %p254 = por %p252, %p253
      %p256 = scmp.ne.s32.totalorder %s241, %s255
      %p257 = scmp.eq.s32.totalorder %s32, 0
      %p258 = por %p256, %p257
      %s260 = sadd.s32 %s259, 1
      %p263 = scmp.eq.s32.totalorder %s26, 1
      %p264 = scmp.ne.s32.totalorder %s259, %s261
      %p265 = scmp.eq.s32.totalorder %s26, 0
      %p266 = por %p264, %p265
      %p267 = scmp.ne.s32.totalorder %s259, %s261
      %p268 = scmp.eq.s32.totalorder %s31, 1
      %p269 = por %p267, %p268
      %p270 = scmp.ne.s32.totalorder %s261, %s262
      %p271 = scmp.eq.s32.totalorder %s31, 0
      %p272 = por %p270, %p271
      %p273 = scmp.ne.s32.totalorder %s261, %s262
      %p274 = scmp.eq.s32.totalorder %s32, 1
      %p275 = por %p273, %p274
      %p277 = scmp.ne.s32.totalorder %s262, %s276
      %p278 = scmp.eq.s32.totalorder %s32, 0
      %p279 = por %p277, %p278
      %s281 = sadd.s32 %s280, 1
      %p284 = scmp.eq.s32.totalorder %s26, 1
      %p285 = scmp.ne.s32.totalorder %s280, %s282
      %p286 = scmp.eq.s32.totalorder %s26, 0
      %p287 = por %p285, %p286
      %p288 = scmp.ne.s32.totalorder %s280, %s282
      %p289 = scmp.eq.s32.totalorder %s31, 1
      %p290 = por %p288, %p289
      %p291 = scmp.ne.s32.totalorder %s282, %s283
      %p292 = scmp.eq.s32.totalorder %s31, 0
      %p293 = por %p291, %p292
      %p294 = scmp.ne.s32.totalorder %s282, %s283
      %p295 = scmp.eq.s32.totalorder %s32, 1
      %p296 = por %p294, %p295
      %p298 = scmp.ne.s32.totalorder %s283, %s297
      %p299 = scmp.eq.s32.totalorder %s32, 0
      %p300 = por %p298, %p299
      %s301 = ssub.s32 %s26, %s33
      %p302 = scmp.eq.s32.totalorder %s301, 0
      %s304 = sadd.s32 %s303, 1
      %s305 = scalar_select %p302, %s303, %s304
      %p308 = pneg %p302
      %p309 = scmp.eq.s32.totalorder %s26, 1
      %p310 = por %p308, %p309
      %p311 = scmp.ne.s32.totalorder %s303, %s306
      %p312 = scmp.eq.s32.totalorder %s26, 0
      %p313 = por %p311, %p312
      %p314 = scmp.ne.s32.totalorder %s303, %s306
      %p315 = scmp.eq.s32.totalorder %s31, 1
      %p316 = por %p314, %p315
      %p317 = scmp.ne.s32.totalorder %s306, %s307
      %p318 = scmp.eq.s32.totalorder %s31, 0
      %p319 = por %p317, %p318
      %p320 = scmp.ne.s32.totalorder %s306, %s307
      %p321 = scmp.eq.s32.totalorder %s32, 1
      %p322 = por %p320, %p321
      %p324 = scmp.ne.s32.totalorder %s307, %s323
      %p325 = scmp.eq.s32.totalorder %s32, 0
      %p326 = por %p324, %p325
      %s327 = ssub.s32 %s26, %s33
      %p328 = scmp.eq.s32.totalorder %s327, 0
      %s330 = sadd.s32 %s329, 1
      %s331 = scalar_select %p328, %s329, %s330
      %p334 = pneg %p328
      %p335 = scmp.eq.s32.totalorder %s26, 1
      %p336 = por %p334, %p335
      %p337 = scmp.ne.s32.totalorder %s329, %s332
      %p338 = scmp.eq.s32.totalorder %s26, 0
      %p339 = por %p337, %p338
      %p340 = scmp.ne.s32.totalorder %s329, %s332
      %p341 = scmp.eq.s32.totalorder %s31, 1
      %p342 = por %p340, %p341
      %p343 = scmp.ne.s32.totalorder %s332, %s333
      %p344 = scmp.eq.s32.totalorder %s31, 0
      %p345 = por %p343, %p344
      %p346 = scmp.ne.s32.totalorder %s332, %s333
      %p347 = scmp.eq.s32.totalorder %s32, 1
      %p348 = por %p346, %p347
      %p350 = scmp.ne.s32.totalorder %s333, %s349
      %p351 = scmp.eq.s32.totalorder %s32, 0
      %p352 = por %p350, %p351
      %p353 = scmp.le.s32.totalorder 1, %s26
      %p354 = scmp.lt.s32.totalorder %s26, 3
      %p355 = pnand %p353, %p354
      %p356 = pneg %p355
      // Predicated region
      $region9: #{decoder_forward.3} parent=5 // pred_check
        _
      $region10: #{decoder_forward.3} parent=5 // pred_check_branch
        %358 = sbr.rel (%p355) target = $region12
      $region11: #{decoder_forward.3} parent=5 // pred_region
        %s359 = ssub.s32 %s26, 1
        // Predicated region
        $region13: #{decoder_forward.3} parent=11 // pred_check
          %p360 = pneg %p125
        $region14: #{decoder_forward.3} parent=11 // pred_check_branch
          %362 = sbr.rel (%p360) target = $region16
        $region15: #{decoder_forward.3} parent=11 // pred_region
          _
        $region16: #{decoder_forward.3} parent=11 // pred_fallthru
          _
        // Predicated region
        $region17: #{decoder_forward.3} parent=11 // pred_check
          %p363 = pneg %p146
        $region18: #{decoder_forward.3} parent=11 // pred_check_branch
          %365 = sbr.rel (%p363) target = $region20
        $region19: #{decoder_forward.3} parent=11 // pred_region
          _
        $region20: #{decoder_forward.3} parent=11 // pred_fallthru
          _
        // Predicated region
        $region21: #{decoder_forward.3} parent=11 // pred_check
          %p366 = pneg %p167
        $region22: #{decoder_forward.3} parent=11 // pred_check_branch
          %368 = sbr.rel (%p366) target = $region24
        $region23: #{decoder_forward.3} parent=11 // pred_region
          _
        $region24: #{decoder_forward.3} parent=11 // pred_fallthru
          _
        // Predicated region
        $region25: #{decoder_forward.3} parent=11 // pred_check
          %p369 = pneg %p188
        $region26: #{decoder_forward.3} parent=11 // pred_check_branch
          %371 = sbr.rel (%p369) target = $region28
        $region27: #{decoder_forward.3} parent=11 // pred_region
          _
        $region28: #{decoder_forward.3} parent=11 // pred_fallthru
          _
        // Predicated region
        $region29: #{decoder_forward.3} parent=11 // pred_check
          %p372 = pneg %p209
        $region30: #{decoder_forward.3} parent=11 // pred_check_branch
          %374 = sbr.rel (%p372) target = $region32
        $region31: #{decoder_forward.3} parent=11 // pred_region
          _
        $region32: #{decoder_forward.3} parent=11 // pred_fallthru
          _
        // Predicated region
        $region33: #{decoder_forward.3} parent=11 // pred_check
          %p375 = pneg %p230
        $region34: #{decoder_forward.3} parent=11 // pred_check_branch
          %377 = sbr.rel (%p375) target = $region36
        $region35: #{decoder_forward.3} parent=11 // pred_region
          _
        $region36: #{decoder_forward.3} parent=11 // pred_fallthru
          _
        // Predicated region
        $region37: #{decoder_forward.3} parent=11 // pred_check
          %p378 = pneg %p251
        $region38: #{decoder_forward.3} parent=11 // pred_check_branch
          %380 = sbr.rel (%p378) target = $region40
        $region39: #{decoder_forward.3} parent=11 // pred_region
          _
        $region40: #{decoder_forward.3} parent=11 // pred_fallthru
          _
        // Predicated region
        $region41: #{decoder_forward.3} parent=11 // pred_check
          %p381 = pneg %p272
        $region42: #{decoder_forward.3} parent=11 // pred_check_branch
          %383 = sbr.rel (%p381) target = $region44
        $region43: #{decoder_forward.3} parent=11 // pred_region
          _
        $region44: #{decoder_forward.3} parent=11 // pred_fallthru
          _
        // Predicated region
        $region45: #{decoder_forward.3} parent=11 // pred_check
          %p384 = pneg %p293
        $region46: #{decoder_forward.3} parent=11 // pred_check_branch
          %386 = sbr.rel (%p384) target = $region48
        $region47: #{decoder_forward.3} parent=11 // pred_region
          _
        $region48: #{decoder_forward.3} parent=11 // pred_fallthru
          _
      $region12: #{decoder_forward.3} parent=5 // pred_fallthru
        _
      %p387 = scmp.lt.s32.totalorder %s26, 2
      // Predicated region
      $region49: #{decoder_forward.3} parent=5 // pred_check
        %p388 = pneg %p387
      $region50: #{decoder_forward.3} parent=5 // pred_check_branch
        %390 = sbr.rel (%p388) target = $region52
      $region51: #{decoder_forward.3} parent=5 // pred_region
        // Predicated region
        $region53: #{decoder_forward.3} parent=51 // pred_check
          %p391 = pneg %p46
        $region54: #{decoder_forward.3} parent=51 // pred_check_branch
          %393 = sbr.rel (%p391) target = $region56
        $region55: #{decoder_forward.3} parent=51 // pred_region
          %s394 = smul.u32 32, %s26
          %p395 = scmp.lt.s32.totalorder %s394, 63
          %s396 = scalar_select %p395, %s394, 63
          %s397 = smul.addr %s396, 2
          %s398 = smul.addr %s397, 4
          %s399 = scalar_lea.vmem %s0, %s398
          %s400 = smul.u32 32, %s26
        $region56: #{decoder_forward.3} parent=51 // pred_fallthru
          _
        // Predicated region
        $region57: #{decoder_forward.3} parent=51 // pred_check
          %p401 = pneg %p72
        $region58: #{decoder_forward.3} parent=51 // pred_check_branch
          %403 = sbr.rel (%p401) target = $region60
        $region59: #{decoder_forward.3} parent=51 // pred_region
          %s404 = smul.u32 32, %s26
          %p405 = scmp.lt.s32.totalorder %s404, 63
          %s406 = scalar_select %p405, %s404, 63
          %s407 = smul.addr %s406, 2
          %s408 = smul.addr %s407, 4
          %s409 = scalar_lea.vmem %s1, %s408
          %s410 = smul.u32 32, %s26
        $region60: #{decoder_forward.3} parent=51 // pred_fallthru
          _
        // Predicated region
        $region61: #{decoder_forward.3} parent=51 // pred_check
          %p411 = pneg %p98
        $region62: #{decoder_forward.3} parent=51 // pred_check_branch
          %413 = sbr.rel (%p411) target = $region64
        $region63: #{decoder_forward.3} parent=51 // pred_region
          %s414 = smul.u32 32, %s26
          %p415 = scmp.lt.s32.totalorder %s414, 63
          %s416 = scalar_select %p415, %s414, 63
          %s417 = smul.addr %s416, 8
          %s418 = scalar_lea.vmem %s2, %s417
          %s419 = smul.u32 32, %s26
        $region64: #{decoder_forward.3} parent=51 // pred_fallthru
          _
      $region52: #{decoder_forward.3} parent=5 // pred_fallthru
        _
      %p420 = scmp.le.s32.totalorder 1, %s26
      %p421 = scmp.lt.s32.totalorder %s26, 3
      %p422 = pnand %p420, %p421
      %p423 = pneg %p422
      // Predicated region
      $region65: #{decoder_forward.3} parent=5 // pred_check
        _
      $region66: #{decoder_forward.3} parent=5 // pred_check_branch
        %425 = sbr.rel (%p422) target = $region68
      $region67: #{decoder_forward.3} parent=5 // pred_region
        %s426 = ssub.s32 %s26, 1
        %s427 = smul.u32 32, %s31
        %p428 = scmp.lt.s32.totalorder %s427, 63
        %s429 = scalar_select %p428, %s427, 63
        %s430 = smul.addr %s429, 2
        %s431 = smul.addr %s430, 4
        %s432 = scalar_lea.vmem %s0, %s431
        %p433 = pneg %p52
        %p434 = pneg %p49
        %s435 = smul.u32 32, %s31
        %p436 = scmp.lt.s32.totalorder %s435, 63
        %s437 = scalar_select %p436, %s435, 63
        %s438 = smul.addr %s437, 2
        %s439 = smul.addr %s438, 4
        %s440 = scalar_lea.vmem %s1, %s439
        %p441 = pneg %p78
        %p442 = pneg %p75
        %s443 = smul.u32 32, %s31
        %p444 = scmp.lt.s32.totalorder %s443, 63
        %s445 = scalar_select %p444, %s443, 63
        %s446 = smul.addr %s445, 8
        %s447 = scalar_lea.vmem %s2, %s446
        %p448 = pneg %p104
        %p449 = pneg %p101
        %p450 = pneg %p125
        %p451 = pneg %p122
        %p452 = pneg %p146
        %p453 = pneg %p143
        %p454 = pneg %p167
        %p455 = pneg %p164
        %p456 = pneg %p188
        %p457 = pneg %p185
        %p458 = pneg %p209
        %p459 = pneg %p206
        %p460 = pneg %p230
        %p461 = pneg %p227
        %p462 = pneg %p251
        %p463 = pneg %p248
        %p464 = pneg %p272
        %p465 = pneg %p269
        %p466 = pneg %p293
        %p467 = pneg %p290
        %p468 = pneg %p319
        %p469 = pneg %p316
        %s470 = sand.u32 %s306, 1
        %s471 = scalar_lea.sflag [#allocation3], %s470
        %s472 = sand.u32 %s306, 1
        %s473 = smul.addr %s472, 256
        %s474 = scalar_lea.vmem [#allocation2], %s473
        %p475 = pneg %p345
        %p476 = pneg %p342
        %s477 = sand.u32 %s332, 1
        %s478 = scalar_lea.sflag [#allocation5], %s477
        %s479 = sand.u32 %s332, 1
        %s480 = smul.addr %s479, 128
        %s481 = scalar_lea.vmem [#allocation4], %s480
        %s482 = smul.u32 32, %s31
        %p483 = scmp.lt.s32.totalorder %s482, 63
        %s484 = scalar_select %p483, %s482, 63
        %s485 = smul.addr %s484, 2
        %s486 = smul.addr %s485, 4
        %s487 = scalar_lea.vmem %s0, %s486
        %s488 = smul.u32 32, %s31
        %s489 = smul.u32 32, %s31
        %p490 = scmp.lt.s32.totalorder %s489, 63
        %s491 = scalar_select %p490, %s489, 63
        %s492 = smul.addr %s491, 2
        %s493 = smul.addr %s492, 4
        %s494 = scalar_lea.vmem %s1, %s493
        %s495 = smul.u32 32, %s31
        %s496 = smul.u32 32, %s31
        %p497 = scmp.lt.s32.totalorder %s496, 63
        %s498 = scalar_select %p497, %s496, 63
        %s499 = smul.addr %s498, 8
        %s500 = scalar_lea.vmem %s2, %s499
        %s501 = smul.u32 32, %s31
        %s502 = smul.u32 32, %s31
        %s503 = smul.u32 32, %s31
        %v505 = vld [vmem:[%s494] sm:$0xff]
        %v506 = vld [vmem:[%s494 + $0x8] sm:$0xff]
        %v507 = vld [vmem:[%s494 + $0x10] sm:$0xff]
        %v508 = vld [vmem:[%s494 + $0x18] sm:$0xff]
        %v509 = vld [vmem:[%s494 + $0x20] sm:$0xff]
        %v510 = vld [vmem:[%s494 + $0x28] sm:$0xff]
        %v511 = vld [vmem:[%s494 + $0x30] sm:$0xff]
        %v512 = vld [vmem:[%s494 + $0x38] sm:$0xff]
        %v513 = vld [vmem:[%s494 + $0x40] sm:$0xff]
        %v514 = vld [vmem:[%s494 + $0x48] sm:$0xff]
        %v515 = vld [vmem:[%s494 + $0x50] sm:$0xff]
        %v516 = vld [vmem:[%s494 + $0x58] sm:$0xff]
        %v517 = vld [vmem:[%s494 + $0x60] sm:$0xff]
        %v518 = vld [vmem:[%s494 + $0x68] sm:$0xff]
        %v519 = vld [vmem:[%s494 + $0x70] sm:$0xff]
        %v520 = vld [vmem:[%s494 + $0x78] sm:$0xff]
        %v521 = vld [vmem:[%s494 + $0x80] sm:$0xff]
        %v522 = vld [vmem:[%s494 + $0x88] sm:$0xff]
        %v523 = vld [vmem:[%s494 + $0x90] sm:$0xff]
        %v524 = vld [vmem:[%s494 + $0x98] sm:$0xff]
        %v525 = vld [vmem:[%s494 + $0xa0] sm:$0xff]
        %v526 = vld [vmem:[%s494 + $0xa8] sm:$0xff]
        %v527 = vld [vmem:[%s494 + $0xb0] sm:$0xff]
        %v528 = vld [vmem:[%s494 + $0xb8] sm:$0xff]
        %v529 = vld [vmem:[%s494 + $0xc0] sm:$0xff]
        %v530 = vld [vmem:[%s494 + $0xc8] sm:$0xff]
        %v531 = vld [vmem:[%s494 + $0xd0] sm:$0xff]
        %v532 = vld [vmem:[%s494 + $0xd8] sm:$0xff]
        %v533 = vld [vmem:[%s494 + $0xe0] sm:$0xff]
        %v534 = vld [vmem:[%s494 + $0xe8] sm:$0xff]
        %v535 = vld [vmem:[%s494 + $0xf0] sm:$0xff]
        %v536 = vld [vmem:[%s494 + $0xf8] sm:$0xff]
        %v537 = vld [vmem:[%s3] sm:$0xf]
        %v538 = vld [vmem:[%s3 + $0x4] sm:$0xf]
        %v539 = vld [vmem:[%s3 + $0x8] sm:$0xf]
        %v540 = vld [vmem:[%s3 + $0xc] sm:$0xf]
        %v541 = vld [vmem:[%s3 + $0x10] sm:$0xf]
        %v542 = vld [vmem:[%s3 + $0x14] sm:$0xf]
        %v543 = vld [vmem:[%s3 + $0x18] sm:$0xf]
        %v544 = vld [vmem:[%s3 + $0x1c] sm:$0xf]
        %v545 = vld [vmem:[%s3 + $0x20] sm:$0xf]
        %v546 = vld [vmem:[%s3 + $0x24] sm:$0xf]
        %v547 = vld [vmem:[%s3 + $0x28] sm:$0xf]
        %v548 = vld [vmem:[%s3 + $0x2c] sm:$0xf]
        %v549 = vld [vmem:[%s3 + $0x30] sm:$0xf]
        %v550 = vld [vmem:[%s3 + $0x34] sm:$0xf]
        %v551 = vld [vmem:[%s3 + $0x38] sm:$0xf]
        %v552 = vld [vmem:[%s3 + $0x3c] sm:$0xf]
        %v553 = vld [vmem:[%s3 + $0x40] sm:$0xf]
        %v554 = vld [vmem:[%s3 + $0x44] sm:$0xf]
        %v555 = vld [vmem:[%s3 + $0x48] sm:$0xf]
        %v556 = vld [vmem:[%s3 + $0x4c] sm:$0xf]
        %v557 = vld [vmem:[%s3 + $0x50] sm:$0xf]
        %v558 = vld [vmem:[%s3 + $0x54] sm:$0xf]
        %v559 = vld [vmem:[%s3 + $0x58] sm:$0xf]
        %v560 = vld [vmem:[%s3 + $0x5c] sm:$0xf]
        %v561 = vld [vmem:[%s3 + $0x60] sm:$0xf]
        %v562 = vld [vmem:[%s3 + $0x64] sm:$0xf]
        %v563 = vld [vmem:[%s3 + $0x68] sm:$0xf]
        %v564 = vld [vmem:[%s3 + $0x6c] sm:$0xf]
        %v565 = vld [vmem:[%s3 + $0x70] sm:$0xf]
        %v566 = vld [vmem:[%s3 + $0x74] sm:$0xf]
        %v567 = vld [vmem:[%s3 + $0x78] sm:$0xf]
        %v568 = vld [vmem:[%s3 + $0x7c] sm:$0xf]
        %v569 = vld [vmem:[%s4] sm:$0x1]
        %v571 = vperm.slane %v569, 0
        %v605 = vunpack.c.l.b16 %v505
        %v606 = vunpack.c.h.b16 %v505
        %v607 = vunpack.c.l.b16 %v506
        %v608 = vunpack.c.h.b16 %v506
        %v609 = vunpack.c.l.b16 %v507
        %v610 = vunpack.c.h.b16 %v507
        %v611 = vunpack.c.l.b16 %v508
        %v612 = vunpack.c.h.b16 %v508
        %v613 = vunpack.c.l.b16 %v509
        %v614 = vunpack.c.h.b16 %v509
        %v615 = vunpack.c.l.b16 %v510
        %v616 = vunpack.c.h.b16 %v510
        %v617 = vunpack.c.l.b16 %v511
        %v618 = vunpack.c.h.b16 %v511
        %v619 = vunpack.c.l.b16 %v512
        %v620 = vunpack.c.h.b16 %v512
        %v621 = vunpack.c.l.b16 %v513
        %v622 = vunpack.c.h.b16 %v513
        %v623 = vunpack.c.l.b16 %v514
        %v624 = vunpack.c.h.b16 %v514
        %v625 = vunpack.c.l.b16 %v515
        %v626 = vunpack.c.h.b16 %v515
        %v627 = vunpack.c.l.b16 %v516
        %v628 = vunpack.c.h.b16 %v516
        %v629 = vunpack.c.l.b16 %v517
        %v630 = vunpack.c.h.b16 %v517
        %v631 = vunpack.c.l.b16 %v518
        %v632 = vunpack.c.h.b16 %v518
        %v633 = vunpack.c.l.b16 %v519
        %v634 = vunpack.c.h.b16 %v519
        %v635 = vunpack.c.l.b16 %v520
        %v636 = vunpack.c.h.b16 %v520
        %v637 = vunpack.c.l.b16 %v521
        %v638 = vunpack.c.h.b16 %v521
        %v639 = vunpack.c.l.b16 %v522
        %v640 = vunpack.c.h.b16 %v522
        %v641 = vunpack.c.l.b16 %v523
        %v642 = vunpack.c.h.b16 %v523
        %v643 = vunpack.c.l.b16 %v524
        %v644 = vunpack.c.h.b16 %v524
        %v645 = vunpack.c.l.b16 %v525
        %v646 = vunpack.c.h.b16 %v525
        %v647 = vunpack.c.l.b16 %v526
        %v648 = vunpack.c.h.b16 %v526
        %v649 = vunpack.c.l.b16 %v527
        %v650 = vunpack.c.h.b16 %v527
        %v651 = vunpack.c.l.b16 %v528
        %v652 = vunpack.c.h.b16 %v528
        %v653 = vunpack.c.l.b16 %v529
        %v654 = vunpack.c.h.b16 %v529
        %v655 = vunpack.c.l.b16 %v530
        %v656 = vunpack.c.h.b16 %v530
        %v657 = vunpack.c.l.b16 %v531
        %v658 = vunpack.c.h.b16 %v531
        %v659 = vunpack.c.l.b16 %v532
        %v660 = vunpack.c.h.b16 %v532
        %v661 = vunpack.c.l.b16 %v533
        %v662 = vunpack.c.h.b16 %v533
        %v663 = vunpack.c.l.b16 %v534
        %v664 = vunpack.c.h.b16 %v534
        %v665 = vunpack.c.l.b16 %v535
        %v666 = vunpack.c.h.b16 %v535
        %v667 = vunpack.c.l.b16 %v536
        %v668 = vunpack.c.h.b16 %v536
        %v669 = vpack.c.b16 %v607, %v605
        %v670 = vpack.c.b16 %v608, %v606
        %v671 = vpack.c.b16 %v611, %v609
        %v672 = vpack.c.b16 %v612, %v610
        %v673 = vpack.c.b16 %v615, %v613
        %v674 = vpack.c.b16 %v616, %v614
        %v675 = vpack.c.b16 %v619, %v617
        %v676 = vpack.c.b16 %v620, %v618
        %v677 = vpack.c.b16 %v623, %v621
        %v678 = vpack.c.b16 %v624, %v622
        %v679 = vpack.c.b16 %v627, %v625
        %v680 = vpack.c.b16 %v628, %v626
        %v681 = vpack.c.b16 %v631, %v629
        %v682 = vpack.c.b16 %v632, %v630
        %v683 = vpack.c.b16 %v635, %v633
        %v684 = vpack.c.b16 %v636, %v634
        %v685 = vpack.c.b16 %v639, %v637
        %v686 = vpack.c.b16 %v640, %v638
        %v687 = vpack.c.b16 %v643, %v641
        %v688 = vpack.c.b16 %v644, %v642
        %v689 = vpack.c.b16 %v647, %v645
        %v690 = vpack.c.b16 %v648, %v646
        %v691 = vpack.c.b16 %v651, %v649
        %v692 = vpack.c.b16 %v652, %v650
        %v693 = vpack.c.b16 %v655, %v653
        %v694 = vpack.c.b16 %v656, %v654
        %v695 = vpack.c.b16 %v659, %v657
        %v696 = vpack.c.b16 %v660, %v658
        %v697 = vpack.c.b16 %v663, %v661
        %v698 = vpack.c.b16 %v664, %v662
        %v699 = vpack.c.b16 %v667, %v665
        %v700 = vpack.c.b16 %v668, %v666
        %v765 = vunpack.c.l.b16 %v537
        %v766 = vunpack.c.l.b16 %v538
        %v767 = vunpack.c.l.b16 %v539
        %v768 = vunpack.c.l.b16 %v540
        %v769 = vunpack.c.l.b16 %v541
        %v770 = vunpack.c.l.b16 %v542
        %v771 = vunpack.c.l.b16 %v543
        %v772 = vunpack.c.l.b16 %v544
        %v773 = vunpack.c.l.b16 %v545
        %v774 = vunpack.c.l.b16 %v546
        %v775 = vunpack.c.l.b16 %v547
        %v776 = vunpack.c.l.b16 %v548
        %v777 = vunpack.c.l.b16 %v549
        %v778 = vunpack.c.l.b16 %v550
        %v779 = vunpack.c.l.b16 %v551
        %v780 = vunpack.c.l.b16 %v552
        %v781 = vunpack.c.l.b16 %v553
        %v782 = vunpack.c.l.b16 %v554
        %v783 = vunpack.c.l.b16 %v555
        %v784 = vunpack.c.l.b16 %v556
        %v785 = vunpack.c.l.b16 %v557
        %v786 = vunpack.c.l.b16 %v558
        %v787 = vunpack.c.l.b16 %v559
        %v788 = vunpack.c.l.b16 %v560
        %v789 = vunpack.c.l.b16 %v561
        %v790 = vunpack.c.l.b16 %v562
        %v791 = vunpack.c.l.b16 %v563
        %v792 = vunpack.c.l.b16 %v564
        %v793 = vunpack.c.l.b16 %v565
        %v794 = vunpack.c.l.b16 %v566
        %v795 = vunpack.c.l.b16 %v567
        %v796 = vunpack.c.l.b16 %v568
        %v797 = vpack.c.b16 %v766, %v765
        %v798 = vpack.c.b16 %v768, %v767
        %v799 = vpack.c.b16 %v770, %v769
        %v800 = vpack.c.b16 %v772, %v771
        %v801 = vpack.c.b16 %v774, %v773
        %v802 = vpack.c.b16 %v776, %v775
        %v803 = vpack.c.b16 %v778, %v777
        %v804 = vpack.c.b16 %v780, %v779
        %v805 = vpack.c.b16 %v782, %v781
        %v806 = vpack.c.b16 %v784, %v783
        %v807 = vpack.c.b16 %v786, %v785
        %v808 = vpack.c.b16 %v788, %v787
        %v809 = vpack.c.b16 %v790, %v789
        %v810 = vpack.c.b16 %v792, %v791
        %v811 = vpack.c.b16 %v794, %v793
        %v812 = vpack.c.b16 %v796, %v795
        %829 = vmatpush.bf16.msra.mxu0 %v804
        %830 = vmatpush.bf16.msra.mxu0 %v803
        %831 = vmatpush.bf16.msra.mxu0 %v802
        %832 = vmatpush.bf16.msra.mxu0 %v801
        %833 = vmatpush.bf16.msra.mxu0 %v800
        %834 = vmatpush.bf16.msra.mxu0 %v799
        %835 = vmatpush.bf16.msra.mxu0 %v798
        %836 = vmatpush.bf16.msra.mxu0 %v797
        %837 = vmatmul.bf16.gmra.mxu0 %v669
        %v838 = vpop.f32.mrf.mxu0
        %v839 = vadd.f32 %v571, %v838
        %v840 = vpop.f32.mrf.mxu0
        %v841 = vadd.f32 %v571, %v840
        %842 = vmatmul.bf16.gmra.mxu0 %v671
        %v843 = vpop.f32.mrf.mxu0
        %v844 = vadd.f32 %v571, %v843
        %v845 = vpop.f32.mrf.mxu0
        %v846 = vadd.f32 %v571, %v845
        %847 = vmatmul.bf16.gmra.mxu0 %v673
        %v848 = vpop.f32.mrf.mxu0
        %v849 = vadd.f32 %v571, %v848
        %v850 = vpop.f32.mrf.mxu0
        %v851 = vadd.f32 %v571, %v850
        %852 = vmatmul.bf16.gmra.mxu0 %v675
        %v853 = vpop.f32.mrf.mxu0
        %v854 = vadd.f32 %v571, %v853
        %v855 = vpop.f32.mrf.mxu0
        %v856 = vadd.f32 %v571, %v855
        %857 = vmatmul.bf16.gmra.mxu0 %v677
        %v858 = vpop.f32.mrf.mxu0
        %v859 = vadd.f32 %v571, %v858
        %v860 = vpop.f32.mrf.mxu0
        %v861 = vadd.f32 %v571, %v860
        %862 = vmatmul.bf16.gmra.mxu0 %v679
        %v863 = vpop.f32.mrf.mxu0
        %v864 = vadd.f32 %v571, %v863
        %v865 = vpop.f32.mrf.mxu0
        %v866 = vadd.f32 %v571, %v865
        %867 = vmatmul.bf16.gmra.mxu0 %v681
        %v868 = vpop.f32.mrf.mxu0
        %v869 = vadd.f32 %v571, %v868
        %v870 = vpop.f32.mrf.mxu0
        %v871 = vadd.f32 %v571, %v870
        %872 = vmatmul.bf16.gmra.mxu0 %v683
        %v873 = vpop.f32.mrf.mxu0
        %v874 = vadd.f32 %v571, %v873
        %v875 = vpop.f32.mrf.mxu0
        %v876 = vadd.f32 %v571, %v875
        %877 = vmatmul.bf16.gmra.mxu0 %v685
        %v878 = vpop.f32.mrf.mxu0
        %v879 = vadd.f32 %v571, %v878
        %v880 = vpop.f32.mrf.mxu0
        %v881 = vadd.f32 %v571, %v880
        %882 = vmatmul.bf16.gmra.mxu0 %v687
        %v883 = vpop.f32.mrf.mxu0
        %v884 = vadd.f32 %v571, %v883
        %v885 = vpop.f32.mrf.mxu0
        %v886 = vadd.f32 %v571, %v885
        %887 = vmatmul.bf16.gmra.mxu0 %v689
        %v888 = vpop.f32.mrf.mxu0
        %v889 = vadd.f32 %v571, %v888
        %v890 = vpop.f32.mrf.mxu0
        %v891 = vadd.f32 %v571, %v890
        %892 = vmatmul.bf16.gmra.mxu0 %v691
        %v893 = vpop.f32.mrf.mxu0
        %v894 = vadd.f32 %v571, %v893
        %v895 = vpop.f32.mrf.mxu0
        %v896 = vadd.f32 %v571, %v895
        %897 = vmatmul.bf16.gmra.mxu0 %v693
        %v898 = vpop.f32.mrf.mxu0
        %v899 = vadd.f32 %v571, %v898
        %v900 = vpop.f32.mrf.mxu0
        %v901 = vadd.f32 %v571, %v900
        %902 = vmatmul.bf16.gmra.mxu0 %v695
        %v903 = vpop.f32.mrf.mxu0
        %v904 = vadd.f32 %v571, %v903
        %v905 = vpop.f32.mrf.mxu0
        %v906 = vadd.f32 %v571, %v905
        %907 = vmatmul.bf16.gmra.mxu0 %v697
        %v908 = vpop.f32.mrf.mxu0
        %v909 = vadd.f32 %v571, %v908
        %v910 = vpop.f32.mrf.mxu0
        %v911 = vadd.f32 %v571, %v910
        %912 = vmatmul.bf16.gmra.mxu0 %v699
        %v913 = vpop.f32.mrf.mxu0
        %v914 = vadd.f32 %v571, %v913
        %v915 = vpop.f32.mrf.mxu0
        %v916 = vadd.f32 %v571, %v915
        %917 = vdwg.mxu0
        %918 = vmatpush.bf16.msra.mxu0 %v812
        %919 = vmatpush.bf16.msra.mxu0 %v811
        %920 = vmatpush.bf16.msra.mxu0 %v810
        %921 = vmatpush.bf16.msra.mxu0 %v809
        %922 = vmatpush.bf16.msra.mxu0 %v808
        %923 = vmatpush.bf16.msra.mxu0 %v807
        %924 = vmatpush.bf16.msra.mxu0 %v806
        %925 = vmatpush.bf16.msra.mxu0 %v805
        %926 = vmatmul.bf16.gmra.mxu0 %v670
        %v927 = vpop.f32.mrf.mxu0
        %v928 = vadd.f32 %v839, %v927
        %v929 = vpop.f32.mrf.mxu0
        %v930 = vadd.f32 %v841, %v929
        %931 = vmatmul.bf16.gmra.mxu0 %v672
        %v932 = vpop.f32.mrf.mxu0
        %v933 = vadd.f32 %v844, %v932
        %v934 = vpop.f32.mrf.mxu0
        %v935 = vadd.f32 %v846, %v934
        %936 = vmatmul.bf16.gmra.mxu0 %v674
        %v937 = vpop.f32.mrf.mxu0
        %v938 = vadd.f32 %v849, %v937
        %v939 = vpop.f32.mrf.mxu0
        %v940 = vadd.f32 %v851, %v939
        %941 = vmatmul.bf16.gmra.mxu0 %v676
        %v942 = vpop.f32.mrf.mxu0
        %v943 = vadd.f32 %v854, %v942
        %v944 = vpop.f32.mrf.mxu0
        %v945 = vadd.f32 %v856, %v944
        %946 = vmatmul.bf16.gmra.mxu0 %v678
        %v947 = vpop.f32.mrf.mxu0
        %v948 = vadd.f32 %v859, %v947
        %v949 = vpop.f32.mrf.mxu0
        %v950 = vadd.f32 %v861, %v949
        %951 = vmatmul.bf16.gmra.mxu0 %v680
        %v952 = vpop.f32.mrf.mxu0
        %v953 = vadd.f32 %v864, %v952
        %v954 = vpop.f32.mrf.mxu0
        %v955 = vadd.f32 %v866, %v954
        %956 = vmatmul.bf16.gmra.mxu0 %v682
        %v957 = vpop.f32.mrf.mxu0
        %v958 = vadd.f32 %v869, %v957
        %v959 = vpop.f32.mrf.mxu0
        %v960 = vadd.f32 %v871, %v959
        %961 = vmatmul.bf16.gmra.mxu0 %v684
        %v962 = vpop.f32.mrf.mxu0
        %v963 = vadd.f32 %v874, %v962
        %v964 = vpop.f32.mrf.mxu0
        %v965 = vadd.f32 %v876, %v964
        %966 = vmatmul.bf16.gmra.mxu0 %v686
        %v967 = vpop.f32.mrf.mxu0
        %v968 = vadd.f32 %v879, %v967
        %v969 = vpop.f32.mrf.mxu0
        %v970 = vadd.f32 %v881, %v969
        %971 = vmatmul.bf16.gmra.mxu0 %v688
        %v972 = vpop.f32.mrf.mxu0
        %v973 = vadd.f32 %v884, %v972
        %v974 = vpop.f32.mrf.mxu0
        %v975 = vadd.f32 %v886, %v974
        %976 = vmatmul.bf16.gmra.mxu0 %v690
        %v977 = vpop.f32.mrf.mxu0
        %v978 = vadd.f32 %v889, %v977
        %v979 = vpop.f32.mrf.mxu0
        %v980 = vadd.f32 %v891, %v979
        %981 = vmatmul.bf16.gmra.mxu0 %v692
        %v982 = vpop.f32.mrf.mxu0
        %v983 = vadd.f32 %v894, %v982
        %v984 = vpop.f32.mrf.mxu0
        %v985 = vadd.f32 %v896, %v984
        %986 = vmatmul.bf16.gmra.mxu0 %v694
        %v987 = vpop.f32.mrf.mxu0
        %v988 = vadd.f32 %v899, %v987
        %v989 = vpop.f32.mrf.mxu0
        %v990 = vadd.f32 %v901, %v989
        %991 = vmatmul.bf16.gmra.mxu0 %v696
        %v992 = vpop.f32.mrf.mxu0
        %v993 = vadd.f32 %v904, %v992
        %v994 = vpop.f32.mrf.mxu0
        %v995 = vadd.f32 %v906, %v994
        %996 = vmatmul.bf16.gmra.mxu0 %v698
        %v997 = vpop.f32.mrf.mxu0
        %v998 = vadd.f32 %v909, %v997
        %v999 = vpop.f32.mrf.mxu0
        %v1000 = vadd.f32 %v911, %v999
        %1001 = vmatmul.bf16.gmra.mxu0 %v700
        %v1002 = vpop.f32.mrf.mxu0
        %v1003 = vadd.f32 %v914, %v1002
        %v1004 = vpop.f32.mrf.mxu0
        %v1005 = vadd.f32 %v916, %v1004
        %1006 = vdwg.mxu0
        %vm1007 = vcmp.ge.f32.partialorder %v928, 0.0
        %vm1008 = vcmp.ge.f32.partialorder %v930, 0.0
        %vm1009 = vcmp.ge.f32.partialorder %v933, 0.0
        %vm1010 = vcmp.ge.f32.partialorder %v935, 0.0
        %vm1011 = vcmp.ge.f32.partialorder %v938, 0.0
        %vm1012 = vcmp.ge.f32.partialorder %v940, 0.0
        %vm1013 = vcmp.ge.f32.partialorder %v943, 0.0
        %vm1014 = vcmp.ge.f32.partialorder %v945, 0.0
        %vm1015 = vcmp.ge.f32.partialorder %v948, 0.0
        %vm1016 = vcmp.ge.f32.partialorder %v950, 0.0
        %vm1017 = vcmp.ge.f32.partialorder %v953, 0.0
        %vm1018 = vcmp.ge.f32.partialorder %v955, 0.0
        %vm1019 = vcmp.ge.f32.partialorder %v958, 0.0
        %vm1020 = vcmp.ge.f32.partialorder %v960, 0.0
        %vm1021 = vcmp.ge.f32.partialorder %v963, 0.0
        %vm1022 = vcmp.ge.f32.partialorder %v965, 0.0
        %vm1023 = vcmp.ge.f32.partialorder %v968, 0.0
        %vm1024 = vcmp.ge.f32.partialorder %v970, 0.0
        %vm1025 = vcmp.ge.f32.partialorder %v973, 0.0
        %vm1026 = vcmp.ge.f32.partialorder %v975, 0.0
        %vm1027 = vcmp.ge.f32.partialorder %v978, 0.0
        %vm1028 = vcmp.ge.f32.partialorder %v980, 0.0
        %vm1029 = vcmp.ge.f32.partialorder %v983, 0.0
        %vm1030 = vcmp.ge.f32.partialorder %v985, 0.0
        %vm1031 = vcmp.ge.f32.partialorder %v988, 0.0
        %vm1032 = vcmp.ge.f32.partialorder %v990, 0.0
        %vm1033 = vcmp.ge.f32.partialorder %v993, 0.0
        %vm1034 = vcmp.ge.f32.partialorder %v995, 0.0
        %vm1035 = vcmp.ge.f32.partialorder %v998, 0.0
        %vm1036 = vcmp.ge.f32.partialorder %v1000, 0.0
        %vm1037 = vcmp.ge.f32.partialorder %v1003, 0.0
        %vm1038 = vcmp.ge.f32.partialorder %v1005, 0.0
        %v1039 = vmul.f32 %v928, 0.01
        %v1040 = vmul.f32 %v930, 0.01
        %v1041 = vmul.f32 %v933, 0.01
        %v1042 = vmul.f32 %v935, 0.01
        %v1043 = vmul.f32 %v938, 0.01
        %v1044 = vmul.f32 %v940, 0.01
        %v1045 = vmul.f32 %v943, 0.01
        %v1046 = vmul.f32 %v945, 0.01
        %v1047 = vmul.f32 %v948, 0.01
        %v1048 = vmul.f32 %v950, 0.01
        %v1049 = vmul.f32 %v953, 0.01
        %v1050 = vmul.f32 %v955, 0.01
        %v1051 = vmul.f32 %v958, 0.01
        %v1052 = vmul.f32 %v960, 0.01
        %v1053 = vmul.f32 %v963, 0.01
        %v1054 = vmul.f32 %v965, 0.01
        %v1055 = vmul.f32 %v968, 0.01
        %v1056 = vmul.f32 %v970, 0.01
        %v1057 = vmul.f32 %v973, 0.01
        %v1058 = vmul.f32 %v975, 0.01
        %v1059 = vmul.f32 %v978, 0.01
        %v1060 = vmul.f32 %v980, 0.01
        %v1061 = vmul.f32 %v983, 0.01
        %v1062 = vmul.f32 %v985, 0.01
        %v1063 = vmul.f32 %v988, 0.01
        %v1064 = vmul.f32 %v990, 0.01
        %v1065 = vmul.f32 %v993, 0.01
        %v1066 = vmul.f32 %v995, 0.01
        %v1067 = vmul.f32 %v998, 0.01
        %v1068 = vmul.f32 %v1000, 0.01
        %v1069 = vmul.f32 %v1003, 0.01
        %v1070 = vmul.f32 %v1005, 0.01
        %v1071 = vsel %vm1007, %v928, %v1039
        %v1072 = vsel %vm1008, %v930, %v1040
        %v1073 = vsel %vm1009, %v933, %v1041
        %v1074 = vsel %vm1010, %v935, %v1042
        %v1075 = vsel %vm1011, %v938, %v1043
        %v1076 = vsel %vm1012, %v940, %v1044
        %v1077 = vsel %vm1013, %v943, %v1045
        %v1078 = vsel %vm1014, %v945, %v1046
        %v1079 = vsel %vm1015, %v948, %v1047
        %v1080 = vsel %vm1016, %v950, %v1048
        %v1081 = vsel %vm1017, %v953, %v1049
        %v1082 = vsel %vm1018, %v955, %v1050
        %v1083 = vsel %vm1019, %v958, %v1051
        %v1084 = vsel %vm1020, %v960, %v1052
        %v1085 = vsel %vm1021, %v963, %v1053
        %v1086 = vsel %vm1022, %v965, %v1054
        %v1087 = vsel %vm1023, %v968, %v1055
        %v1088 = vsel %vm1024, %v970, %v1056
        %v1089 = vsel %vm1025, %v973, %v1057
        %v1090 = vsel %vm1026, %v975, %v1058
        %v1091 = vsel %vm1027, %v978, %v1059
        %v1092 = vsel %vm1028, %v980, %v1060
        %v1093 = vsel %vm1029, %v983, %v1061
        %v1094 = vsel %vm1030, %v985, %v1062
        %v1095 = vsel %vm1031, %v988, %v1063
        %v1096 = vsel %vm1032, %v990, %v1064
        %v1097 = vsel %vm1033, %v993, %v1065
        %v1098 = vsel %vm1034, %v995, %v1066
        %v1099 = vsel %vm1035, %v998, %v1067
        %v1100 = vsel %vm1036, %v1000, %v1068
        %v1101 = vsel %vm1037, %v1003, %v1069
        %v1102 = vsel %vm1038, %v1005, %v1070
        %v1103 = vld [vmem:[%s487] sm:$0xff]
        %v1104 = vld [vmem:[%s487 + $0x8] sm:$0xff]
        %v1105 = vld [vmem:[%s487 + $0x10] sm:$0xff]
        %v1106 = vld [vmem:[%s487 + $0x18] sm:$0xff]
        %v1107 = vld [vmem:[%s487 + $0x20] sm:$0xff]
        %v1108 = vld [vmem:[%s487 + $0x28] sm:$0xff]
        %v1109 = vld [vmem:[%s487 + $0x30] sm:$0xff]
        %v1110 = vld [vmem:[%s487 + $0x38] sm:$0xff]
        %v1111 = vld [vmem:[%s487 + $0x40] sm:$0xff]
        %v1112 = vld [vmem:[%s487 + $0x48] sm:$0xff]
        %v1113 = vld [vmem:[%s487 + $0x50] sm:$0xff]
        %v1114 = vld [vmem:[%s487 + $0x58] sm:$0xff]
        %v1115 = vld [vmem:[%s487 + $0x60] sm:$0xff]
        %v1116 = vld [vmem:[%s487 + $0x68] sm:$0xff]
        %v1117 = vld [vmem:[%s487 + $0x70] sm:$0xff]
        %v1118 = vld [vmem:[%s487 + $0x78] sm:$0xff]
        %v1119 = vld [vmem:[%s487 + $0x80] sm:$0xff]
        %v1120 = vld [vmem:[%s487 + $0x88] sm:$0xff]
        %v1121 = vld [vmem:[%s487 + $0x90] sm:$0xff]
        %v1122 = vld [vmem:[%s487 + $0x98] sm:$0xff]
        %v1123 = vld [vmem:[%s487 + $0xa0] sm:$0xff]
        %v1124 = vld [vmem:[%s487 + $0xa8] sm:$0xff]
        %v1125 = vld [vmem:[%s487 + $0xb0] sm:$0xff]
        %v1126 = vld [vmem:[%s487 + $0xb8] sm:$0xff]
        %v1127 = vld [vmem:[%s487 + $0xc0] sm:$0xff]
        %v1128 = vld [vmem:[%s487 + $0xc8] sm:$0xff]
        %v1129 = vld [vmem:[%s487 + $0xd0] sm:$0xff]
        %v1130 = vld [vmem:[%s487 + $0xd8] sm:$0xff]
        %v1131 = vld [vmem:[%s487 + $0xe0] sm:$0xff]
        %v1132 = vld [vmem:[%s487 + $0xe8] sm:$0xff]
        %v1133 = vld [vmem:[%s487 + $0xf0] sm:$0xff]
        %v1134 = vld [vmem:[%s487 + $0xf8] sm:$0xff]
        %v1135 = vld [vmem:[%s5] sm:$0xff]
        %v1136 = vld [vmem:[%s5 + $0x8] sm:$0xff]
        %v1137 = vld [vmem:[%s5 + $0x10] sm:$0xff]
        %v1138 = vld [vmem:[%s5 + $0x18] sm:$0xff]
        %v1139 = vld [vmem:[%s5 + $0x20] sm:$0xff]
        %v1140 = vld [vmem:[%s5 + $0x28] sm:$0xff]
        %v1141 = vld [vmem:[%s5 + $0x30] sm:$0xff]
        %v1142 = vld [vmem:[%s5 + $0x38] sm:$0xff]
        %v1143 = vld [vmem:[%s5 + $0x40] sm:$0xff]
        %v1144 = vld [vmem:[%s5 + $0x48] sm:$0xff]
        %v1145 = vld [vmem:[%s5 + $0x50] sm:$0xff]
        %v1146 = vld [vmem:[%s5 + $0x58] sm:$0xff]
        %v1147 = vld [vmem:[%s5 + $0x60] sm:$0xff]
        %v1148 = vld [vmem:[%s5 + $0x68] sm:$0xff]
        %v1149 = vld [vmem:[%s5 + $0x70] sm:$0xff]
        %v1150 = vld [vmem:[%s5 + $0x78] sm:$0xff]
        %v1151 = vld [vmem:[%s5 + $0x80] sm:$0xff]
        %v1152 = vld [vmem:[%s5 + $0x88] sm:$0xff]
        %v1153 = vld [vmem:[%s5 + $0x90] sm:$0xff]
        %v1154 = vld [vmem:[%s5 + $0x98] sm:$0xff]
        %v1155 = vld [vmem:[%s5 + $0xa0] sm:$0xff]
        %v1156 = vld [vmem:[%s5 + $0xa8] sm:$0xff]
        %v1157 = vld [vmem:[%s5 + $0xb0] sm:$0xff]
        %v1158 = vld [vmem:[%s5 + $0xb8] sm:$0xff]
        %v1159 = vld [vmem:[%s5 + $0xc0] sm:$0xff]
        %v1160 = vld [vmem:[%s5 + $0xc8] sm:$0xff]
        %v1161 = vld [vmem:[%s5 + $0xd0] sm:$0xff]
        %v1162 = vld [vmem:[%s5 + $0xd8] sm:$0xff]
        %v1163 = vld [vmem:[%s5 + $0xe0] sm:$0xff]
        %v1164 = vld [vmem:[%s5 + $0xe8] sm:$0xff]
        %v1165 = vld [vmem:[%s5 + $0xf0] sm:$0xff]
        %v1166 = vld [vmem:[%s5 + $0xf8] sm:$0xff]
        %v1167 = vpack.c.bf16 %v1072, %v1071
        %v1168 = vpack.c.bf16 %v1074, %v1073
        %v1169 = vpack.c.bf16 %v1076, %v1075
        %v1170 = vpack.c.bf16 %v1078, %v1077
        %v1171 = vpack.c.bf16 %v1080, %v1079
        %v1172 = vpack.c.bf16 %v1082, %v1081
        %v1173 = vpack.c.bf16 %v1084, %v1083
        %v1174 = vpack.c.bf16 %v1086, %v1085
        %v1175 = vpack.c.bf16 %v1088, %v1087
        %v1176 = vpack.c.bf16 %v1090, %v1089
        %v1177 = vpack.c.bf16 %v1092, %v1091
        %v1178 = vpack.c.bf16 %v1094, %v1093
        %v1179 = vpack.c.bf16 %v1096, %v1095
        %v1180 = vpack.c.bf16 %v1098, %v1097
        %v1181 = vpack.c.bf16 %v1100, %v1099
        %v1182 = vpack.c.bf16 %v1102, %v1101
        %v1183 = vld [vmem:[%s6] sm:$0xff]
        %v1184 = vld [vmem:[%s6 + $0x8] sm:$0xff]
        %v1185 = vld [vmem:[%s6 + $0x10] sm:$0xff]
        %v1186 = vld [vmem:[%s6 + $0x18] sm:$0xff]
        %v1187 = vld [vmem:[%s6 + $0x20] sm:$0xff]
        %v1188 = vld [vmem:[%s6 + $0x28] sm:$0xff]
        %v1195 = vunpack.c.l.b16 %v1183
        %v1196 = vunpack.c.h.b16 %v1183
        %v1197 = vunpack.c.l.b16 %v1184
        %v1198 = vunpack.c.h.b16 %v1184
        %v1199 = vunpack.c.l.b16 %v1185
        %v1200 = vunpack.c.h.b16 %v1185
        %v1201 = vunpack.c.l.b16 %v1186
        %v1202 = vunpack.c.h.b16 %v1186
        %v1203 = vunpack.c.l.b16 %v1187
        %v1204 = vunpack.c.h.b16 %v1187
        %v1205 = vunpack.c.l.b16 %v1188
        %v1206 = vunpack.c.h.b16 %v1188
        %v1207 = vpack.c.b16 %v1197, %v1195
        %v1208 = vpack.c.b16 %v1198, %v1196
        %v1209 = vpack.c.b16 %v1201, %v1199
        %v1210 = vpack.c.b16 %v1202, %v1200
        %v1211 = vpack.c.b16 %v1205, %v1203
        %v1212 = vpack.c.b16 %v1206, %v1204
        %vm1219 = vcmask 392192
        %v1221 = vsel %vm1219, %v1167, 0
        %v1224 = vsel %vm1219, %v1168, 0
        %v1227 = vsel %vm1219, %v1169, 0
        %v1230 = vsel %vm1219, %v1170, 0
        %v1233 = vsel %vm1219, %v1171, 0
        %v1236 = vsel %vm1219, %v1172, 0
        %v1239 = vsel %vm1219, %v1173, 0
        %v1242 = vsel %vm1219, %v1174, 0
        %v1245 = vsel %vm1219, %v1175, 0
        %v1248 = vsel %vm1219, %v1176, 0
        %v1251 = vsel %vm1219, %v1177, 0
        %v1254 = vsel %vm1219, %v1178, 0
        %v1257 = vsel %vm1219, %v1179, 0
        %v1260 = vsel %vm1219, %v1180, 0
        %v1263 = vsel %vm1219, %v1181, 0
        %v1266 = vsel %vm1219, %v1182, 0
        %1268 = vmatpush.bf16.msra.mxu0 0
        %1269 = vmatpush.bf16.msra.mxu0 0
        %1270 = vmatpush.bf16.msra.mxu0 0
        %1271 = vmatpush.bf16.msra.mxu0 0
        %1272 = vmatpush.bf16.msra.mxu0 0
        %1273 = vmatpush.bf16.msra.mxu0 %v1211
        %1274 = vmatpush.bf16.msra.mxu0 %v1209
        %1275 = vmatpush.bf16.msra.mxu0 %v1207
        %1276 = vmatmul.bf16.gmra.mxu0 %v1221
        %v1277 = vpop.f32.mrf.mxu0
        %v1278 = vadd.f32 0.0, %v1277
        %v1279 = vpop.f32.mrf.mxu0
        %v1280 = vadd.f32 0.0, %v1279
        %1281 = vmatmul.bf16.gmra.mxu0 %v1224
        %v1282 = vpop.f32.mrf.mxu0
        %v1283 = vadd.f32 0.0, %v1282
        %v1284 = vpop.f32.mrf.mxu0
        %v1285 = vadd.f32 0.0, %v1284
        %1286 = vmatmul.bf16.gmra.mxu0 %v1227
        %v1287 = vpop.f32.mrf.mxu0
        %v1288 = vadd.f32 0.0, %v1287
        %v1289 = vpop.f32.mrf.mxu0
        %v1290 = vadd.f32 0.0, %v1289
        %1291 = vmatmul.bf16.gmra.mxu0 %v1230
        %v1292 = vpop.f32.mrf.mxu0
        %v1293 = vadd.f32 0.0, %v1292
        %v1294 = vpop.f32.mrf.mxu0
        %v1295 = vadd.f32 0.0, %v1294
        %1296 = vmatmul.bf16.gmra.mxu0 %v1233
        %v1297 = vpop.f32.mrf.mxu0
        %v1298 = vadd.f32 0.0, %v1297
        %v1299 = vpop.f32.mrf.mxu0
        %v1300 = vadd.f32 0.0, %v1299
        %1301 = vmatmul.bf16.gmra.mxu0 %v1236
        %v1302 = vpop.f32.mrf.mxu0
        %v1303 = vadd.f32 0.0, %v1302
        %v1304 = vpop.f32.mrf.mxu0
        %v1305 = vadd.f32 0.0, %v1304
        %1306 = vmatmul.bf16.gmra.mxu0 %v1239
        %v1307 = vpop.f32.mrf.mxu0
        %v1308 = vadd.f32 0.0, %v1307
        %v1309 = vpop.f32.mrf.mxu0
        %v1310 = vadd.f32 0.0, %v1309
        %1311 = vmatmul.bf16.gmra.mxu0 %v1242
        %v1312 = vpop.f32.mrf.mxu0
        %v1313 = vadd.f32 0.0, %v1312
        %v1314 = vpop.f32.mrf.mxu0
        %v1315 = vadd.f32 0.0, %v1314
        %1316 = vmatmul.bf16.gmra.mxu0 %v1245
        %v1317 = vpop.f32.mrf.mxu0
        %v1318 = vadd.f32 0.0, %v1317
        %v1319 = vpop.f32.mrf.mxu0
        %v1320 = vadd.f32 0.0, %v1319
        %1321 = vmatmul.bf16.gmra.mxu0 %v1248
        %v1322 = vpop.f32.mrf.mxu0
        %v1323 = vadd.f32 0.0, %v1322
        %v1324 = vpop.f32.mrf.mxu0
        %v1325 = vadd.f32 0.0, %v1324
        %1326 = vmatmul.bf16.gmra.mxu0 %v1251
        %v1327 = vpop.f32.mrf.mxu0
        %v1328 = vadd.f32 0.0, %v1327
        %v1329 = vpop.f32.mrf.mxu0
        %v1330 = vadd.f32 0.0, %v1329
        %1331 = vmatmul.bf16.gmra.mxu0 %v1254
        %v1332 = vpop.f32.mrf.mxu0
        %v1333 = vadd.f32 0.0, %v1332
        %v1334 = vpop.f32.mrf.mxu0
        %v1335 = vadd.f32 0.0, %v1334
        %1336 = vmatmul.bf16.gmra.mxu0 %v1257
        %v1337 = vpop.f32.mrf.mxu0
        %v1338 = vadd.f32 0.0, %v1337
        %v1339 = vpop.f32.mrf.mxu0
        %v1340 = vadd.f32 0.0, %v1339
        %1341 = vmatmul.bf16.gmra.mxu0 %v1260
        %v1342 = vpop.f32.mrf.mxu0
        %v1343 = vadd.f32 0.0, %v1342
        %v1344 = vpop.f32.mrf.mxu0
        %v1345 = vadd.f32 0.0, %v1344
        %1346 = vmatmul.bf16.gmra.mxu0 %v1263
        %v1347 = vpop.f32.mrf.mxu0
        %v1348 = vadd.f32 0.0, %v1347
        %v1349 = vpop.f32.mrf.mxu0
        %v1350 = vadd.f32 0.0, %v1349
        %1351 = vmatmul.bf16.gmra.mxu0 %v1266
        %v1352 = vpop.f32.mrf.mxu0
        %v1353 = vadd.f32 0.0, %v1352
        %v1354 = vpop.f32.mrf.mxu0
        %v1355 = vadd.f32 0.0, %v1354
        %1356 = vdwg.mxu0
        %1357 = vmatpush.bf16.msra.mxu0 0
        %1358 = vmatpush.bf16.msra.mxu0 0
        %1359 = vmatpush.bf16.msra.mxu0 0
        %1360 = vmatpush.bf16.msra.mxu0 0
        %1361 = vmatpush.bf16.msra.mxu0 0
        %1362 = vmatpush.bf16.msra.mxu0 %v1212
        %1363 = vmatpush.bf16.msra.mxu0 %v1210
        %1364 = vmatpush.bf16.msra.mxu0 %v1208
        %1365 = vmatmul.bf16.gmra.mxu0 %v1221
        %v1366 = vpop.f32.mrf.mxu0
        %v1367 = vadd.f32 0.0, %v1366
        %v1368 = vpop.f32.mrf.mxu0
        %v1369 = vadd.f32 0.0, %v1368
        %1370 = vmatmul.bf16.gmra.mxu0 %v1224
        %v1371 = vpop.f32.mrf.mxu0
        %v1372 = vadd.f32 0.0, %v1371
        %v1373 = vpop.f32.mrf.mxu0
        %v1374 = vadd.f32 0.0, %v1373
        %1375 = vmatmul.bf16.gmra.mxu0 %v1227
        %v1376 = vpop.f32.mrf.mxu0
        %v1377 = vadd.f32 0.0, %v1376
        %v1378 = vpop.f32.mrf.mxu0
        %v1379 = vadd.f32 0.0, %v1378
        %1380 = vmatmul.bf16.gmra.mxu0 %v1230
        %v1381 = vpop.f32.mrf.mxu0
        %v1382 = vadd.f32 0.0, %v1381
        %v1383 = vpop.f32.mrf.mxu0
        %v1384 = vadd.f32 0.0, %v1383
        %1385 = vmatmul.bf16.gmra.mxu0 %v1233
        %v1386 = vpop.f32.mrf.mxu0
        %v1387 = vadd.f32 0.0, %v1386
        %v1388 = vpop.f32.mrf.mxu0
        %v1389 = vadd.f32 0.0, %v1388
        %1390 = vmatmul.bf16.gmra.mxu0 %v1236
        %v1391 = vpop.f32.mrf.mxu0
        %v1392 = vadd.f32 0.0, %v1391
        %v1393 = vpop.f32.mrf.mxu0
        %v1394 = vadd.f32 0.0, %v1393
        %1395 = vmatmul.bf16.gmra.mxu0 %v1239
        %v1396 = vpop.f32.mrf.mxu0
        %v1397 = vadd.f32 0.0, %v1396
        %v1398 = vpop.f32.mrf.mxu0
        %v1399 = vadd.f32 0.0, %v1398
        %1400 = vmatmul.bf16.gmra.mxu0 %v1242
        %v1401 = vpop.f32.mrf.mxu0
        %v1402 = vadd.f32 0.0, %v1401
        %v1403 = vpop.f32.mrf.mxu0
        %v1404 = vadd.f32 0.0, %v1403
        %1405 = vmatmul.bf16.gmra.mxu0 %v1245
        %v1406 = vpop.f32.mrf.mxu0
        %v1407 = vadd.f32 0.0, %v1406
        %v1408 = vpop.f32.mrf.mxu0
        %v1409 = vadd.f32 0.0, %v1408
        %1410 = vmatmul.bf16.gmra.mxu0 %v1248
        %v1411 = vpop.f32.mrf.mxu0
        %v1412 = vadd.f32 0.0, %v1411
        %v1413 = vpop.f32.mrf.mxu0
        %v1414 = vadd.f32 0.0, %v1413
        %1415 = vmatmul.bf16.gmra.mxu0 %v1251
        %v1416 = vpop.f32.mrf.mxu0
        %v1417 = vadd.f32 0.0, %v1416
        %v1418 = vpop.f32.mrf.mxu0
        %v1419 = vadd.f32 0.0, %v1418
        %1420 = vmatmul.bf16.gmra.mxu0 %v1254
        %v1421 = vpop.f32.mrf.mxu0
        %v1422 = vadd.f32 0.0, %v1421
        %v1423 = vpop.f32.mrf.mxu0
        %v1424 = vadd.f32 0.0, %v1423
        %1425 = vmatmul.bf16.gmra.mxu0 %v1257
        %v1426 = vpop.f32.mrf.mxu0
        %v1427 = vadd.f32 0.0, %v1426
        %v1428 = vpop.f32.mrf.mxu0
        %v1429 = vadd.f32 0.0, %v1428
        %1430 = vmatmul.bf16.gmra.mxu0 %v1260
        %v1431 = vpop.f32.mrf.mxu0
        %v1432 = vadd.f32 0.0, %v1431
        %v1433 = vpop.f32.mrf.mxu0
        %v1434 = vadd.f32 0.0, %v1433
        %1435 = vmatmul.bf16.gmra.mxu0 %v1263
        %v1436 = vpop.f32.mrf.mxu0
        %v1437 = vadd.f32 0.0, %v1436
        %v1438 = vpop.f32.mrf.mxu0
        %v1439 = vadd.f32 0.0, %v1438
        %1440 = vmatmul.bf16.gmra.mxu0 %v1266
        %v1441 = vpop.f32.mrf.mxu0
        %v1442 = vadd.f32 0.0, %v1441
        %v1443 = vpop.f32.mrf.mxu0
        %v1444 = vadd.f32 0.0, %v1443
        %1445 = vdwg.mxu0
        %v1478 = vunpack.c.l.b16 %v1103
        %v1479 = vunpack.c.h.b16 %v1103
        %v1480 = vunpack.c.l.b16 %v1104
        %v1481 = vunpack.c.h.b16 %v1104
        %v1482 = vunpack.c.l.b16 %v1105
        %v1483 = vunpack.c.h.b16 %v1105
        %v1484 = vunpack.c.l.b16 %v1106
        %v1485 = vunpack.c.h.b16 %v1106
        %v1486 = vunpack.c.l.b16 %v1107
        %v1487 = vunpack.c.h.b16 %v1107
        %v1488 = vunpack.c.l.b16 %v1108
        %v1489 = vunpack.c.h.b16 %v1108
        %v1490 = vunpack.c.l.b16 %v1109
        %v1491 = vunpack.c.h.b16 %v1109
        %v1492 = vunpack.c.l.b16 %v1110
        %v1493 = vunpack.c.h.b16 %v1110
        %v1494 = vunpack.c.l.b16 %v1111
        %v1495 = vunpack.c.h.b16 %v1111
        %v1496 = vunpack.c.l.b16 %v1112
        %v1497 = vunpack.c.h.b16 %v1112
        %v1498 = vunpack.c.l.b16 %v1113
        %v1499 = vunpack.c.h.b16 %v1113
        %v1500 = vunpack.c.l.b16 %v1114
        %v1501 = vunpack.c.h.b16 %v1114
        %v1502 = vunpack.c.l.b16 %v1115
        %v1503 = vunpack.c.h.b16 %v1115
        %v1504 = vunpack.c.l.b16 %v1116
        %v1505 = vunpack.c.h.b16 %v1116
        %v1506 = vunpack.c.l.b16 %v1117
        %v1507 = vunpack.c.h.b16 %v1117
        %v1508 = vunpack.c.l.b16 %v1118
        %v1509 = vunpack.c.h.b16 %v1118
        %v1510 = vunpack.c.l.b16 %v1119
        %v1511 = vunpack.c.h.b16 %v1119
        %v1512 = vunpack.c.l.b16 %v1120
        %v1513 = vunpack.c.h.b16 %v1120
        %v1514 = vunpack.c.l.b16 %v1121
        %v1515 = vunpack.c.h.b16 %v1121
        %v1516 = vunpack.c.l.b16 %v1122
        %v1517 = vunpack.c.h.b16 %v1122
        %v1518 = vunpack.c.l.b16 %v1123
        %v1519 = vunpack.c.h.b16 %v1123
        %v1520 = vunpack.c.l.b16 %v1124
        %v1521 = vunpack.c.h.b16 %v1124
        %v1522 = vunpack.c.l.b16 %v1125
        %v1523 = vunpack.c.h.b16 %v1125
        %v1524 = vunpack.c.l.b16 %v1126
        %v1525 = vunpack.c.h.b16 %v1126
        %v1526 = vunpack.c.l.b16 %v1127
        %v1527 = vunpack.c.h.b16 %v1127
        %v1528 = vunpack.c.l.b16 %v1128
        %v1529 = vunpack.c.h.b16 %v1128
        %v1530 = vunpack.c.l.b16 %v1129
        %v1531 = vunpack.c.h.b16 %v1129
        %v1532 = vunpack.c.l.b16 %v1130
        %v1533 = vunpack.c.h.b16 %v1130
        %v1534 = vunpack.c.l.b16 %v1131
        %v1535 = vunpack.c.h.b16 %v1131
        %v1536 = vunpack.c.l.b16 %v1132
        %v1537 = vunpack.c.h.b16 %v1132
        %v1538 = vunpack.c.l.b16 %v1133
        %v1539 = vunpack.c.h.b16 %v1133
        %v1540 = vunpack.c.l.b16 %v1134
        %v1541 = vunpack.c.h.b16 %v1134
        %v1542 = vpack.c.b16 %v1480, %v1478
        %v1543 = vpack.c.b16 %v1481, %v1479
        %v1544 = vpack.c.b16 %v1484, %v1482
        %v1545 = vpack.c.b16 %v1485, %v1483
        %v1546 = vpack.c.b16 %v1488, %v1486
        %v1547 = vpack.c.b16 %v1489, %v1487
        %v1548 = vpack.c.b16 %v1492, %v1490
        %v1549 = vpack.c.b16 %v1493, %v1491
        %v1550 = vpack.c.b16 %v1496, %v1494
        %v1551 = vpack.c.b16 %v1497, %v1495
        %v1552 = vpack.c.b16 %v1500, %v1498
        %v1553 = vpack.c.b16 %v1501, %v1499
        %v1554 = vpack.c.b16 %v1504, %v1502
        %v1555 = vpack.c.b16 %v1505, %v1503
        %v1556 = vpack.c.b16 %v1508, %v1506
        %v1557 = vpack.c.b16 %v1509, %v1507
        %v1558 = vpack.c.b16 %v1512, %v1510
        %v1559 = vpack.c.b16 %v1513, %v1511
        %v1560 = vpack.c.b16 %v1516, %v1514
        %v1561 = vpack.c.b16 %v1517, %v1515
        %v1562 = vpack.c.b16 %v1520, %v1518
        %v1563 = vpack.c.b16 %v1521, %v1519
        %v1564 = vpack.c.b16 %v1524, %v1522
        %v1565 = vpack.c.b16 %v1525, %v1523
        %v1566 = vpack.c.b16 %v1528, %v1526
        %v1567 = vpack.c.b16 %v1529, %v1527
        %v1568 = vpack.c.b16 %v1532, %v1530
        %v1569 = vpack.c.b16 %v1533, %v1531
        %v1570 = vpack.c.b16 %v1536, %v1534
        %v1571 = vpack.c.b16 %v1537, %v1535
        %v1572 = vpack.c.b16 %v1540, %v1538
        %v1573 = vpack.c.b16 %v1541, %v1539
        %v1638 = vunpack.c.l.b16 %v1135
        %v1639 = vunpack.c.h.b16 %v1135
        %v1640 = vunpack.c.l.b16 %v1136
        %v1641 = vunpack.c.h.b16 %v1136
        %v1642 = vunpack.c.l.b16 %v1137
        %v1643 = vunpack.c.h.b16 %v1137
        %v1644 = vunpack.c.l.b16 %v1138
        %v1645 = vunpack.c.h.b16 %v1138
        %v1646 = vunpack.c.l.b16 %v1139
        %v1647 = vunpack.c.h.b16 %v1139
        %v1648 = vunpack.c.l.b16 %v1140
        %v1649 = vunpack.c.h.b16 %v1140
        %v1650 = vunpack.c.l.b16 %v1141
        %v1651 = vunpack.c.h.b16 %v1141
        %v1652 = vunpack.c.l.b16 %v1142
        %v1653 = vunpack.c.h.b16 %v1142
        %v1654 = vunpack.c.l.b16 %v1143
        %v1655 = vunpack.c.h.b16 %v1143
        %v1656 = vunpack.c.l.b16 %v1144
        %v1657 = vunpack.c.h.b16 %v1144
        %v1658 = vunpack.c.l.b16 %v1145
        %v1659 = vunpack.c.h.b16 %v1145
        %v1660 = vunpack.c.l.b16 %v1146
        %v1661 = vunpack.c.h.b16 %v1146
        %v1662 = vunpack.c.l.b16 %v1147
        %v1663 = vunpack.c.h.b16 %v1147
        %v1664 = vunpack.c.l.b16 %v1148
        %v1665 = vunpack.c.h.b16 %v1148
        %v1666 = vunpack.c.l.b16 %v1149
        %v1667 = vunpack.c.h.b16 %v1149
        %v1668 = vunpack.c.l.b16 %v1150
        %v1669 = vunpack.c.h.b16 %v1150
        %v1670 = vunpack.c.l.b16 %v1151
        %v1671 = vunpack.c.h.b16 %v1151
        %v1672 = vunpack.c.l.b16 %v1152
        %v1673 = vunpack.c.h.b16 %v1152
        %v1674 = vunpack.c.l.b16 %v1153
        %v1675 = vunpack.c.h.b16 %v1153
        %v1676 = vunpack.c.l.b16 %v1154
        %v1677 = vunpack.c.h.b16 %v1154
        %v1678 = vunpack.c.l.b16 %v1155
        %v1679 = vunpack.c.h.b16 %v1155
        %v1680 = vunpack.c.l.b16 %v1156
        %v1681 = vunpack.c.h.b16 %v1156
        %v1682 = vunpack.c.l.b16 %v1157
        %v1683 = vunpack.c.h.b16 %v1157
        %v1684 = vunpack.c.l.b16 %v1158
        %v1685 = vunpack.c.h.b16 %v1158
        %v1686 = vunpack.c.l.b16 %v1159
        %v1687 = vunpack.c.h.b16 %v1159
        %v1688 = vunpack.c.l.b16 %v1160
        %v1689 = vunpack.c.h.b16 %v1160
        %v1690 = vunpack.c.l.b16 %v1161
        %v1691 = vunpack.c.h.b16 %v1161
        %v1692 = vunpack.c.l.b16 %v1162
        %v1693 = vunpack.c.h.b16 %v1162
        %v1694 = vunpack.c.l.b16 %v1163
        %v1695 = vunpack.c.h.b16 %v1163
        %v1696 = vunpack.c.l.b16 %v1164
        %v1697 = vunpack.c.h.b16 %v1164
        %v1698 = vunpack.c.l.b16 %v1165
        %v1699 = vunpack.c.h.b16 %v1165
        %v1700 = vunpack.c.l.b16 %v1166
        %v1701 = vunpack.c.h.b16 %v1166
        %v1702 = vpack.c.b16 %v1640, %v1638
        %v1703 = vpack.c.b16 %v1641, %v1639
        %v1704 = vpack.c.b16 %v1644, %v1642
        %v1705 = vpack.c.b16 %v1645, %v1643
        %v1706 = vpack.c.b16 %v1648, %v1646
        %v1707 = vpack.c.b16 %v1649, %v1647
        %v1708 = vpack.c.b16 %v1652, %v1650
        %v1709 = vpack.c.b16 %v1653, %v1651
        %v1710 = vpack.c.b16 %v1656, %v1654
        %v1711 = vpack.c.b16 %v1657, %v1655
        %v1712 = vpack.c.b16 %v1660, %v1658
        %v1713 = vpack.c.b16 %v1661, %v1659
        %v1714 = vpack.c.b16 %v1664, %v1662
        %v1715 = vpack.c.b16 %v1665, %v1663
        %v1716 = vpack.c.b16 %v1668, %v1666
        %v1717 = vpack.c.b16 %v1669, %v1667
        %v1718 = vpack.c.b16 %v1672, %v1670
        %v1719 = vpack.c.b16 %v1673, %v1671
        %v1720 = vpack.c.b16 %v1676, %v1674
        %v1721 = vpack.c.b16 %v1677, %v1675
        %v1722 = vpack.c.b16 %v1680, %v1678
        %v1723 = vpack.c.b16 %v1681, %v1679
        %v1724 = vpack.c.b16 %v1684, %v1682
        %v1725 = vpack.c.b16 %v1685, %v1683
        %v1726 = vpack.c.b16 %v1688, %v1686
        %v1727 = vpack.c.b16 %v1689, %v1687
        %v1728 = vpack.c.b16 %v1692, %v1690
        %v1729 = vpack.c.b16 %v1693, %v1691
        %v1730 = vpack.c.b16 %v1696, %v1694
        %v1731 = vpack.c.b16 %v1697, %v1695
        %v1732 = vpack.c.b16 %v1700, %v1698
        %v1733 = vpack.c.b16 %v1701, %v1699
        %1766 = vmatpush.bf16.msra.mxu0 %v1716
        %1767 = vmatpush.bf16.msra.mxu0 %v1714
        %1768 = vmatpush.bf16.msra.mxu0 %v1712
        %1769 = vmatpush.bf16.msra.mxu0 %v1710
        %1770 = vmatpush.bf16.msra.mxu0 %v1708
        %1771 = vmatpush.bf16.msra.mxu0 %v1706
        %1772 = vmatpush.bf16.msra.mxu0 %v1704
        %1773 = vmatpush.bf16.msra.mxu0 %v1702
        %1774 = vmatmul.bf16.gmra.mxu0 %v1542
        %v1775 = vpop.f32.mrf.mxu0
        %v1776 = vadd.f32 %v1278, %v1775
        %v1777 = vpop.f32.mrf.mxu0
        %v1778 = vadd.f32 %v1280, %v1777
        %1779 = vmatmul.bf16.gmra.mxu0 %v1544
        %v1780 = vpop.f32.mrf.mxu0
        %v1781 = vadd.f32 %v1283, %v1780
        %v1782 = vpop.f32.mrf.mxu0
        %v1783 = vadd.f32 %v1285, %v1782
        %1784 = vmatmul.bf16.gmra.mxu0 %v1546
        %v1785 = vpop.f32.mrf.mxu0
        %v1786 = vadd.f32 %v1288, %v1785
        %v1787 = vpop.f32.mrf.mxu0
        %v1788 = vadd.f32 %v1290, %v1787
        %1789 = vmatmul.bf16.gmra.mxu0 %v1548
        %v1790 = vpop.f32.mrf.mxu0
        %v1791 = vadd.f32 %v1293, %v1790
        %v1792 = vpop.f32.mrf.mxu0
        %v1793 = vadd.f32 %v1295, %v1792
        %1794 = vmatmul.bf16.gmra.mxu0 %v1550
        %v1795 = vpop.f32.mrf.mxu0
        %v1796 = vadd.f32 %v1298, %v1795
        %v1797 = vpop.f32.mrf.mxu0
        %v1798 = vadd.f32 %v1300, %v1797
        %1799 = vmatmul.bf16.gmra.mxu0 %v1552
        %v1800 = vpop.f32.mrf.mxu0
        %v1801 = vadd.f32 %v1303, %v1800
        %v1802 = vpop.f32.mrf.mxu0
        %v1803 = vadd.f32 %v1305, %v1802
        %1804 = vmatmul.bf16.gmra.mxu0 %v1554
        %v1805 = vpop.f32.mrf.mxu0
        %v1806 = vadd.f32 %v1308, %v1805
        %v1807 = vpop.f32.mrf.mxu0
        %v1808 = vadd.f32 %v1310, %v1807
        %1809 = vmatmul.bf16.gmra.mxu0 %v1556
        %v1810 = vpop.f32.mrf.mxu0
        %v1811 = vadd.f32 %v1313, %v1810
        %v1812 = vpop.f32.mrf.mxu0
        %v1813 = vadd.f32 %v1315, %v1812
        %1814 = vmatmul.bf16.gmra.mxu0 %v1558
        %v1815 = vpop.f32.mrf.mxu0
        %v1816 = vadd.f32 %v1318, %v1815
        %v1817 = vpop.f32.mrf.mxu0
        %v1818 = vadd.f32 %v1320, %v1817
        %1819 = vmatmul.bf16.gmra.mxu0 %v1560
        %v1820 = vpop.f32.mrf.mxu0
        %v1821 = vadd.f32 %v1323, %v1820
        %v1822 = vpop.f32.mrf.mxu0
        %v1823 = vadd.f32 %v1325, %v1822
        %1824 = vmatmul.bf16.gmra.mxu0 %v1562
        %v1825 = vpop.f32.mrf.mxu0
        %v1826 = vadd.f32 %v1328, %v1825
        %v1827 = vpop.f32.mrf.mxu0
        %v1828 = vadd.f32 %v1330, %v1827
        %1829 = vmatmul.bf16.gmra.mxu0 %v1564
        %v1830 = vpop.f32.mrf.mxu0
        %v1831 = vadd.f32 %v1333, %v1830
        %v1832 = vpop.f32.mrf.mxu0
        %v1833 = vadd.f32 %v1335, %v1832
        %1834 = vmatmul.bf16.gmra.mxu0 %v1566
        %v1835 = vpop.f32.mrf.mxu0
        %v1836 = vadd.f32 %v1338, %v1835
        %v1837 = vpop.f32.mrf.mxu0
        %v1838 = vadd.f32 %v1340, %v1837
        %1839 = vmatmul.bf16.gmra.mxu0 %v1568
        %v1840 = vpop.f32.mrf.mxu0
        %v1841 = vadd.f32 %v1343, %v1840
        %v1842 = vpop.f32.mrf.mxu0
        %v1843 = vadd.f32 %v1345, %v1842
        %1844 = vmatmul.bf16.gmra.mxu0 %v1570
        %v1845 = vpop.f32.mrf.mxu0
        %v1846 = vadd.f32 %v1348, %v1845
        %v1847 = vpop.f32.mrf.mxu0
        %v1848 = vadd.f32 %v1350, %v1847
        %1849 = vmatmul.bf16.gmra.mxu0 %v1572
        %v1850 = vpop.f32.mrf.mxu0
        %v1851 = vadd.f32 %v1353, %v1850
        %v1852 = vpop.f32.mrf.mxu0
        %v1853 = vadd.f32 %v1355, %v1852
        %1854 = vdwg.mxu0
        %1855 = vmatpush.bf16.msra.mxu0 %v1732
        %1856 = vmatpush.bf16.msra.mxu0 %v1730
        %1857 = vmatpush.bf16.msra.mxu0 %v1728
        %1858 = vmatpush.bf16.msra.mxu0 %v1726
        %1859 = vmatpush.bf16.msra.mxu0 %v1724
        %1860 = vmatpush.bf16.msra.mxu0 %v1722
        %1861 = vmatpush.bf16.msra.mxu0 %v1720
        %1862 = vmatpush.bf16.msra.mxu0 %v1718
        %1863 = vmatmul.bf16.gmra.mxu0 %v1543
        %v1864 = vpop.f32.mrf.mxu0
        %v1865 = vadd.f32 %v1776, %v1864
        %v1866 = vpop.f32.mrf.mxu0
        %v1867 = vadd.f32 %v1778, %v1866
        %1868 = vmatmul.bf16.gmra.mxu0 %v1545
        %v1869 = vpop.f32.mrf.mxu0
        %v1870 = vadd.f32 %v1781, %v1869
        %v1871 = vpop.f32.mrf.mxu0
        %v1872 = vadd.f32 %v1783, %v1871
        %1873 = vmatmul.bf16.gmra.mxu0 %v1547
        %v1874 = vpop.f32.mrf.mxu0
        %v1875 = vadd.f32 %v1786, %v1874
        %v1876 = vpop.f32.mrf.mxu0
        %v1877 = vadd.f32 %v1788, %v1876
        %1878 = vmatmul.bf16.gmra.mxu0 %v1549
        %v1879 = vpop.f32.mrf.mxu0
        %v1880 = vadd.f32 %v1791, %v1879
        %v1881 = vpop.f32.mrf.mxu0
        %v1882 = vadd.f32 %v1793, %v1881
        %1883 = vmatmul.bf16.gmra.mxu0 %v1551
        %v1884 = vpop.f32.mrf.mxu0
        %v1885 = vadd.f32 %v1796, %v1884
        %v1886 = vpop.f32.mrf.mxu0
        %v1887 = vadd.f32 %v1798, %v1886
        %1888 = vmatmul.bf16.gmra.mxu0 %v1553
        %v1889 = vpop.f32.mrf.mxu0
        %v1890 = vadd.f32 %v1801, %v1889
        %v1891 = vpop.f32.mrf.mxu0
        %v1892 = vadd.f32 %v1803, %v1891
        %1893 = vmatmul.bf16.gmra.mxu0 %v1555
        %v1894 = vpop.f32.mrf.mxu0
        %v1895 = vadd.f32 %v1806, %v1894
        %v1896 = vpop.f32.mrf.mxu0
        %v1897 = vadd.f32 %v1808, %v1896
        %1898 = vmatmul.bf16.gmra.mxu0 %v1557
        %v1899 = vpop.f32.mrf.mxu0
        %v1900 = vadd.f32 %v1811, %v1899
        %v1901 = vpop.f32.mrf.mxu0
        %v1902 = vadd.f32 %v1813, %v1901
        %1903 = vmatmul.bf16.gmra.mxu0 %v1559
        %v1904 = vpop.f32.mrf.mxu0
        %v1905 = vadd.f32 %v1816, %v1904
        %v1906 = vpop.f32.mrf.mxu0
        %v1907 = vadd.f32 %v1818, %v1906
        %1908 = vmatmul.bf16.gmra.mxu0 %v1561
        %v1909 = vpop.f32.mrf.mxu0
        %v1910 = vadd.f32 %v1821, %v1909
        %v1911 = vpop.f32.mrf.mxu0
        %v1912 = vadd.f32 %v1823, %v1911
        %1913 = vmatmul.bf16.gmra.mxu0 %v1563
        %v1914 = vpop.f32.mrf.mxu0
        %v1915 = vadd.f32 %v1826, %v1914
        %v1916 = vpop.f32.mrf.mxu0
        %v1917 = vadd.f32 %v1828, %v1916
        %1918 = vmatmul.bf16.gmra.mxu0 %v1565
        %v1919 = vpop.f32.mrf.mxu0
        %v1920 = vadd.f32 %v1831, %v1919
        %v1921 = vpop.f32.mrf.mxu0
        %v1922 = vadd.f32 %v1833, %v1921
        %1923 = vmatmul.bf16.gmra.mxu0 %v1567
        %v1924 = vpop.f32.mrf.mxu0
        %v1925 = vadd.f32 %v1836, %v1924
        %v1926 = vpop.f32.mrf.mxu0
        %v1927 = vadd.f32 %v1838, %v1926
        %1928 = vmatmul.bf16.gmra.mxu0 %v1569
        %v1929 = vpop.f32.mrf.mxu0
        %v1930 = vadd.f32 %v1841, %v1929
        %v1931 = vpop.f32.mrf.mxu0
        %v1932 = vadd.f32 %v1843, %v1931
        %1933 = vmatmul.bf16.gmra.mxu0 %v1571
        %v1934 = vpop.f32.mrf.mxu0
        %v1935 = vadd.f32 %v1846, %v1934
        %v1936 = vpop.f32.mrf.mxu0
        %v1937 = vadd.f32 %v1848, %v1936
        %1938 = vmatmul.bf16.gmra.mxu0 %v1573
        %v1939 = vpop.f32.mrf.mxu0
        %v1940 = vadd.f32 %v1851, %v1939
        %v1941 = vpop.f32.mrf.mxu0
        %v1942 = vadd.f32 %v1853, %v1941
        %1943 = vdwg.mxu0
        %1944 = vmatpush.bf16.msra.mxu0 %v1717
        %1945 = vmatpush.bf16.msra.mxu0 %v1715
        %1946 = vmatpush.bf16.msra.mxu0 %v1713
        %1947 = vmatpush.bf16.msra.mxu0 %v1711
        %1948 = vmatpush.bf16.msra.mxu0 %v1709
        %1949 = vmatpush.bf16.msra.mxu0 %v1707
        %1950 = vmatpush.bf16.msra.mxu0 %v1705
        %1951 = vmatpush.bf16.msra.mxu0 %v1703
        %1952 = vmatmul.bf16.gmra.mxu0 %v1542
        %v1953 = vpop.f32.mrf.mxu0
        %v1954 = vadd.f32 %v1367, %v1953
        %v1955 = vpop.f32.mrf.mxu0
        %v1956 = vadd.f32 %v1369, %v1955
        %1957 = vmatmul.bf16.gmra.mxu0 %v1544
        %v1958 = vpop.f32.mrf.mxu0
        %v1959 = vadd.f32 %v1372, %v1958
        %v1960 = vpop.f32.mrf.mxu0
        %v1961 = vadd.f32 %v1374, %v1960
        %1962 = vmatmul.bf16.gmra.mxu0 %v1546
        %v1963 = vpop.f32.mrf.mxu0
        %v1964 = vadd.f32 %v1377, %v1963
        %v1965 = vpop.f32.mrf.mxu0
        %v1966 = vadd.f32 %v1379, %v1965
        %1967 = vmatmul.bf16.gmra.mxu0 %v1548
        %v1968 = vpop.f32.mrf.mxu0
        %v1969 = vadd.f32 %v1382, %v1968
        %v1970 = vpop.f32.mrf.mxu0
        %v1971 = vadd.f32 %v1384, %v1970
        %1972 = vmatmul.bf16.gmra.mxu0 %v1550
        %v1973 = vpop.f32.mrf.mxu0
        %v1974 = vadd.f32 %v1387, %v1973
        %v1975 = vpop.f32.mrf.mxu0
        %v1976 = vadd.f32 %v1389, %v1975
        %1977 = vmatmul.bf16.gmra.mxu0 %v1552
        %v1978 = vpop.f32.mrf.mxu0
        %v1979 = vadd.f32 %v1392, %v1978
        %v1980 = vpop.f32.mrf.mxu0
        %v1981 = vadd.f32 %v1394, %v1980
        %1982 = vmatmul.bf16.gmra.mxu0 %v1554
        %v1983 = vpop.f32.mrf.mxu0
        %v1984 = vadd.f32 %v1397, %v1983
        %v1985 = vpop.f32.mrf.mxu0
        %v1986 = vadd.f32 %v1399, %v1985
        %1987 = vmatmul.bf16.gmra.mxu0 %v1556
        %v1988 = vpop.f32.mrf.mxu0
        %v1989 = vadd.f32 %v1402, %v1988
        %v1990 = vpop.f32.mrf.mxu0
        %v1991 = vadd.f32 %v1404, %v1990
        %1992 = vmatmul.bf16.gmra.mxu0 %v1558
        %v1993 = vpop.f32.mrf.mxu0
        %v1994 = vadd.f32 %v1407, %v1993
        %v1995 = vpop.f32.mrf.mxu0
        %v1996 = vadd.f32 %v1409, %v1995
        %1997 = vmatmul.bf16.gmra.mxu0 %v1560
        %v1998 = vpop.f32.mrf.mxu0
        %v1999 = vadd.f32 %v1412, %v1998
        %v2000 = vpop.f32.mrf.mxu0
        %v2001 = vadd.f32 %v1414, %v2000
        %2002 = vmatmul.bf16.gmra.mxu0 %v1562
        %v2003 = vpop.f32.mrf.mxu0
        %v2004 = vadd.f32 %v1417, %v2003
        %v2005 = vpop.f32.mrf.mxu0
        %v2006 = vadd.f32 %v1419, %v2005
        %2007 = vmatmul.bf16.gmra.mxu0 %v1564
        %v2008 = vpop.f32.mrf.mxu0
        %v2009 = vadd.f32 %v1422, %v2008
        %v2010 = vpop.f32.mrf.mxu0
        %v2011 = vadd.f32 %v1424, %v2010
        %2012 = vmatmul.bf16.gmra.mxu0 %v1566
        %v2013 = vpop.f32.mrf.mxu0
        %v2014 = vadd.f32 %v1427, %v2013
        %v2015 = vpop.f32.mrf.mxu0
        %v2016 = vadd.f32 %v1429, %v2015
        %2017 = vmatmul.bf16.gmra.mxu0 %v1568
        %v2018 = vpop.f32.mrf.mxu0
        %v2019 = vadd.f32 %v1432, %v2018
        %v2020 = vpop.f32.mrf.mxu0
        %v2021 = vadd.f32 %v1434, %v2020
        %2022 = vmatmul.bf16.gmra.mxu0 %v1570
        %v2023 = vpop.f32.mrf.mxu0
        %v2024 = vadd.f32 %v1437, %v2023
        %v2025 = vpop.f32.mrf.mxu0
        %v2026 = vadd.f32 %v1439, %v2025
        %2027 = vmatmul.bf16.gmra.mxu0 %v1572
        %v2028 = vpop.f32.mrf.mxu0
        %v2029 = vadd.f32 %v1442, %v2028
        %v2030 = vpop.f32.mrf.mxu0
        %v2031 = vadd.f32 %v1444, %v2030
        %2032 = vdwg.mxu0
        %2033 = vmatpush.bf16.msra.mxu0 %v1733
        %2034 = vmatpush.bf16.msra.mxu0 %v1731
        %2035 = vmatpush.bf16.msra.mxu0 %v1729
        %2036 = vmatpush.bf16.msra.mxu0 %v1727
        %2037 = vmatpush.bf16.msra.mxu0 %v1725
        %2038 = vmatpush.bf16.msra.mxu0 %v1723
        %2039 = vmatpush.bf16.msra.mxu0 %v1721
        %2040 = vmatpush.bf16.msra.mxu0 %v1719
        %2041 = vmatmul.bf16.gmra.mxu0 %v1543
        %v2042 = vpop.f32.mrf.mxu0
        %v2043 = vadd.f32 %v1954, %v2042
        %v2044 = vpop.f32.mrf.mxu0
        %v2045 = vadd.f32 %v1956, %v2044
        %2046 = vmatmul.bf16.gmra.mxu0 %v1545
        %v2047 = vpop.f32.mrf.mxu0
        %v2048 = vadd.f32 %v1959, %v2047
        %v2049 = vpop.f32.mrf.mxu0
        %v2050 = vadd.f32 %v1961, %v2049
        %2051 = vmatmul.bf16.gmra.mxu0 %v1547
        %v2052 = vpop.f32.mrf.mxu0
        %v2053 = vadd.f32 %v1964, %v2052
        %v2054 = vpop.f32.mrf.mxu0
        %v2055 = vadd.f32 %v1966, %v2054
        %2056 = vmatmul.bf16.gmra.mxu0 %v1549
        %v2057 = vpop.f32.mrf.mxu0
        %v2058 = vadd.f32 %v1969, %v2057
        %v2059 = vpop.f32.mrf.mxu0
        %v2060 = vadd.f32 %v1971, %v2059
        %2061 = vmatmul.bf16.gmra.mxu0 %v1551
        %v2062 = vpop.f32.mrf.mxu0
        %v2063 = vadd.f32 %v1974, %v2062
        %v2064 = vpop.f32.mrf.mxu0
        %v2065 = vadd.f32 %v1976, %v2064
        %2066 = vmatmul.bf16.gmra.mxu0 %v1553
        %v2067 = vpop.f32.mrf.mxu0
        %v2068 = vadd.f32 %v1979, %v2067
        %v2069 = vpop.f32.mrf.mxu0
        %v2070 = vadd.f32 %v1981, %v2069
        %2071 = vmatmul.bf16.gmra.mxu0 %v1555
        %v2072 = vpop.f32.mrf.mxu0
        %v2073 = vadd.f32 %v1984, %v2072
        %v2074 = vpop.f32.mrf.mxu0
        %v2075 = vadd.f32 %v1986, %v2074
        %2076 = vmatmul.bf16.gmra.mxu0 %v1557
        %v2077 = vpop.f32.mrf.mxu0
        %v2078 = vadd.f32 %v1989, %v2077
        %v2079 = vpop.f32.mrf.mxu0
        %v2080 = vadd.f32 %v1991, %v2079
        %2081 = vmatmul.bf16.gmra.mxu0 %v1559
        %v2082 = vpop.f32.mrf.mxu0
        %v2083 = vadd.f32 %v1994, %v2082
        %v2084 = vpop.f32.mrf.mxu0
        %v2085 = vadd.f32 %v1996, %v2084
        %2086 = vmatmul.bf16.gmra.mxu0 %v1561
        %v2087 = vpop.f32.mrf.mxu0
        %v2088 = vadd.f32 %v1999, %v2087
        %v2089 = vpop.f32.mrf.mxu0
        %v2090 = vadd.f32 %v2001, %v2089
        %2091 = vmatmul.bf16.gmra.mxu0 %v1563
        %v2092 = vpop.f32.mrf.mxu0
        %v2093 = vadd.f32 %v2004, %v2092
        %v2094 = vpop.f32.mrf.mxu0
        %v2095 = vadd.f32 %v2006, %v2094
        %2096 = vmatmul.bf16.gmra.mxu0 %v1565
        %v2097 = vpop.f32.mrf.mxu0
        %v2098 = vadd.f32 %v2009, %v2097
        %v2099 = vpop.f32.mrf.mxu0
        %v2100 = vadd.f32 %v2011, %v2099
        %2101 = vmatmul.bf16.gmra.mxu0 %v1567
        %v2102 = vpop.f32.mrf.mxu0
        %v2103 = vadd.f32 %v2014, %v2102
        %v2104 = vpop.f32.mrf.mxu0
        %v2105 = vadd.f32 %v2016, %v2104
        %2106 = vmatmul.bf16.gmra.mxu0 %v1569
        %v2107 = vpop.f32.mrf.mxu0
        %v2108 = vadd.f32 %v2019, %v2107
        %v2109 = vpop.f32.mrf.mxu0
        %v2110 = vadd.f32 %v2021, %v2109
        %2111 = vmatmul.bf16.gmra.mxu0 %v1571
        %v2112 = vpop.f32.mrf.mxu0
        %v2113 = vadd.f32 %v2024, %v2112
        %v2114 = vpop.f32.mrf.mxu0
        %v2115 = vadd.f32 %v2026, %v2114
        %2116 = vmatmul.bf16.gmra.mxu0 %v1573
        %v2117 = vpop.f32.mrf.mxu0
        %v2118 = vadd.f32 %v2029, %v2117
        %v2119 = vpop.f32.mrf.mxu0
        %v2120 = vadd.f32 %v2031, %v2119
        %2121 = vdwg.mxu0
        %v2122 = vld [vmem:[%s7] sm:$0x3]
        %v2124 = vperm.slane %v2122, 0
        %v2125 = vperm.slane %v2122, 1
        %v2128 = vadd.f32 %v1865, %v2124
        %v2129 = vadd.f32 %v2043, %v2125
        %v2130 = vadd.f32 %v1867, %v2124
        %v2131 = vadd.f32 %v2045, %v2125
        %v2132 = vadd.f32 %v1870, %v2124
        %v2133 = vadd.f32 %v2048, %v2125
        %v2134 = vadd.f32 %v1872, %v2124
        %v2135 = vadd.f32 %v2050, %v2125
        %v2136 = vadd.f32 %v1875, %v2124
        %v2137 = vadd.f32 %v2053, %v2125
        %v2138 = vadd.f32 %v1877, %v2124
        %v2139 = vadd.f32 %v2055, %v2125
        %v2140 = vadd.f32 %v1880, %v2124
        %v2141 = vadd.f32 %v2058, %v2125
        %v2142 = vadd.f32 %v1882, %v2124
        %v2143 = vadd.f32 %v2060, %v2125
        %v2144 = vadd.f32 %v1885, %v2124
        %v2145 = vadd.f32 %v2063, %v2125
        %v2146 = vadd.f32 %v1887, %v2124
        %v2147 = vadd.f32 %v2065, %v2125
        %v2148 = vadd.f32 %v1890, %v2124
        %v2149 = vadd.f32 %v2068, %v2125
        %v2150 = vadd.f32 %v1892, %v2124
        %v2151 = vadd.f32 %v2070, %v2125
        %v2152 = vadd.f32 %v1895, %v2124
        %v2153 = vadd.f32 %v2073, %v2125
        %v2154 = vadd.f32 %v1897, %v2124
        %v2155 = vadd.f32 %v2075, %v2125
        %v2156 = vadd.f32 %v1900, %v2124
        %v2157 = vadd.f32 %v2078, %v2125
        %v2158 = vadd.f32 %v1902, %v2124
        %v2159 = vadd.f32 %v2080, %v2125
        %v2160 = vadd.f32 %v1905, %v2124
        %v2161 = vadd.f32 %v2083, %v2125
        %v2162 = vadd.f32 %v1907, %v2124
        %v2163 = vadd.f32 %v2085, %v2125
        %v2164 = vadd.f32 %v1910, %v2124
        %v2165 = vadd.f32 %v2088, %v2125
        %v2166 = vadd.f32 %v1912, %v2124
        %v2167 = vadd.f32 %v2090, %v2125
        %v2168 = vadd.f32 %v1915, %v2124
        %v2169 = vadd.f32 %v2093, %v2125
        %v2170 = vadd.f32 %v1917, %v2124
        %v2171 = vadd.f32 %v2095, %v2125
        %v2172 = vadd.f32 %v1920, %v2124
        %v2173 = vadd.f32 %v2098, %v2125
        %v2174 = vadd.f32 %v1922, %v2124
        %v2175 = vadd.f32 %v2100, %v2125
        %v2176 = vadd.f32 %v1925, %v2124
        %v2177 = vadd.f32 %v2103, %v2125
        %v2178 = vadd.f32 %v1927, %v2124
        %v2179 = vadd.f32 %v2105, %v2125
        %v2180 = vadd.f32 %v1930, %v2124
        %v2181 = vadd.f32 %v2108, %v2125
        %v2182 = vadd.f32 %v1932, %v2124
        %v2183 = vadd.f32 %v2110, %v2125
        %v2184 = vadd.f32 %v1935, %v2124
        %v2185 = vadd.f32 %v2113, %v2125
        %v2186 = vadd.f32 %v1937, %v2124
        %v2187 = vadd.f32 %v2115, %v2125
        %v2188 = vadd.f32 %v1940, %v2124
        %v2189 = vadd.f32 %v2118, %v2125
        %v2190 = vadd.f32 %v1942, %v2124
        %v2191 = vadd.f32 %v2120, %v2125
        %vm2192 = vcmp.ge.f32.partialorder %v2128, 0.0
        %vm2193 = vcmp.ge.f32.partialorder %v2129, 0.0
        %vm2194 = vcmp.ge.f32.partialorder %v2130, 0.0
        %vm2195 = vcmp.ge.f32.partialorder %v2131, 0.0
        %vm2196 = vcmp.ge.f32.partialorder %v2132, 0.0
        %vm2197 = vcmp.ge.f32.partialorder %v2133, 0.0
        %vm2198 = vcmp.ge.f32.partialorder %v2134, 0.0
        %vm2199 = vcmp.ge.f32.partialorder %v2135, 0.0
        %vm2200 = vcmp.ge.f32.partialorder %v2136, 0.0
        %vm2201 = vcmp.ge.f32.partialorder %v2137, 0.0
        %vm2202 = vcmp.ge.f32.partialorder %v2138, 0.0
        %vm2203 = vcmp.ge.f32.partialorder %v2139, 0.0
        %vm2204 = vcmp.ge.f32.partialorder %v2140, 0.0
        %vm2205 = vcmp.ge.f32.partialorder %v2141, 0.0
        %vm2206 = vcmp.ge.f32.partialorder %v2142, 0.0
        %vm2207 = vcmp.ge.f32.partialorder %v2143, 0.0
        %vm2208 = vcmp.ge.f32.partialorder %v2144, 0.0
        %vm2209 = vcmp.ge.f32.partialorder %v2145, 0.0
        %vm2210 = vcmp.ge.f32.partialorder %v2146, 0.0
        %vm2211 = vcmp.ge.f32.partialorder %v2147, 0.0
        %vm2212 = vcmp.ge.f32.partialorder %v2148, 0.0
        %vm2213 = vcmp.ge.f32.partialorder %v2149, 0.0
        %vm2214 = vcmp.ge.f32.partialorder %v2150, 0.0
        %vm2215 = vcmp.ge.f32.partialorder %v2151, 0.0
        %vm2216 = vcmp.ge.f32.partialorder %v2152, 0.0
        %vm2217 = vcmp.ge.f32.partialorder %v2153, 0.0
        %vm2218 = vcmp.ge.f32.partialorder %v2154, 0.0
        %vm2219 = vcmp.ge.f32.partialorder %v2155, 0.0
        %vm2220 = vcmp.ge.f32.partialorder %v2156, 0.0
        %vm2221 = vcmp.ge.f32.partialorder %v2157, 0.0
        %vm2222 = vcmp.ge.f32.partialorder %v2158, 0.0
        %vm2223 = vcmp.ge.f32.partialorder %v2159, 0.0
        %vm2224 = vcmp.ge.f32.partialorder %v2160, 0.0
        %vm2225 = vcmp.ge.f32.partialorder %v2161, 0.0
        %vm2226 = vcmp.ge.f32.partialorder %v2162, 0.0
        %vm2227 = vcmp.ge.f32.partialorder %v2163, 0.0
        %vm2228 = vcmp.ge.f32.partialorder %v2164, 0.0
        %vm2229 = vcmp.ge.f32.partialorder %v2165, 0.0
        %vm2230 = vcmp.ge.f32.partialorder %v2166, 0.0
        %vm2231 = vcmp.ge.f32.partialorder %v2167, 0.0
        %vm2232 = vcmp.ge.f32.partialorder %v2168, 0.0
        %vm2233 = vcmp.ge.f32.partialorder %v2169, 0.0
        %vm2234 = vcmp.ge.f32.partialorder %v2170, 0.0
        %vm2235 = vcmp.ge.f32.partialorder %v2171, 0.0
        %vm2236 = vcmp.ge.f32.partialorder %v2172, 0.0
        %vm2237 = vcmp.ge.f32.partialorder %v2173, 0.0
        %vm2238 = vcmp.ge.f32.partialorder %v2174, 0.0
        %vm2239 = vcmp.ge.f32.partialorder %v2175, 0.0
        %vm2240 = vcmp.ge.f32.partialorder %v2176, 0.0
        %vm2241 = vcmp.ge.f32.partialorder %v2177, 0.0
        %vm2242 = vcmp.ge.f32.partialorder %v2178, 0.0
        %vm2243 = vcmp.ge.f32.partialorder %v2179, 0.0
        %vm2244 = vcmp.ge.f32.partialorder %v2180, 0.0
        %vm2245 = vcmp.ge.f32.partialorder %v2181, 0.0
        %vm2246 = vcmp.ge.f32.partialorder %v2182, 0.0
        %vm2247 = vcmp.ge.f32.partialorder %v2183, 0.0
        %vm2248 = vcmp.ge.f32.partialorder %v2184, 0.0
        %vm2249 = vcmp.ge.f32.partialorder %v2185, 0.0
        %vm2250 = vcmp.ge.f32.partialorder %v2186, 0.0
        %vm2251 = vcmp.ge.f32.partialorder %v2187, 0.0
        %vm2252 = vcmp.ge.f32.partialorder %v2188, 0.0
        %vm2253 = vcmp.ge.f32.partialorder %v2189, 0.0
        %vm2254 = vcmp.ge.f32.partialorder %v2190, 0.0
        %vm2255 = vcmp.ge.f32.partialorder %v2191, 0.0
        %v2256 = vmul.f32 %v2128, 0.01
        %v2257 = vmul.f32 %v2129, 0.01
        %v2258 = vmul.f32 %v2130, 0.01
        %v2259 = vmul.f32 %v2131, 0.01
        %v2260 = vmul.f32 %v2132, 0.01
        %v2261 = vmul.f32 %v2133, 0.01
        %v2262 = vmul.f32 %v2134, 0.01
        %v2263 = vmul.f32 %v2135, 0.01
        %v2264 = vmul.f32 %v2136, 0.01
        %v2265 = vmul.f32 %v2137, 0.01
        %v2266 = vmul.f32 %v2138, 0.01
        %v2267 = vmul.f32 %v2139, 0.01
        %v2268 = vmul.f32 %v2140, 0.01
        %v2269 = vmul.f32 %v2141, 0.01
        %v2270 = vmul.f32 %v2142, 0.01
        %v2271 = vmul.f32 %v2143, 0.01
        %v2272 = vmul.f32 %v2144, 0.01
        %v2273 = vmul.f32 %v2145, 0.01
        %v2274 = vmul.f32 %v2146, 0.01
        %v2275 = vmul.f32 %v2147, 0.01
        %v2276 = vmul.f32 %v2148, 0.01
        %v2277 = vmul.f32 %v2149, 0.01
        %v2278 = vmul.f32 %v2150, 0.01
        %v2279 = vmul.f32 %v2151, 0.01
        %v2280 = vmul.f32 %v2152, 0.01
        %v2281 = vmul.f32 %v2153, 0.01
        %v2282 = vmul.f32 %v2154, 0.01
        %v2283 = vmul.f32 %v2155, 0.01
        %v2284 = vmul.f32 %v2156, 0.01
        %v2285 = vmul.f32 %v2157, 0.01
        %v2286 = vmul.f32 %v2158, 0.01
        %v2287 = vmul.f32 %v2159, 0.01
        %v2288 = vmul.f32 %v2160, 0.01
        %v2289 = vmul.f32 %v2161, 0.01
        %v2290 = vmul.f32 %v2162, 0.01
        %v2291 = vmul.f32 %v2163, 0.01
        %v2292 = vmul.f32 %v2164, 0.01
        %v2293 = vmul.f32 %v2165, 0.01
        %v2294 = vmul.f32 %v2166, 0.01
        %v2295 = vmul.f32 %v2167, 0.01
        %v2296 = vmul.f32 %v2168, 0.01
        %v2297 = vmul.f32 %v2169, 0.01
        %v2298 = vmul.f32 %v2170, 0.01
        %v2299 = vmul.f32 %v2171, 0.01
        %v2300 = vmul.f32 %v2172, 0.01
        %v2301 = vmul.f32 %v2173, 0.01
        %v2302 = vmul.f32 %v2174, 0.01
        %v2303 = vmul.f32 %v2175, 0.01
        %v2304 = vmul.f32 %v2176, 0.01
        %v2305 = vmul.f32 %v2177, 0.01
        %v2306 = vmul.f32 %v2178, 0.01
        %v2307 = vmul.f32 %v2179, 0.01
        %v2308 = vmul.f32 %v2180, 0.01
        %v2309 = vmul.f32 %v2181, 0.01
        %v2310 = vmul.f32 %v2182, 0.01
        %v2311 = vmul.f32 %v2183, 0.01
        %v2312 = vmul.f32 %v2184, 0.01
        %v2313 = vmul.f32 %v2185, 0.01
        %v2314 = vmul.f32 %v2186, 0.01
        %v2315 = vmul.f32 %v2187, 0.01
        %v2316 = vmul.f32 %v2188, 0.01
        %v2317 = vmul.f32 %v2189, 0.01
        %v2318 = vmul.f32 %v2190, 0.01
        %v2319 = vmul.f32 %v2191, 0.01
        %v2320 = vsel %vm2192, %v2128, %v2256
        %v2321 = vsel %vm2193, %v2129, %v2257
        %v2322 = vsel %vm2194, %v2130, %v2258
        %v2323 = vsel %vm2195, %v2131, %v2259
        %v2324 = vsel %vm2196, %v2132, %v2260
        %v2325 = vsel %vm2197, %v2133, %v2261
        %v2326 = vsel %vm2198, %v2134, %v2262
        %v2327 = vsel %vm2199, %v2135, %v2263
        %v2328 = vsel %vm2200, %v2136, %v2264
        %v2329 = vsel %vm2201, %v2137, %v2265
        %v2330 = vsel %vm2202, %v2138, %v2266
        %v2331 = vsel %vm2203, %v2139, %v2267
        %v2332 = vsel %vm2204, %v2140, %v2268
        %v2333 = vsel %vm2205, %v2141, %v2269
        %v2334 = vsel %vm2206, %v2142, %v2270
        %v2335 = vsel %vm2207, %v2143, %v2271
        %v2336 = vsel %vm2208, %v2144, %v2272
        %v2337 = vsel %vm2209, %v2145, %v2273
        %v2338 = vsel %vm2210, %v2146, %v2274
        %v2339 = vsel %vm2211, %v2147, %v2275
        %v2340 = vsel %vm2212, %v2148, %v2276
        %v2341 = vsel %vm2213, %v2149, %v2277
        %v2342 = vsel %vm2214, %v2150, %v2278
        %v2343 = vsel %vm2215, %v2151, %v2279
        %v2344 = vsel %vm2216, %v2152, %v2280
        %v2345 = vsel %vm2217, %v2153, %v2281
        %v2346 = vsel %vm2218, %v2154, %v2282
        %v2347 = vsel %vm2219, %v2155, %v2283
        %v2348 = vsel %vm2220, %v2156, %v2284
        %v2349 = vsel %vm2221, %v2157, %v2285
        %v2350 = vsel %vm2222, %v2158, %v2286
        %v2351 = vsel %vm2223, %v2159, %v2287
        %v2352 = vsel %vm2224, %v2160, %v2288
        %v2353 = vsel %vm2225, %v2161, %v2289
        %v2354 = vsel %vm2226, %v2162, %v2290
        %v2355 = vsel %vm2227, %v2163, %v2291
        %v2356 = vsel %vm2228, %v2164, %v2292
        %v2357 = vsel %vm2229, %v2165, %v2293
        %v2358 = vsel %vm2230, %v2166, %v2294
        %v2359 = vsel %vm2231, %v2167, %v2295
        %v2360 = vsel %vm2232, %v2168, %v2296
        %v2361 = vsel %vm2233, %v2169, %v2297
        %v2362 = vsel %vm2234, %v2170, %v2298
        %v2363 = vsel %vm2235, %v2171, %v2299
        %v2364 = vsel %vm2236, %v2172, %v2300
        %v2365 = vsel %vm2237, %v2173, %v2301
        %v2366 = vsel %vm2238, %v2174, %v2302
        %v2367 = vsel %vm2239, %v2175, %v2303
        %v2368 = vsel %vm2240, %v2176, %v2304
        %v2369 = vsel %vm2241, %v2177, %v2305
        %v2370 = vsel %vm2242, %v2178, %v2306
        %v2371 = vsel %vm2243, %v2179, %v2307
        %v2372 = vsel %vm2244, %v2180, %v2308
        %v2373 = vsel %vm2245, %v2181, %v2309
        %v2374 = vsel %vm2246, %v2182, %v2310
        %v2375 = vsel %vm2247, %v2183, %v2311
        %v2376 = vsel %vm2248, %v2184, %v2312
        %v2377 = vsel %vm2249, %v2185, %v2313
        %v2378 = vsel %vm2250, %v2186, %v2314
        %v2379 = vsel %vm2251, %v2187, %v2315
        %v2380 = vsel %vm2252, %v2188, %v2316
        %v2381 = vsel %vm2253, %v2189, %v2317
        %v2382 = vsel %vm2254, %v2190, %v2318
        %v2383 = vsel %vm2255, %v2191, %v2319
        %v2384 = vpack.c.bf16 %v2322, %v2320
        %v2385 = vpack.c.bf16 %v2323, %v2321
        %v2386 = vpack.c.bf16 %v2326, %v2324
        %v2387 = vpack.c.bf16 %v2327, %v2325
        %v2388 = vpack.c.bf16 %v2330, %v2328
        %v2389 = vpack.c.bf16 %v2331, %v2329
        %v2390 = vpack.c.bf16 %v2334, %v2332
        %v2391 = vpack.c.bf16 %v2335, %v2333
        %v2392 = vpack.c.bf16 %v2338, %v2336
        %v2393 = vpack.c.bf16 %v2339, %v2337
        %v2394 = vpack.c.bf16 %v2342, %v2340
        %v2395 = vpack.c.bf16 %v2343, %v2341
        %v2396 = vpack.c.bf16 %v2346, %v2344
        %v2397 = vpack.c.bf16 %v2347, %v2345
        %v2398 = vpack.c.bf16 %v2350, %v2348
        %v2399 = vpack.c.bf16 %v2351, %v2349
        %v2400 = vpack.c.bf16 %v2354, %v2352
        %v2401 = vpack.c.bf16 %v2355, %v2353
        %v2402 = vpack.c.bf16 %v2358, %v2356
        %v2403 = vpack.c.bf16 %v2359, %v2357
        %v2404 = vpack.c.bf16 %v2362, %v2360
        %v2405 = vpack.c.bf16 %v2363, %v2361
        %v2406 = vpack.c.bf16 %v2366, %v2364
        %v2407 = vpack.c.bf16 %v2367, %v2365
        %v2408 = vpack.c.bf16 %v2370, %v2368
        %v2409 = vpack.c.bf16 %v2371, %v2369
        %v2410 = vpack.c.bf16 %v2374, %v2372
        %v2411 = vpack.c.bf16 %v2375, %v2373
        %v2412 = vpack.c.bf16 %v2378, %v2376
        %v2413 = vpack.c.bf16 %v2379, %v2377
        %v2414 = vpack.c.bf16 %v2382, %v2380
        %v2415 = vpack.c.bf16 %v2383, %v2381
        %v2416 = vld [vmem:[%s8] sm:$0xff]
        %v2417 = vld [vmem:[%s8 + $0x8] sm:$0xff]
        %v2418 = vld [vmem:[%s8 + $0x10] sm:$0xff]
        %v2419 = vld [vmem:[%s8 + $0x18] sm:$0xff]
        %v2420 = vld [vmem:[%s8 + $0x20] sm:$0xff]
        %v2421 = vld [vmem:[%s8 + $0x28] sm:$0xff]
        %v2422 = vld [vmem:[%s8 + $0x30] sm:$0xff]
        %v2423 = vld [vmem:[%s8 + $0x38] sm:$0xff]
        %v2424 = vld [vmem:[%s8 + $0x40] sm:$0xff]
        %v2425 = vld [vmem:[%s8 + $0x48] sm:$0xff]
        %v2426 = vld [vmem:[%s8 + $0x50] sm:$0xff]
        %v2427 = vld [vmem:[%s8 + $0x58] sm:$0xff]
        %v2428 = vld [vmem:[%s8 + $0x60] sm:$0xff]
        %v2429 = vld [vmem:[%s8 + $0x68] sm:$0xff]
        %v2430 = vld [vmem:[%s8 + $0x70] sm:$0xff]
        %v2431 = vld [vmem:[%s8 + $0x78] sm:$0xff]
        %v2432 = vld [vmem:[%s8 + $0x80] sm:$0xff]
        %v2433 = vld [vmem:[%s8 + $0x88] sm:$0xff]
        %v2434 = vld [vmem:[%s8 + $0x90] sm:$0xff]
        %v2435 = vld [vmem:[%s8 + $0x98] sm:$0xff]
        %v2436 = vld [vmem:[%s8 + $0xa0] sm:$0xff]
        %v2437 = vld [vmem:[%s8 + $0xa8] sm:$0xff]
        %v2438 = vld [vmem:[%s8 + $0xb0] sm:$0xff]
        %v2439 = vld [vmem:[%s8 + $0xb8] sm:$0xff]
        %v2440 = vld [vmem:[%s8 + $0xc0] sm:$0xff]
        %v2441 = vld [vmem:[%s8 + $0xc8] sm:$0xff]
        %v2442 = vld [vmem:[%s8 + $0xd0] sm:$0xff]
        %v2443 = vld [vmem:[%s8 + $0xd8] sm:$0xff]
        %v2444 = vld [vmem:[%s8 + $0xe0] sm:$0xff]
        %v2445 = vld [vmem:[%s8 + $0xe8] sm:$0xff]
        %v2446 = vld [vmem:[%s8 + $0xf0] sm:$0xff]
        %v2447 = vld [vmem:[%s8 + $0xf8] sm:$0xff]
        %v2448 = vld [vmem:[%s9] sm:$0x3]
        %v2450 = vperm.slane %v2448, 0
        %v2451 = vperm.slane %v2448, 1
        %v2486 = vunpack.c.l.b16 %v2416
        %v2487 = vunpack.c.h.b16 %v2416
        %v2488 = vunpack.c.l.b16 %v2417
        %v2489 = vunpack.c.h.b16 %v2417
        %v2490 = vunpack.c.l.b16 %v2418
        %v2491 = vunpack.c.h.b16 %v2418
        %v2492 = vunpack.c.l.b16 %v2419
        %v2493 = vunpack.c.h.b16 %v2419
        %v2494 = vunpack.c.l.b16 %v2420
        %v2495 = vunpack.c.h.b16 %v2420
        %v2496 = vunpack.c.l.b16 %v2421
        %v2497 = vunpack.c.h.b16 %v2421
        %v2498 = vunpack.c.l.b16 %v2422
        %v2499 = vunpack.c.h.b16 %v2422
        %v2500 = vunpack.c.l.b16 %v2423
        %v2501 = vunpack.c.h.b16 %v2423
        %v2502 = vunpack.c.l.b16 %v2424
        %v2503 = vunpack.c.h.b16 %v2424
        %v2504 = vunpack.c.l.b16 %v2425
        %v2505 = vunpack.c.h.b16 %v2425
        %v2506 = vunpack.c.l.b16 %v2426
        %v2507 = vunpack.c.h.b16 %v2426
        %v2508 = vunpack.c.l.b16 %v2427
        %v2509 = vunpack.c.h.b16 %v2427
        %v2510 = vunpack.c.l.b16 %v2428
        %v2511 = vunpack.c.h.b16 %v2428
        %v2512 = vunpack.c.l.b16 %v2429
        %v2513 = vunpack.c.h.b16 %v2429
        %v2514 = vunpack.c.l.b16 %v2430
        %v2515 = vunpack.c.h.b16 %v2430
        %v2516 = vunpack.c.l.b16 %v2431
        %v2517 = vunpack.c.h.b16 %v2431
        %v2518 = vunpack.c.l.b16 %v2432
        %v2519 = vunpack.c.h.b16 %v2432
        %v2520 = vunpack.c.l.b16 %v2433
        %v2521 = vunpack.c.h.b16 %v2433
        %v2522 = vunpack.c.l.b16 %v2434
        %v2523 = vunpack.c.h.b16 %v2434
        %v2524 = vunpack.c.l.b16 %v2435
        %v2525 = vunpack.c.h.b16 %v2435
        %v2526 = vunpack.c.l.b16 %v2436
        %v2527 = vunpack.c.h.b16 %v2436
        %v2528 = vunpack.c.l.b16 %v2437
        %v2529 = vunpack.c.h.b16 %v2437
        %v2530 = vunpack.c.l.b16 %v2438
        %v2531 = vunpack.c.h.b16 %v2438
        %v2532 = vunpack.c.l.b16 %v2439
        %v2533 = vunpack.c.h.b16 %v2439
        %v2534 = vunpack.c.l.b16 %v2440
        %v2535 = vunpack.c.h.b16 %v2440
        %v2536 = vunpack.c.l.b16 %v2441
        %v2537 = vunpack.c.h.b16 %v2441
        %v2538 = vunpack.c.l.b16 %v2442
        %v2539 = vunpack.c.h.b16 %v2442
        %v2540 = vunpack.c.l.b16 %v2443
        %v2541 = vunpack.c.h.b16 %v2443
        %v2542 = vunpack.c.l.b16 %v2444
        %v2543 = vunpack.c.h.b16 %v2444
        %v2544 = vunpack.c.l.b16 %v2445
        %v2545 = vunpack.c.h.b16 %v2445
        %v2546 = vunpack.c.l.b16 %v2446
        %v2547 = vunpack.c.h.b16 %v2446
        %v2548 = vunpack.c.l.b16 %v2447
        %v2549 = vunpack.c.h.b16 %v2447
        %v2550 = vpack.c.b16 %v2488, %v2486
        %v2551 = vpack.c.b16 %v2489, %v2487
        %v2552 = vpack.c.b16 %v2492, %v2490
        %v2553 = vpack.c.b16 %v2493, %v2491
        %v2554 = vpack.c.b16 %v2496, %v2494
        %v2555 = vpack.c.b16 %v2497, %v2495
        %v2556 = vpack.c.b16 %v2500, %v2498
        %v2557 = vpack.c.b16 %v2501, %v2499
        %v2558 = vpack.c.b16 %v2504, %v2502
        %v2559 = vpack.c.b16 %v2505, %v2503
        %v2560 = vpack.c.b16 %v2508, %v2506
        %v2561 = vpack.c.b16 %v2509, %v2507
        %v2562 = vpack.c.b16 %v2512, %v2510
        %v2563 = vpack.c.b16 %v2513, %v2511
        %v2564 = vpack.c.b16 %v2516, %v2514
        %v2565 = vpack.c.b16 %v2517, %v2515
        %v2566 = vpack.c.b16 %v2520, %v2518
        %v2567 = vpack.c.b16 %v2521, %v2519
        %v2568 = vpack.c.b16 %v2524, %v2522
        %v2569 = vpack.c.b16 %v2525, %v2523
        %v2570 = vpack.c.b16 %v2528, %v2526
        %v2571 = vpack.c.b16 %v2529, %v2527
        %v2572 = vpack.c.b16 %v2532, %v2530
        %v2573 = vpack.c.b16 %v2533, %v2531
        %v2574 = vpack.c.b16 %v2536, %v2534
        %v2575 = vpack.c.b16 %v2537, %v2535
        %v2576 = vpack.c.b16 %v2540, %v2538
        %v2577 = vpack.c.b16 %v2541, %v2539
        %v2578 = vpack.c.b16 %v2544, %v2542
        %v2579 = vpack.c.b16 %v2545, %v2543
        %v2580 = vpack.c.b16 %v2548, %v2546
        %v2581 = vpack.c.b16 %v2549, %v2547
        %2614 = vmatpush.bf16.msra.mxu0 %v2564
        %2615 = vmatpush.bf16.msra.mxu0 %v2562
        %2616 = vmatpush.bf16.msra.mxu0 %v2560
        %2617 = vmatpush.bf16.msra.mxu0 %v2558
        %2618 = vmatpush.bf16.msra.mxu0 %v2556
        %2619 = vmatpush.bf16.msra.mxu0 %v2554
        %2620 = vmatpush.bf16.msra.mxu0 %v2552
        %2621 = vmatpush.bf16.msra.mxu0 %v2550
        %2622 = vmatmul.bf16.gmra.mxu0 %v2384
        %v2623 = vpop.f32.mrf.mxu0
        %v2624 = vadd.f32 %v2450, %v2623
        %v2625 = vpop.f32.mrf.mxu0
        %v2626 = vadd.f32 %v2450, %v2625
        %2627 = vmatmul.bf16.gmra.mxu0 %v2386
        %v2628 = vpop.f32.mrf.mxu0
        %v2629 = vadd.f32 %v2450, %v2628
        %v2630 = vpop.f32.mrf.mxu0
        %v2631 = vadd.f32 %v2450, %v2630
        %2632 = vmatmul.bf16.gmra.mxu0 %v2388
        %v2633 = vpop.f32.mrf.mxu0
        %v2634 = vadd.f32 %v2450, %v2633
        %v2635 = vpop.f32.mrf.mxu0
        %v2636 = vadd.f32 %v2450, %v2635
        %2637 = vmatmul.bf16.gmra.mxu0 %v2390
        %v2638 = vpop.f32.mrf.mxu0
        %v2639 = vadd.f32 %v2450, %v2638
        %v2640 = vpop.f32.mrf.mxu0
        %v2641 = vadd.f32 %v2450, %v2640
        %2642 = vmatmul.bf16.gmra.mxu0 %v2392
        %v2643 = vpop.f32.mrf.mxu0
        %v2644 = vadd.f32 %v2450, %v2643
        %v2645 = vpop.f32.mrf.mxu0
        %v2646 = vadd.f32 %v2450, %v2645
        %2647 = vmatmul.bf16.gmra.mxu0 %v2394
        %v2648 = vpop.f32.mrf.mxu0
        %v2649 = vadd.f32 %v2450, %v2648
        %v2650 = vpop.f32.mrf.mxu0
        %v2651 = vadd.f32 %v2450, %v2650
        %2652 = vmatmul.bf16.gmra.mxu0 %v2396
        %v2653 = vpop.f32.mrf.mxu0
        %v2654 = vadd.f32 %v2450, %v2653
        %v2655 = vpop.f32.mrf.mxu0
        %v2656 = vadd.f32 %v2450, %v2655
        %2657 = vmatmul.bf16.gmra.mxu0 %v2398
        %v2658 = vpop.f32.mrf.mxu0
        %v2659 = vadd.f32 %v2450, %v2658
        %v2660 = vpop.f32.mrf.mxu0
        %v2661 = vadd.f32 %v2450, %v2660
        %2662 = vmatmul.bf16.gmra.mxu0 %v2400
        %v2663 = vpop.f32.mrf.mxu0
        %v2664 = vadd.f32 %v2450, %v2663
        %v2665 = vpop.f32.mrf.mxu0
        %v2666 = vadd.f32 %v2450, %v2665
        %2667 = vmatmul.bf16.gmra.mxu0 %v2402
        %v2668 = vpop.f32.mrf.mxu0
        %v2669 = vadd.f32 %v2450, %v2668
        %v2670 = vpop.f32.mrf.mxu0
        %v2671 = vadd.f32 %v2450, %v2670
        %2672 = vmatmul.bf16.gmra.mxu0 %v2404
        %v2673 = vpop.f32.mrf.mxu0
        %v2674 = vadd.f32 %v2450, %v2673
        %v2675 = vpop.f32.mrf.mxu0
        %v2676 = vadd.f32 %v2450, %v2675
        %2677 = vmatmul.bf16.gmra.mxu0 %v2406
        %v2678 = vpop.f32.mrf.mxu0
        %v2679 = vadd.f32 %v2450, %v2678
        %v2680 = vpop.f32.mrf.mxu0
        %v2681 = vadd.f32 %v2450, %v2680
        %2682 = vmatmul.bf16.gmra.mxu0 %v2408
        %v2683 = vpop.f32.mrf.mxu0
        %v2684 = vadd.f32 %v2450, %v2683
        %v2685 = vpop.f32.mrf.mxu0
        %v2686 = vadd.f32 %v2450, %v2685
        %2687 = vmatmul.bf16.gmra.mxu0 %v2410
        %v2688 = vpop.f32.mrf.mxu0
        %v2689 = vadd.f32 %v2450, %v2688
        %v2690 = vpop.f32.mrf.mxu0
        %v2691 = vadd.f32 %v2450, %v2690
        %2692 = vmatmul.bf16.gmra.mxu0 %v2412
        %v2693 = vpop.f32.mrf.mxu0
        %v2694 = vadd.f32 %v2450, %v2693
        %v2695 = vpop.f32.mrf.mxu0
        %v2696 = vadd.f32 %v2450, %v2695
        %2697 = vmatmul.bf16.gmra.mxu0 %v2414
        %v2698 = vpop.f32.mrf.mxu0
        %v2699 = vadd.f32 %v2450, %v2698
        %v2700 = vpop.f32.mrf.mxu0
        %v2701 = vadd.f32 %v2450, %v2700
        %2702 = vdwg.mxu0
        %2703 = vmatpush.bf16.msra.mxu0 %v2580
        %2704 = vmatpush.bf16.msra.mxu0 %v2578
        %2705 = vmatpush.bf16.msra.mxu0 %v2576
        %2706 = vmatpush.bf16.msra.mxu0 %v2574
        %2707 = vmatpush.bf16.msra.mxu0 %v2572
        %2708 = vmatpush.bf16.msra.mxu0 %v2570
        %2709 = vmatpush.bf16.msra.mxu0 %v2568
        %2710 = vmatpush.bf16.msra.mxu0 %v2566
        %2711 = vmatmul.bf16.gmra.mxu0 %v2385
        %v2712 = vpop.f32.mrf.mxu0
        %v2713 = vadd.f32 %v2624, %v2712
        %v2714 = vpop.f32.mrf.mxu0
        %v2715 = vadd.f32 %v2626, %v2714
        %2716 = vmatmul.bf16.gmra.mxu0 %v2387
        %v2717 = vpop.f32.mrf.mxu0
        %v2718 = vadd.f32 %v2629, %v2717
        %v2719 = vpop.f32.mrf.mxu0
        %v2720 = vadd.f32 %v2631, %v2719
        %2721 = vmatmul.bf16.gmra.mxu0 %v2389
        %v2722 = vpop.f32.mrf.mxu0
        %v2723 = vadd.f32 %v2634, %v2722
        %v2724 = vpop.f32.mrf.mxu0
        %v2725 = vadd.f32 %v2636, %v2724
        %2726 = vmatmul.bf16.gmra.mxu0 %v2391
        %v2727 = vpop.f32.mrf.mxu0
        %v2728 = vadd.f32 %v2639, %v2727
        %v2729 = vpop.f32.mrf.mxu0
        %v2730 = vadd.f32 %v2641, %v2729
        %2731 = vmatmul.bf16.gmra.mxu0 %v2393
        %v2732 = vpop.f32.mrf.mxu0
        %v2733 = vadd.f32 %v2644, %v2732
        %v2734 = vpop.f32.mrf.mxu0
        %v2735 = vadd.f32 %v2646, %v2734
        %2736 = vmatmul.bf16.gmra.mxu0 %v2395
        %v2737 = vpop.f32.mrf.mxu0
        %v2738 = vadd.f32 %v2649, %v2737
        %v2739 = vpop.f32.mrf.mxu0
        %v2740 = vadd.f32 %v2651, %v2739
        %2741 = vmatmul.bf16.gmra.mxu0 %v2397
        %v2742 = vpop.f32.mrf.mxu0
        %v2743 = vadd.f32 %v2654, %v2742
        %v2744 = vpop.f32.mrf.mxu0
        %v2745 = vadd.f32 %v2656, %v2744
        %2746 = vmatmul.bf16.gmra.mxu0 %v2399
        %v2747 = vpop.f32.mrf.mxu0
        %v2748 = vadd.f32 %v2659, %v2747
        %v2749 = vpop.f32.mrf.mxu0
        %v2750 = vadd.f32 %v2661, %v2749
        %2751 = vmatmul.bf16.gmra.mxu0 %v2401
        %v2752 = vpop.f32.mrf.mxu0
        %v2753 = vadd.f32 %v2664, %v2752
        %v2754 = vpop.f32.mrf.mxu0
        %v2755 = vadd.f32 %v2666, %v2754
        %2756 = vmatmul.bf16.gmra.mxu0 %v2403
        %v2757 = vpop.f32.mrf.mxu0
        %v2758 = vadd.f32 %v2669, %v2757
        %v2759 = vpop.f32.mrf.mxu0
        %v2760 = vadd.f32 %v2671, %v2759
        %2761 = vmatmul.bf16.gmra.mxu0 %v2405
        %v2762 = vpop.f32.mrf.mxu0
        %v2763 = vadd.f32 %v2674, %v2762
        %v2764 = vpop.f32.mrf.mxu0
        %v2765 = vadd.f32 %v2676, %v2764
        %2766 = vmatmul.bf16.gmra.mxu0 %v2407
        %v2767 = vpop.f32.mrf.mxu0
        %v2768 = vadd.f32 %v2679, %v2767
        %v2769 = vpop.f32.mrf.mxu0
        %v2770 = vadd.f32 %v2681, %v2769
        %2771 = vmatmul.bf16.gmra.mxu0 %v2409
        %v2772 = vpop.f32.mrf.mxu0
        %v2773 = vadd.f32 %v2684, %v2772
        %v2774 = vpop.f32.mrf.mxu0
        %v2775 = vadd.f32 %v2686, %v2774
        %2776 = vmatmul.bf16.gmra.mxu0 %v2411
        %v2777 = vpop.f32.mrf.mxu0
        %v2778 = vadd.f32 %v2689, %v2777
        %v2779 = vpop.f32.mrf.mxu0
        %v2780 = vadd.f32 %v2691, %v2779
        %2781 = vmatmul.bf16.gmra.mxu0 %v2413
        %v2782 = vpop.f32.mrf.mxu0
        %v2783 = vadd.f32 %v2694, %v2782
        %v2784 = vpop.f32.mrf.mxu0
        %v2785 = vadd.f32 %v2696, %v2784
        %2786 = vmatmul.bf16.gmra.mxu0 %v2415
        %v2787 = vpop.f32.mrf.mxu0
        %v2788 = vadd.f32 %v2699, %v2787
        %v2789 = vpop.f32.mrf.mxu0
        %v2790 = vadd.f32 %v2701, %v2789
        %2791 = vdwg.mxu0
        %2792 = vmatpush.bf16.msra.mxu0 %v2565
        %2793 = vmatpush.bf16.msra.mxu0 %v2563
        %2794 = vmatpush.bf16.msra.mxu0 %v2561
        %2795 = vmatpush.bf16.msra.mxu0 %v2559
        %2796 = vmatpush.bf16.msra.mxu0 %v2557
        %2797 = vmatpush.bf16.msra.mxu0 %v2555
        %2798 = vmatpush.bf16.msra.mxu0 %v2553
        %2799 = vmatpush.bf16.msra.mxu0 %v2551
        %2800 = vmatmul.bf16.gmra.mxu0 %v2384
        %v2801 = vpop.f32.mrf.mxu0
        %v2802 = vadd.f32 %v2451, %v2801
        %v2803 = vpop.f32.mrf.mxu0
        %v2804 = vadd.f32 %v2451, %v2803
        %2805 = vmatmul.bf16.gmra.mxu0 %v2386
        %v2806 = vpop.f32.mrf.mxu0
        %v2807 = vadd.f32 %v2451, %v2806
        %v2808 = vpop.f32.mrf.mxu0
        %v2809 = vadd.f32 %v2451, %v2808
        %2810 = vmatmul.bf16.gmra.mxu0 %v2388
        %v2811 = vpop.f32.mrf.mxu0
        %v2812 = vadd.f32 %v2451, %v2811
        %v2813 = vpop.f32.mrf.mxu0
        %v2814 = vadd.f32 %v2451, %v2813
        %2815 = vmatmul.bf16.gmra.mxu0 %v2390
        %v2816 = vpop.f32.mrf.mxu0
        %v2817 = vadd.f32 %v2451, %v2816
        %v2818 = vpop.f32.mrf.mxu0
        %v2819 = vadd.f32 %v2451, %v2818
        %2820 = vmatmul.bf16.gmra.mxu0 %v2392
        %v2821 = vpop.f32.mrf.mxu0
        %v2822 = vadd.f32 %v2451, %v2821
        %v2823 = vpop.f32.mrf.mxu0
        %v2824 = vadd.f32 %v2451, %v2823
        %2825 = vmatmul.bf16.gmra.mxu0 %v2394
        %v2826 = vpop.f32.mrf.mxu0
        %v2827 = vadd.f32 %v2451, %v2826
        %v2828 = vpop.f32.mrf.mxu0
        %v2829 = vadd.f32 %v2451, %v2828
        %2830 = vmatmul.bf16.gmra.mxu0 %v2396
        %v2831 = vpop.f32.mrf.mxu0
        %v2832 = vadd.f32 %v2451, %v2831
        %v2833 = vpop.f32.mrf.mxu0
        %v2834 = vadd.f32 %v2451, %v2833
        %2835 = vmatmul.bf16.gmra.mxu0 %v2398
        %v2836 = vpop.f32.mrf.mxu0
        %v2837 = vadd.f32 %v2451, %v2836
        %v2838 = vpop.f32.mrf.mxu0
        %v2839 = vadd.f32 %v2451, %v2838
        %2840 = vmatmul.bf16.gmra.mxu0 %v2400
        %v2841 = vpop.f32.mrf.mxu0
        %v2842 = vadd.f32 %v2451, %v2841
        %v2843 = vpop.f32.mrf.mxu0
        %v2844 = vadd.f32 %v2451, %v2843
        %2845 = vmatmul.bf16.gmra.mxu0 %v2402
        %v2846 = vpop.f32.mrf.mxu0
        %v2847 = vadd.f32 %v2451, %v2846
        %v2848 = vpop.f32.mrf.mxu0
        %v2849 = vadd.f32 %v2451, %v2848
        %2850 = vmatmul.bf16.gmra.mxu0 %v2404
        %v2851 = vpop.f32.mrf.mxu0
        %v2852 = vadd.f32 %v2451, %v2851
        %v2853 = vpop.f32.mrf.mxu0
        %v2854 = vadd.f32 %v2451, %v2853
        %2855 = vmatmul.bf16.gmra.mxu0 %v2406
        %v2856 = vpop.f32.mrf.mxu0
        %v2857 = vadd.f32 %v2451, %v2856
        %v2858 = vpop.f32.mrf.mxu0
        %v2859 = vadd.f32 %v2451, %v2858
        %2860 = vmatmul.bf16.gmra.mxu0 %v2408
        %v2861 = vpop.f32.mrf.mxu0
        %v2862 = vadd.f32 %v2451, %v2861
        %v2863 = vpop.f32.mrf.mxu0
        %v2864 = vadd.f32 %v2451, %v2863
        %2865 = vmatmul.bf16.gmra.mxu0 %v2410
        %v2866 = vpop.f32.mrf.mxu0
        %v2867 = vadd.f32 %v2451, %v2866
        %v2868 = vpop.f32.mrf.mxu0
        %v2869 = vadd.f32 %v2451, %v2868
        %2870 = vmatmul.bf16.gmra.mxu0 %v2412
        %v2871 = vpop.f32.mrf.mxu0
        %v2872 = vadd.f32 %v2451, %v2871
        %v2873 = vpop.f32.mrf.mxu0
        %v2874 = vadd.f32 %v2451, %v2873
        %2875 = vmatmul.bf16.gmra.mxu0 %v2414
        %v2876 = vpop.f32.mrf.mxu0
        %v2877 = vadd.f32 %v2451, %v2876
        %v2878 = vpop.f32.mrf.mxu0
        %v2879 = vadd.f32 %v2451, %v2878
        %2880 = vdwg.mxu0
        %2881 = vmatpush.bf16.msra.mxu0 %v2581
        %2882 = vmatpush.bf16.msra.mxu0 %v2579
        %2883 = vmatpush.bf16.msra.mxu0 %v2577
        %2884 = vmatpush.bf16.msra.mxu0 %v2575
        %2885 = vmatpush.bf16.msra.mxu0 %v2573
        %2886 = vmatpush.bf16.msra.mxu0 %v2571
        %2887 = vmatpush.bf16.msra.mxu0 %v2569
        %2888 = vmatpush.bf16.msra.mxu0 %v2567
        %2889 = vmatmul.bf16.gmra.mxu0 %v2385
        %v2890 = vpop.f32.mrf.mxu0
        %v2891 = vadd.f32 %v2802, %v2890
        %v2892 = vpop.f32.mrf.mxu0
        %v2893 = vadd.f32 %v2804, %v2892
        %2894 = vmatmul.bf16.gmra.mxu0 %v2387
        %v2895 = vpop.f32.mrf.mxu0
        %v2896 = vadd.f32 %v2807, %v2895
        %v2897 = vpop.f32.mrf.mxu0
        %v2898 = vadd.f32 %v2809, %v2897
        %2899 = vmatmul.bf16.gmra.mxu0 %v2389
        %v2900 = vpop.f32.mrf.mxu0
        %v2901 = vadd.f32 %v2812, %v2900
        %v2902 = vpop.f32.mrf.mxu0
        %v2903 = vadd.f32 %v2814, %v2902
        %2904 = vmatmul.bf16.gmra.mxu0 %v2391
        %v2905 = vpop.f32.mrf.mxu0
        %v2906 = vadd.f32 %v2817, %v2905
        %v2907 = vpop.f32.mrf.mxu0
        %v2908 = vadd.f32 %v2819, %v2907
        %2909 = vmatmul.bf16.gmra.mxu0 %v2393
        %v2910 = vpop.f32.mrf.mxu0
        %v2911 = vadd.f32 %v2822, %v2910
        %v2912 = vpop.f32.mrf.mxu0
        %v2913 = vadd.f32 %v2824, %v2912
        %2914 = vmatmul.bf16.gmra.mxu0 %v2395
        %v2915 = vpop.f32.mrf.mxu0
        %v2916 = vadd.f32 %v2827, %v2915
        %v2917 = vpop.f32.mrf.mxu0
        %v2918 = vadd.f32 %v2829, %v2917
        %2919 = vmatmul.bf16.gmra.mxu0 %v2397
        %v2920 = vpop.f32.mrf.mxu0
        %v2921 = vadd.f32 %v2832, %v2920
        %v2922 = vpop.f32.mrf.mxu0
        %v2923 = vadd.f32 %v2834, %v2922
        %2924 = vmatmul.bf16.gmra.mxu0 %v2399
        %v2925 = vpop.f32.mrf.mxu0
        %v2926 = vadd.f32 %v2837, %v2925
        %v2927 = vpop.f32.mrf.mxu0
        %v2928 = vadd.f32 %v2839, %v2927
        %2929 = vmatmul.bf16.gmra.mxu0 %v2401
        %v2930 = vpop.f32.mrf.mxu0
        %v2931 = vadd.f32 %v2842, %v2930
        %v2932 = vpop.f32.mrf.mxu0
        %v2933 = vadd.f32 %v2844, %v2932
        %2934 = vmatmul.bf16.gmra.mxu0 %v2403
        %v2935 = vpop.f32.mrf.mxu0
        %v2936 = vadd.f32 %v2847, %v2935
        %v2937 = vpop.f32.mrf.mxu0
        %v2938 = vadd.f32 %v2849, %v2937
        %2939 = vmatmul.bf16.gmra.mxu0 %v2405
        %v2940 = vpop.f32.mrf.mxu0
        %v2941 = vadd.f32 %v2852, %v2940
        %v2942 = vpop.f32.mrf.mxu0
        %v2943 = vadd.f32 %v2854, %v2942
        %2944 = vmatmul.bf16.gmra.mxu0 %v2407
        %v2945 = vpop.f32.mrf.mxu0
        %v2946 = vadd.f32 %v2857, %v2945
        %v2947 = vpop.f32.mrf.mxu0
        %v2948 = vadd.f32 %v2859, %v2947
        %2949 = vmatmul.bf16.gmra.mxu0 %v2409
        %v2950 = vpop.f32.mrf.mxu0
        %v2951 = vadd.f32 %v2862, %v2950
        %v2952 = vpop.f32.mrf.mxu0
        %v2953 = vadd.f32 %v2864, %v2952
        %2954 = vmatmul.bf16.gmra.mxu0 %v2411
        %v2955 = vpop.f32.mrf.mxu0
        %v2956 = vadd.f32 %v2867, %v2955
        %v2957 = vpop.f32.mrf.mxu0
        %v2958 = vadd.f32 %v2869, %v2957
        %2959 = vmatmul.bf16.gmra.mxu0 %v2413
        %v2960 = vpop.f32.mrf.mxu0
        %v2961 = vadd.f32 %v2872, %v2960
        %v2962 = vpop.f32.mrf.mxu0
        %v2963 = vadd.f32 %v2874, %v2962
        %2964 = vmatmul.bf16.gmra.mxu0 %v2415
        %v2965 = vpop.f32.mrf.mxu0
        %v2966 = vadd.f32 %v2877, %v2965
        %v2967 = vpop.f32.mrf.mxu0
        %v2968 = vadd.f32 %v2879, %v2967
        %2969 = vdwg.mxu0
        %vm2970 = vcmp.ge.f32.partialorder %v2713, 0.0
        %vm2971 = vcmp.ge.f32.partialorder %v2891, 0.0
        %vm2972 = vcmp.ge.f32.partialorder %v2715, 0.0
        %vm2973 = vcmp.ge.f32.partialorder %v2893, 0.0
        %vm2974 = vcmp.ge.f32.partialorder %v2718, 0.0
        %vm2975 = vcmp.ge.f32.partialorder %v2896, 0.0
        %vm2976 = vcmp.ge.f32.partialorder %v2720, 0.0
        %vm2977 = vcmp.ge.f32.partialorder %v2898, 0.0
        %vm2978 = vcmp.ge.f32.partialorder %v2723, 0.0
        %vm2979 = vcmp.ge.f32.partialorder %v2901, 0.0
        %vm2980 = vcmp.ge.f32.partialorder %v2725, 0.0
        %vm2981 = vcmp.ge.f32.partialorder %v2903, 0.0
        %vm2982 = vcmp.ge.f32.partialorder %v2728, 0.0
        %vm2983 = vcmp.ge.f32.partialorder %v2906, 0.0
        %vm2984 = vcmp.ge.f32.partialorder %v2730, 0.0
        %vm2985 = vcmp.ge.f32.partialorder %v2908, 0.0
        %vm2986 = vcmp.ge.f32.partialorder %v2733, 0.0
        %vm2987 = vcmp.ge.f32.partialorder %v2911, 0.0
        %vm2988 = vcmp.ge.f32.partialorder %v2735, 0.0
        %vm2989 = vcmp.ge.f32.partialorder %v2913, 0.0
        %vm2990 = vcmp.ge.f32.partialorder %v2738, 0.0
        %vm2991 = vcmp.ge.f32.partialorder %v2916, 0.0
        %vm2992 = vcmp.ge.f32.partialorder %v2740, 0.0
        %vm2993 = vcmp.ge.f32.partialorder %v2918, 0.0
        %vm2994 = vcmp.ge.f32.partialorder %v2743, 0.0
        %vm2995 = vcmp.ge.f32.partialorder %v2921, 0.0
        %vm2996 = vcmp.ge.f32.partialorder %v2745, 0.0
        %vm2997 = vcmp.ge.f32.partialorder %v2923, 0.0
        %vm2998 = vcmp.ge.f32.partialorder %v2748, 0.0
        %vm2999 = vcmp.ge.f32.partialorder %v2926, 0.0
        %vm3000 = vcmp.ge.f32.partialorder %v2750, 0.0
        %vm3001 = vcmp.ge.f32.partialorder %v2928, 0.0
        %vm3002 = vcmp.ge.f32.partialorder %v2753, 0.0
        %vm3003 = vcmp.ge.f32.partialorder %v2931, 0.0
        %vm3004 = vcmp.ge.f32.partialorder %v2755, 0.0
        %vm3005 = vcmp.ge.f32.partialorder %v2933, 0.0
        %vm3006 = vcmp.ge.f32.partialorder %v2758, 0.0
        %vm3007 = vcmp.ge.f32.partialorder %v2936, 0.0
        %vm3008 = vcmp.ge.f32.partialorder %v2760, 0.0
        %vm3009 = vcmp.ge.f32.partialorder %v2938, 0.0
        %vm3010 = vcmp.ge.f32.partialorder %v2763, 0.0
        %vm3011 = vcmp.ge.f32.partialorder %v2941, 0.0
        %vm3012 = vcmp.ge.f32.partialorder %v2765, 0.0
        %vm3013 = vcmp.ge.f32.partialorder %v2943, 0.0
        %vm3014 = vcmp.ge.f32.partialorder %v2768, 0.0
        %vm3015 = vcmp.ge.f32.partialorder %v2946, 0.0
        %vm3016 = vcmp.ge.f32.partialorder %v2770, 0.0
        %vm3017 = vcmp.ge.f32.partialorder %v2948, 0.0
        %vm3018 = vcmp.ge.f32.partialorder %v2773, 0.0
        %vm3019 = vcmp.ge.f32.partialorder %v2951, 0.0
        %vm3020 = vcmp.ge.f32.partialorder %v2775, 0.0
        %vm3021 = vcmp.ge.f32.partialorder %v2953, 0.0
        %vm3022 = vcmp.ge.f32.partialorder %v2778, 0.0
        %vm3023 = vcmp.ge.f32.partialorder %v2956, 0.0
        %vm3024 = vcmp.ge.f32.partialorder %v2780, 0.0
        %vm3025 = vcmp.ge.f32.partialorder %v2958, 0.0
        %vm3026 = vcmp.ge.f32.partialorder %v2783, 0.0
        %vm3027 = vcmp.ge.f32.partialorder %v2961, 0.0
        %vm3028 = vcmp.ge.f32.partialorder %v2785, 0.0
        %vm3029 = vcmp.ge.f32.partialorder %v2963, 0.0
        %vm3030 = vcmp.ge.f32.partialorder %v2788, 0.0
        %vm3031 = vcmp.ge.f32.partialorder %v2966, 0.0
        %vm3032 = vcmp.ge.f32.partialorder %v2790, 0.0
        %vm3033 = vcmp.ge.f32.partialorder %v2968, 0.0
        %v3034 = vmul.f32 %v2713, 0.01
        %v3035 = vmul.f32 %v2891, 0.01
        %v3036 = vmul.f32 %v2715, 0.01
        %v3037 = vmul.f32 %v2893, 0.01
        %v3038 = vmul.f32 %v2718, 0.01
        %v3039 = vmul.f32 %v2896, 0.01
        %v3040 = vmul.f32 %v2720, 0.01
        %v3041 = vmul.f32 %v2898, 0.01
        %v3042 = vmul.f32 %v2723, 0.01
        %v3043 = vmul.f32 %v2901, 0.01
        %v3044 = vmul.f32 %v2725, 0.01
        %v3045 = vmul.f32 %v2903, 0.01
        %v3046 = vmul.f32 %v2728, 0.01
        %v3047 = vmul.f32 %v2906, 0.01
        %v3048 = vmul.f32 %v2730, 0.01
        %v3049 = vmul.f32 %v2908, 0.01
        %v3050 = vmul.f32 %v2733, 0.01
        %v3051 = vmul.f32 %v2911, 0.01
        %v3052 = vmul.f32 %v2735, 0.01
        %v3053 = vmul.f32 %v2913, 0.01
        %v3054 = vmul.f32 %v2738, 0.01
        %v3055 = vmul.f32 %v2916, 0.01
        %v3056 = vmul.f32 %v2740, 0.01
        %v3057 = vmul.f32 %v2918, 0.01
        %v3058 = vmul.f32 %v2743, 0.01
        %v3059 = vmul.f32 %v2921, 0.01
        %v3060 = vmul.f32 %v2745, 0.01
        %v3061 = vmul.f32 %v2923, 0.01
        %v3062 = vmul.f32 %v2748, 0.01
        %v3063 = vmul.f32 %v2926, 0.01
        %v3064 = vmul.f32 %v2750, 0.01
        %v3065 = vmul.f32 %v2928, 0.01
        %v3066 = vmul.f32 %v2753, 0.01
        %v3067 = vmul.f32 %v2931, 0.01
        %v3068 = vmul.f32 %v2755, 0.01
        %v3069 = vmul.f32 %v2933, 0.01
        %v3070 = vmul.f32 %v2758, 0.01
        %v3071 = vmul.f32 %v2936, 0.01
        %v3072 = vmul.f32 %v2760, 0.01
        %v3073 = vmul.f32 %v2938, 0.01
        %v3074 = vmul.f32 %v2763, 0.01
        %v3075 = vmul.f32 %v2941, 0.01
        %v3076 = vmul.f32 %v2765, 0.01
        %v3077 = vmul.f32 %v2943, 0.01
        %v3078 = vmul.f32 %v2768, 0.01
        %v3079 = vmul.f32 %v2946, 0.01
        %v3080 = vmul.f32 %v2770, 0.01
        %v3081 = vmul.f32 %v2948, 0.01
        %v3082 = vmul.f32 %v2773, 0.01
        %v3083 = vmul.f32 %v2951, 0.01
        %v3084 = vmul.f32 %v2775, 0.01
        %v3085 = vmul.f32 %v2953, 0.01
        %v3086 = vmul.f32 %v2778, 0.01
        %v3087 = vmul.f32 %v2956, 0.01
        %v3088 = vmul.f32 %v2780, 0.01
        %v3089 = vmul.f32 %v2958, 0.01
        %v3090 = vmul.f32 %v2783, 0.01
        %v3091 = vmul.f32 %v2961, 0.01
        %v3092 = vmul.f32 %v2785, 0.01
        %v3093 = vmul.f32 %v2963, 0.01
        %v3094 = vmul.f32 %v2788, 0.01
        %v3095 = vmul.f32 %v2966, 0.01
        %v3096 = vmul.f32 %v2790, 0.01
        %v3097 = vmul.f32 %v2968, 0.01
        %v3098 = vsel %vm2970, %v2713, %v3034
        %v3099 = vsel %vm2971, %v2891, %v3035
        %v3100 = vsel %vm2972, %v2715, %v3036
        %v3101 = vsel %vm2973, %v2893, %v3037
        %v3102 = vsel %vm2974, %v2718, %v3038
        %v3103 = vsel %vm2975, %v2896, %v3039
        %v3104 = vsel %vm2976, %v2720, %v3040
        %v3105 = vsel %vm2977, %v2898, %v3041
        %v3106 = vsel %vm2978, %v2723, %v3042
        %v3107 = vsel %vm2979, %v2901, %v3043
        %v3108 = vsel %vm2980, %v2725, %v3044
        %v3109 = vsel %vm2981, %v2903, %v3045
        %v3110 = vsel %vm2982, %v2728, %v3046
        %v3111 = vsel %vm2983, %v2906, %v3047
        %v3112 = vsel %vm2984, %v2730, %v3048
        %v3113 = vsel %vm2985, %v2908, %v3049
        %v3114 = vsel %vm2986, %v2733, %v3050
        %v3115 = vsel %vm2987, %v2911, %v3051
        %v3116 = vsel %vm2988, %v2735, %v3052
        %v3117 = vsel %vm2989, %v2913, %v3053
        %v3118 = vsel %vm2990, %v2738, %v3054
        %v3119 = vsel %vm2991, %v2916, %v3055
        %v3120 = vsel %vm2992, %v2740, %v3056
        %v3121 = vsel %vm2993, %v2918, %v3057
        %v3122 = vsel %vm2994, %v2743, %v3058
        %v3123 = vsel %vm2995, %v2921, %v3059
        %v3124 = vsel %vm2996, %v2745, %v3060
        %v3125 = vsel %vm2997, %v2923, %v3061
        %v3126 = vsel %vm2998, %v2748, %v3062
        %v3127 = vsel %vm2999, %v2926, %v3063
        %v3128 = vsel %vm3000, %v2750, %v3064
        %v3129 = vsel %vm3001, %v2928, %v3065
        %v3130 = vsel %vm3002, %v2753, %v3066
        %v3131 = vsel %vm3003, %v2931, %v3067
        %v3132 = vsel %vm3004, %v2755, %v3068
        %v3133 = vsel %vm3005, %v2933, %v3069
        %v3134 = vsel %vm3006, %v2758, %v3070
        %v3135 = vsel %vm3007, %v2936, %v3071
        %v3136 = vsel %vm3008, %v2760, %v3072
        %v3137 = vsel %vm3009, %v2938, %v3073
        %v3138 = vsel %vm3010, %v2763, %v3074
        %v3139 = vsel %vm3011, %v2941, %v3075
        %v3140 = vsel %vm3012, %v2765, %v3076
        %v3141 = vsel %vm3013, %v2943, %v3077
        %v3142 = vsel %vm3014, %v2768, %v3078
        %v3143 = vsel %vm3015, %v2946, %v3079
        %v3144 = vsel %vm3016, %v2770, %v3080
        %v3145 = vsel %vm3017, %v2948, %v3081
        %v3146 = vsel %vm3018, %v2773, %v3082
        %v3147 = vsel %vm3019, %v2951, %v3083
        %v3148 = vsel %vm3020, %v2775, %v3084
        %v3149 = vsel %vm3021, %v2953, %v3085
        %v3150 = vsel %vm3022, %v2778, %v3086
        %v3151 = vsel %vm3023, %v2956, %v3087
        %v3152 = vsel %vm3024, %v2780, %v3088
        %v3153 = vsel %vm3025, %v2958, %v3089
        %v3154 = vsel %vm3026, %v2783, %v3090
        %v3155 = vsel %vm3027, %v2961, %v3091
        %v3156 = vsel %vm3028, %v2785, %v3092
        %v3157 = vsel %vm3029, %v2963, %v3093
        %v3158 = vsel %vm3030, %v2788, %v3094
        %v3159 = vsel %vm3031, %v2966, %v3095
        %v3160 = vsel %vm3032, %v2790, %v3096
        %v3161 = vsel %vm3033, %v2968, %v3097
        %v3162 = vld [vmem:[%s500] sm:$0xff]
        %v3163 = vld [vmem:[%s500 + $0x8] sm:$0xff]
        %v3164 = vld [vmem:[%s500 + $0x10] sm:$0xff]
        %v3165 = vld [vmem:[%s500 + $0x18] sm:$0xff]
        %v3166 = vld [vmem:[%s500 + $0x20] sm:$0xff]
        %v3167 = vld [vmem:[%s500 + $0x28] sm:$0xff]
        %v3168 = vld [vmem:[%s500 + $0x30] sm:$0xff]
        %v3169 = vld [vmem:[%s500 + $0x38] sm:$0xff]
        %v3170 = vld [vmem:[%s500 + $0x40] sm:$0xff]
        %v3171 = vld [vmem:[%s500 + $0x48] sm:$0xff]
        %v3172 = vld [vmem:[%s500 + $0x50] sm:$0xff]
        %v3173 = vld [vmem:[%s500 + $0x58] sm:$0xff]
        %v3174 = vld [vmem:[%s500 + $0x60] sm:$0xff]
        %v3175 = vld [vmem:[%s500 + $0x68] sm:$0xff]
        %v3176 = vld [vmem:[%s500 + $0x70] sm:$0xff]
        %v3177 = vld [vmem:[%s500 + $0x78] sm:$0xff]
        %v3178 = vld [vmem:[%s500 + $0x80] sm:$0xff]
        %v3179 = vld [vmem:[%s500 + $0x88] sm:$0xff]
        %v3180 = vld [vmem:[%s500 + $0x90] sm:$0xff]
        %v3181 = vld [vmem:[%s500 + $0x98] sm:$0xff]
        %v3182 = vld [vmem:[%s500 + $0xa0] sm:$0xff]
        %v3183 = vld [vmem:[%s500 + $0xa8] sm:$0xff]
        %v3184 = vld [vmem:[%s500 + $0xb0] sm:$0xff]
        %v3185 = vld [vmem:[%s500 + $0xb8] sm:$0xff]
        %v3186 = vld [vmem:[%s500 + $0xc0] sm:$0xff]
        %v3187 = vld [vmem:[%s500 + $0xc8] sm:$0xff]
        %v3188 = vld [vmem:[%s500 + $0xd0] sm:$0xff]
        %v3189 = vld [vmem:[%s500 + $0xd8] sm:$0xff]
        %v3190 = vld [vmem:[%s500 + $0xe0] sm:$0xff]
        %v3191 = vld [vmem:[%s500 + $0xe8] sm:$0xff]
        %v3192 = vld [vmem:[%s500 + $0xf0] sm:$0xff]
        %v3193 = vld [vmem:[%s500 + $0xf8] sm:$0xff]
        %v3194 = vxor.u32 %v3162, 2147483648
        %v3195 = vxor.u32 %v3163, 2147483648
        %v3196 = vxor.u32 %v3164, 2147483648
        %v3197 = vxor.u32 %v3165, 2147483648
        %v3198 = vxor.u32 %v3166, 2147483648
        %v3199 = vxor.u32 %v3167, 2147483648
        %v3200 = vxor.u32 %v3168, 2147483648
        %v3201 = vxor.u32 %v3169, 2147483648
        %v3202 = vxor.u32 %v3170, 2147483648
        %v3203 = vxor.u32 %v3171, 2147483648
        %v3204 = vxor.u32 %v3172, 2147483648
        %v3205 = vxor.u32 %v3173, 2147483648
        %v3206 = vxor.u32 %v3174, 2147483648
        %v3207 = vxor.u32 %v3175, 2147483648
        %v3208 = vxor.u32 %v3176, 2147483648
        %v3209 = vxor.u32 %v3177, 2147483648
        %v3210 = vxor.u32 %v3178, 2147483648
        %v3211 = vxor.u32 %v3179, 2147483648
        %v3212 = vxor.u32 %v3180, 2147483648
        %v3213 = vxor.u32 %v3181, 2147483648
        %v3214 = vxor.u32 %v3182, 2147483648
        %v3215 = vxor.u32 %v3183, 2147483648
        %v3216 = vxor.u32 %v3184, 2147483648
        %v3217 = vxor.u32 %v3185, 2147483648
        %v3218 = vxor.u32 %v3186, 2147483648
        %v3219 = vxor.u32 %v3187, 2147483648
        %v3220 = vxor.u32 %v3188, 2147483648
        %v3221 = vxor.u32 %v3189, 2147483648
        %v3222 = vxor.u32 %v3190, 2147483648
        %v3223 = vxor.u32 %v3191, 2147483648
        %v3224 = vxor.u32 %v3192, 2147483648
        %v3225 = vxor.u32 %v3193, 2147483648
        %v3226 = vmul.f32 %v3194, 1.442695
        %v3227 = vpow.pop %v3226
        %v3228 = vmul.f32 %v3195, 1.442695
        %v3229 = vpow.pop %v3228
        %v3230 = vmul.f32 %v3196, 1.442695
        %v3231 = vpow.pop %v3230
        %v3232 = vmul.f32 %v3197, 1.442695
        %v3233 = vpow.pop %v3232
        %v3234 = vmul.f32 %v3198, 1.442695
        %v3235 = vpow.pop %v3234
        %v3236 = vmul.f32 %v3199, 1.442695
        %v3237 = vpow.pop %v3236
        %v3238 = vmul.f32 %v3200, 1.442695
        %v3239 = vpow.pop %v3238
        %v3240 = vmul.f32 %v3201, 1.442695
        %v3241 = vpow.pop %v3240
        %v3242 = vmul.f32 %v3202, 1.442695
        %v3243 = vpow.pop %v3242
        %v3244 = vmul.f32 %v3203, 1.442695
        %v3245 = vpow.pop %v3244
        %v3246 = vmul.f32 %v3204, 1.442695
        %v3247 = vpow.pop %v3246
        %v3248 = vmul.f32 %v3205, 1.442695
        %v3249 = vpow.pop %v3248
        %v3250 = vmul.f32 %v3206, 1.442695
        %v3251 = vpow.pop %v3250
        %v3252 = vmul.f32 %v3207, 1.442695
        %v3253 = vpow.pop %v3252
        %v3254 = vmul.f32 %v3208, 1.442695
        %v3255 = vpow.pop %v3254
        %v3256 = vmul.f32 %v3209, 1.442695
        %v3257 = vpow.pop %v3256
        %v3258 = vmul.f32 %v3210, 1.442695
        %v3259 = vpow.pop %v3258
        %v3260 = vmul.f32 %v3211, 1.442695
        %v3261 = vpow.pop %v3260
        %v3262 = vmul.f32 %v3212, 1.442695
        %v3263 = vpow.pop %v3262
        %v3264 = vmul.f32 %v3213, 1.442695
        %v3265 = vpow.pop %v3264
        %v3266 = vmul.f32 %v3214, 1.442695
        %v3267 = vpow.pop %v3266
        %v3268 = vmul.f32 %v3215, 1.442695
        %v3269 = vpow.pop %v3268
        %v3270 = vmul.f32 %v3216, 1.442695
        %v3271 = vpow.pop %v3270
        %v3272 = vmul.f32 %v3217, 1.442695
        %v3273 = vpow.pop %v3272
        %v3274 = vmul.f32 %v3218, 1.442695
        %v3275 = vpow.pop %v3274
        %v3276 = vmul.f32 %v3219, 1.442695
        %v3277 = vpow.pop %v3276
        %v3278 = vmul.f32 %v3220, 1.442695
        %v3279 = vpow.pop %v3278
        %v3280 = vmul.f32 %v3221, 1.442695
        %v3281 = vpow.pop %v3280
        %v3282 = vmul.f32 %v3222, 1.442695
        %v3283 = vpow.pop %v3282
        %v3284 = vmul.f32 %v3223, 1.442695
        %v3285 = vpow.pop %v3284
        %v3286 = vmul.f32 %v3224, 1.442695
        %v3287 = vpow.pop %v3286
        %v3288 = vmul.f32 %v3225, 1.442695
        %v3289 = vpow.pop %v3288
        %v3290 = vadd.f32 %v3227, 1.0
        %v3291 = vadd.f32 %v3229, 1.0
        %v3292 = vadd.f32 %v3231, 1.0
        %v3293 = vadd.f32 %v3233, 1.0
        %v3294 = vadd.f32 %v3235, 1.0
        %v3295 = vadd.f32 %v3237, 1.0
        %v3296 = vadd.f32 %v3239, 1.0
        %v3297 = vadd.f32 %v3241, 1.0
        %v3298 = vadd.f32 %v3243, 1.0
        %v3299 = vadd.f32 %v3245, 1.0
        %v3300 = vadd.f32 %v3247, 1.0
        %v3301 = vadd.f32 %v3249, 1.0
        %v3302 = vadd.f32 %v3251, 1.0
        %v3303 = vadd.f32 %v3253, 1.0
        %v3304 = vadd.f32 %v3255, 1.0
        %v3305 = vadd.f32 %v3257, 1.0
        %v3306 = vadd.f32 %v3259, 1.0
        %v3307 = vadd.f32 %v3261, 1.0
        %v3308 = vadd.f32 %v3263, 1.0
        %v3309 = vadd.f32 %v3265, 1.0
        %v3310 = vadd.f32 %v3267, 1.0
        %v3311 = vadd.f32 %v3269, 1.0
        %v3312 = vadd.f32 %v3271, 1.0
        %v3313 = vadd.f32 %v3273, 1.0
        %v3314 = vadd.f32 %v3275, 1.0
        %v3315 = vadd.f32 %v3277, 1.0
        %v3316 = vadd.f32 %v3279, 1.0
        %v3317 = vadd.f32 %v3281, 1.0
        %v3318 = vadd.f32 %v3283, 1.0
        %v3319 = vadd.f32 %v3285, 1.0
        %v3320 = vadd.f32 %v3287, 1.0
        %v3321 = vadd.f32 %v3289, 1.0
        %v3322 = vrcp.pop %v3290
        %v3323 = vmul.f32 %v3290, %v3322
        %v3324 = vsub.f32 1.0, %v3323
        %v3325 = vmul.f32 %v3322, %v3324
        %v3326 = vadd.f32 %v3322, %v3325
        %vm3327 = vweird.f32 %v3290
        %vm3328 = vweird.f32 %v3322
        %vm3329 = vmor %vm3327, %vm3328
        %v3330 = vsel %vm3329, %v3322, %v3326
        %v3331 = vand.u32 2147483647, %v3290
        %vm3332 = vcmp.eq.f32.partialorder %v3331, 8.507059e+37
        %v3333 = vand.u32 %v3290, 2147483648
        %v3334 = vor.u32 1.1754944e-38, %v3333
        %v3335 = vsel %vm3332, %v3334, %v3330
        %v3336 = vmul.f32 1.0, %v3335
        %v3337 = vrcp.pop %v3291
        %v3338 = vmul.f32 %v3291, %v3337
        %v3339 = vsub.f32 1.0, %v3338
        %v3340 = vmul.f32 %v3337, %v3339
        %v3341 = vadd.f32 %v3337, %v3340
        %vm3342 = vweird.f32 %v3291
        %vm3343 = vweird.f32 %v3337
        %vm3344 = vmor %vm3342, %vm3343
        %v3345 = vsel %vm3344, %v3337, %v3341
        %v3346 = vand.u32 2147483647, %v3291
        %vm3347 = vcmp.eq.f32.partialorder %v3346, 8.507059e+37
        %v3348 = vand.u32 %v3291, 2147483648
        %v3349 = vor.u32 1.1754944e-38, %v3348
        %v3350 = vsel %vm3347, %v3349, %v3345
        %v3351 = vmul.f32 1.0, %v3350
        %v3352 = vrcp.pop %v3292
        %v3353 = vmul.f32 %v3292, %v3352
        %v3354 = vsub.f32 1.0, %v3353
        %v3355 = vmul.f32 %v3352, %v3354
        %v3356 = vadd.f32 %v3352, %v3355
        %vm3357 = vweird.f32 %v3292
        %vm3358 = vweird.f32 %v3352
        %vm3359 = vmor %vm3357, %vm3358
        %v3360 = vsel %vm3359, %v3352, %v3356
        %v3361 = vand.u32 2147483647, %v3292
        %vm3362 = vcmp.eq.f32.partialorder %v3361, 8.507059e+37
        %v3363 = vand.u32 %v3292, 2147483648
        %v3364 = vor.u32 1.1754944e-38, %v3363
        %v3365 = vsel %vm3362, %v3364, %v3360
        %v3366 = vmul.f32 1.0, %v3365
        %v3367 = vrcp.pop %v3293
        %v3368 = vmul.f32 %v3293, %v3367
        %v3369 = vsub.f32 1.0, %v3368
        %v3370 = vmul.f32 %v3367, %v3369
        %v3371 = vadd.f32 %v3367, %v3370
        %vm3372 = vweird.f32 %v3293
        %vm3373 = vweird.f32 %v3367
        %vm3374 = vmor %vm3372, %vm3373
        %v3375 = vsel %vm3374, %v3367, %v3371
        %v3376 = vand.u32 2147483647, %v3293
        %vm3377 = vcmp.eq.f32.partialorder %v3376, 8.507059e+37
        %v3378 = vand.u32 %v3293, 2147483648
        %v3379 = vor.u32 1.1754944e-38, %v3378
        %v3380 = vsel %vm3377, %v3379, %v3375
        %v3381 = vmul.f32 1.0, %v3380
        %v3382 = vrcp.pop %v3294
        %v3383 = vmul.f32 %v3294, %v3382
        %v3384 = vsub.f32 1.0, %v3383
        %v3385 = vmul.f32 %v3382, %v3384
        %v3386 = vadd.f32 %v3382, %v3385
        %vm3387 = vweird.f32 %v3294
        %vm3388 = vweird.f32 %v3382
        %vm3389 = vmor %vm3387, %vm3388
        %v3390 = vsel %vm3389, %v3382, %v3386
        %v3391 = vand.u32 2147483647, %v3294
        %vm3392 = vcmp.eq.f32.partialorder %v3391, 8.507059e+37
        %v3393 = vand.u32 %v3294, 2147483648
        %v3394 = vor.u32 1.1754944e-38, %v3393
        %v3395 = vsel %vm3392, %v3394, %v3390
        %v3396 = vmul.f32 1.0, %v3395
        %v3397 = vrcp.pop %v3295
        %v3398 = vmul.f32 %v3295, %v3397
        %v3399 = vsub.f32 1.0, %v3398
        %v3400 = vmul.f32 %v3397, %v3399
        %v3401 = vadd.f32 %v3397, %v3400
        %vm3402 = vweird.f32 %v3295
        %vm3403 = vweird.f32 %v3397
        %vm3404 = vmor %vm3402, %vm3403
        %v3405 = vsel %vm3404, %v3397, %v3401
        %v3406 = vand.u32 2147483647, %v3295
        %vm3407 = vcmp.eq.f32.partialorder %v3406, 8.507059e+37
        %v3408 = vand.u32 %v3295, 2147483648
        %v3409 = vor.u32 1.1754944e-38, %v3408
        %v3410 = vsel %vm3407, %v3409, %v3405
        %v3411 = vmul.f32 1.0, %v3410
        %v3412 = vrcp.pop %v3296
        %v3413 = vmul.f32 %v3296, %v3412
        %v3414 = vsub.f32 1.0, %v3413
        %v3415 = vmul.f32 %v3412, %v3414
        %v3416 = vadd.f32 %v3412, %v3415
        %vm3417 = vweird.f32 %v3296
        %vm3418 = vweird.f32 %v3412
        %vm3419 = vmor %vm3417, %vm3418
        %v3420 = vsel %vm3419, %v3412, %v3416
        %v3421 = vand.u32 2147483647, %v3296
        %vm3422 = vcmp.eq.f32.partialorder %v3421, 8.507059e+37
        %v3423 = vand.u32 %v3296, 2147483648
        %v3424 = vor.u32 1.1754944e-38, %v3423
        %v3425 = vsel %vm3422, %v3424, %v3420
        %v3426 = vmul.f32 1.0, %v3425
        %v3427 = vrcp.pop %v3297
        %v3428 = vmul.f32 %v3297, %v3427
        %v3429 = vsub.f32 1.0, %v3428
        %v3430 = vmul.f32 %v3427, %v3429
        %v3431 = vadd.f32 %v3427, %v3430
        %vm3432 = vweird.f32 %v3297
        %vm3433 = vweird.f32 %v3427
        %vm3434 = vmor %vm3432, %vm3433
        %v3435 = vsel %vm3434, %v3427, %v3431
        %v3436 = vand.u32 2147483647, %v3297
        %vm3437 = vcmp.eq.f32.partialorder %v3436, 8.507059e+37
        %v3438 = vand.u32 %v3297, 2147483648
        %v3439 = vor.u32 1.1754944e-38, %v3438
        %v3440 = vsel %vm3437, %v3439, %v3435
        %v3441 = vmul.f32 1.0, %v3440
        %v3442 = vrcp.pop %v3298
        %v3443 = vmul.f32 %v3298, %v3442
        %v3444 = vsub.f32 1.0, %v3443
        %v3445 = vmul.f32 %v3442, %v3444
        %v3446 = vadd.f32 %v3442, %v3445
        %vm3447 = vweird.f32 %v3298
        %vm3448 = vweird.f32 %v3442
        %vm3449 = vmor %vm3447, %vm3448
        %v3450 = vsel %vm3449, %v3442, %v3446
        %v3451 = vand.u32 2147483647, %v3298
        %vm3452 = vcmp.eq.f32.partialorder %v3451, 8.507059e+37
        %v3453 = vand.u32 %v3298, 2147483648
        %v3454 = vor.u32 1.1754944e-38, %v3453
        %v3455 = vsel %vm3452, %v3454, %v3450
        %v3456 = vmul.f32 1.0, %v3455
        %v3457 = vrcp.pop %v3299
        %v3458 = vmul.f32 %v3299, %v3457
        %v3459 = vsub.f32 1.0, %v3458
        %v3460 = vmul.f32 %v3457, %v3459
        %v3461 = vadd.f32 %v3457, %v3460
        %vm3462 = vweird.f32 %v3299
        %vm3463 = vweird.f32 %v3457
        %vm3464 = vmor %vm3462, %vm3463
        %v3465 = vsel %vm3464, %v3457, %v3461
        %v3466 = vand.u32 2147483647, %v3299
        %vm3467 = vcmp.eq.f32.partialorder %v3466, 8.507059e+37
        %v3468 = vand.u32 %v3299, 2147483648
        %v3469 = vor.u32 1.1754944e-38, %v3468
        %v3470 = vsel %vm3467, %v3469, %v3465
        %v3471 = vmul.f32 1.0, %v3470
        %v3472 = vrcp.pop %v3300
        %v3473 = vmul.f32 %v3300, %v3472
        %v3474 = vsub.f32 1.0, %v3473
        %v3475 = vmul.f32 %v3472, %v3474
        %v3476 = vadd.f32 %v3472, %v3475
        %vm3477 = vweird.f32 %v3300
        %vm3478 = vweird.f32 %v3472
        %vm3479 = vmor %vm3477, %vm3478
        %v3480 = vsel %vm3479, %v3472, %v3476
        %v3481 = vand.u32 2147483647, %v3300
        %vm3482 = vcmp.eq.f32.partialorder %v3481, 8.507059e+37
        %v3483 = vand.u32 %v3300, 2147483648
        %v3484 = vor.u32 1.1754944e-38, %v3483
        %v3485 = vsel %vm3482, %v3484, %v3480
        %v3486 = vmul.f32 1.0, %v3485
        %v3487 = vrcp.pop %v3301
        %v3488 = vmul.f32 %v3301, %v3487
        %v3489 = vsub.f32 1.0, %v3488
        %v3490 = vmul.f32 %v3487, %v3489
        %v3491 = vadd.f32 %v3487, %v3490
        %vm3492 = vweird.f32 %v3301
        %vm3493 = vweird.f32 %v3487
        %vm3494 = vmor %vm3492, %vm3493
        %v3495 = vsel %vm3494, %v3487, %v3491
        %v3496 = vand.u32 2147483647, %v3301
        %vm3497 = vcmp.eq.f32.partialorder %v3496, 8.507059e+37
        %v3498 = vand.u32 %v3301, 2147483648
        %v3499 = vor.u32 1.1754944e-38, %v3498
        %v3500 = vsel %vm3497, %v3499, %v3495
        %v3501 = vmul.f32 1.0, %v3500
        %v3502 = vrcp.pop %v3302
        %v3503 = vmul.f32 %v3302, %v3502
        %v3504 = vsub.f32 1.0, %v3503
        %v3505 = vmul.f32 %v3502, %v3504
        %v3506 = vadd.f32 %v3502, %v3505
        %vm3507 = vweird.f32 %v3302
        %vm3508 = vweird.f32 %v3502
        %vm3509 = vmor %vm3507, %vm3508
        %v3510 = vsel %vm3509, %v3502, %v3506
        %v3511 = vand.u32 2147483647, %v3302
        %vm3512 = vcmp.eq.f32.partialorder %v3511, 8.507059e+37
        %v3513 = vand.u32 %v3302, 2147483648
        %v3514 = vor.u32 1.1754944e-38, %v3513
        %v3515 = vsel %vm3512, %v3514, %v3510
        %v3516 = vmul.f32 1.0, %v3515
        %v3517 = vrcp.pop %v3303
        %v3518 = vmul.f32 %v3303, %v3517
        %v3519 = vsub.f32 1.0, %v3518
        %v3520 = vmul.f32 %v3517, %v3519
        %v3521 = vadd.f32 %v3517, %v3520
        %vm3522 = vweird.f32 %v3303
        %vm3523 = vweird.f32 %v3517
        %vm3524 = vmor %vm3522, %vm3523
        %v3525 = vsel %vm3524, %v3517, %v3521
        %v3526 = vand.u32 2147483647, %v3303
        %vm3527 = vcmp.eq.f32.partialorder %v3526, 8.507059e+37
        %v3528 = vand.u32 %v3303, 2147483648
        %v3529 = vor.u32 1.1754944e-38, %v3528
        %v3530 = vsel %vm3527, %v3529, %v3525
        %v3531 = vmul.f32 1.0, %v3530
        %v3532 = vrcp.pop %v3304
        %v3533 = vmul.f32 %v3304, %v3532
        %v3534 = vsub.f32 1.0, %v3533
        %v3535 = vmul.f32 %v3532, %v3534
        %v3536 = vadd.f32 %v3532, %v3535
        %vm3537 = vweird.f32 %v3304
        %vm3538 = vweird.f32 %v3532
        %vm3539 = vmor %vm3537, %vm3538
        %v3540 = vsel %vm3539, %v3532, %v3536
        %v3541 = vand.u32 2147483647, %v3304
        %vm3542 = vcmp.eq.f32.partialorder %v3541, 8.507059e+37
        %v3543 = vand.u32 %v3304, 2147483648
        %v3544 = vor.u32 1.1754944e-38, %v3543
        %v3545 = vsel %vm3542, %v3544, %v3540
        %v3546 = vmul.f32 1.0, %v3545
        %v3547 = vrcp.pop %v3305
        %v3548 = vmul.f32 %v3305, %v3547
        %v3549 = vsub.f32 1.0, %v3548
        %v3550 = vmul.f32 %v3547, %v3549
        %v3551 = vadd.f32 %v3547, %v3550
        %vm3552 = vweird.f32 %v3305
        %vm3553 = vweird.f32 %v3547
        %vm3554 = vmor %vm3552, %vm3553
        %v3555 = vsel %vm3554, %v3547, %v3551
        %v3556 = vand.u32 2147483647, %v3305
        %vm3557 = vcmp.eq.f32.partialorder %v3556, 8.507059e+37
        %v3558 = vand.u32 %v3305, 2147483648
        %v3559 = vor.u32 1.1754944e-38, %v3558
        %v3560 = vsel %vm3557, %v3559, %v3555
        %v3561 = vmul.f32 1.0, %v3560
        %v3562 = vrcp.pop %v3306
        %v3563 = vmul.f32 %v3306, %v3562
        %v3564 = vsub.f32 1.0, %v3563
        %v3565 = vmul.f32 %v3562, %v3564
        %v3566 = vadd.f32 %v3562, %v3565
        %vm3567 = vweird.f32 %v3306
        %vm3568 = vweird.f32 %v3562
        %vm3569 = vmor %vm3567, %vm3568
        %v3570 = vsel %vm3569, %v3562, %v3566
        %v3571 = vand.u32 2147483647, %v3306
        %vm3572 = vcmp.eq.f32.partialorder %v3571, 8.507059e+37
        %v3573 = vand.u32 %v3306, 2147483648
        %v3574 = vor.u32 1.1754944e-38, %v3573
        %v3575 = vsel %vm3572, %v3574, %v3570
        %v3576 = vmul.f32 1.0, %v3575
        %v3577 = vrcp.pop %v3307
        %v3578 = vmul.f32 %v3307, %v3577
        %v3579 = vsub.f32 1.0, %v3578
        %v3580 = vmul.f32 %v3577, %v3579
        %v3581 = vadd.f32 %v3577, %v3580
        %vm3582 = vweird.f32 %v3307
        %vm3583 = vweird.f32 %v3577
        %vm3584 = vmor %vm3582, %vm3583
        %v3585 = vsel %vm3584, %v3577, %v3581
        %v3586 = vand.u32 2147483647, %v3307
        %vm3587 = vcmp.eq.f32.partialorder %v3586, 8.507059e+37
        %v3588 = vand.u32 %v3307, 2147483648
        %v3589 = vor.u32 1.1754944e-38, %v3588
        %v3590 = vsel %vm3587, %v3589, %v3585
        %v3591 = vmul.f32 1.0, %v3590
        %v3592 = vrcp.pop %v3308
        %v3593 = vmul.f32 %v3308, %v3592
        %v3594 = vsub.f32 1.0, %v3593
        %v3595 = vmul.f32 %v3592, %v3594
        %v3596 = vadd.f32 %v3592, %v3595
        %vm3597 = vweird.f32 %v3308
        %vm3598 = vweird.f32 %v3592
        %vm3599 = vmor %vm3597, %vm3598
        %v3600 = vsel %vm3599, %v3592, %v3596
        %v3601 = vand.u32 2147483647, %v3308
        %vm3602 = vcmp.eq.f32.partialorder %v3601, 8.507059e+37
        %v3603 = vand.u32 %v3308, 2147483648
        %v3604 = vor.u32 1.1754944e-38, %v3603
        %v3605 = vsel %vm3602, %v3604, %v3600
        %v3606 = vmul.f32 1.0, %v3605
        %v3607 = vrcp.pop %v3309
        %v3608 = vmul.f32 %v3309, %v3607
        %v3609 = vsub.f32 1.0, %v3608
        %v3610 = vmul.f32 %v3607, %v3609
        %v3611 = vadd.f32 %v3607, %v3610
        %vm3612 = vweird.f32 %v3309
        %vm3613 = vweird.f32 %v3607
        %vm3614 = vmor %vm3612, %vm3613
        %v3615 = vsel %vm3614, %v3607, %v3611
        %v3616 = vand.u32 2147483647, %v3309
        %vm3617 = vcmp.eq.f32.partialorder %v3616, 8.507059e+37
        %v3618 = vand.u32 %v3309, 2147483648
        %v3619 = vor.u32 1.1754944e-38, %v3618
        %v3620 = vsel %vm3617, %v3619, %v3615
        %v3621 = vmul.f32 1.0, %v3620
        %v3622 = vrcp.pop %v3310
        %v3623 = vmul.f32 %v3310, %v3622
        %v3624 = vsub.f32 1.0, %v3623
        %v3625 = vmul.f32 %v3622, %v3624
        %v3626 = vadd.f32 %v3622, %v3625
        %vm3627 = vweird.f32 %v3310
        %vm3628 = vweird.f32 %v3622
        %vm3629 = vmor %vm3627, %vm3628
        %v3630 = vsel %vm3629, %v3622, %v3626
        %v3631 = vand.u32 2147483647, %v3310
        %vm3632 = vcmp.eq.f32.partialorder %v3631, 8.507059e+37
        %v3633 = vand.u32 %v3310, 2147483648
        %v3634 = vor.u32 1.1754944e-38, %v3633
        %v3635 = vsel %vm3632, %v3634, %v3630
        %v3636 = vmul.f32 1.0, %v3635
        %v3637 = vrcp.pop %v3311
        %v3638 = vmul.f32 %v3311, %v3637
        %v3639 = vsub.f32 1.0, %v3638
        %v3640 = vmul.f32 %v3637, %v3639
        %v3641 = vadd.f32 %v3637, %v3640
        %vm3642 = vweird.f32 %v3311
        %vm3643 = vweird.f32 %v3637
        %vm3644 = vmor %vm3642, %vm3643
        %v3645 = vsel %vm3644, %v3637, %v3641
        %v3646 = vand.u32 2147483647, %v3311
        %vm3647 = vcmp.eq.f32.partialorder %v3646, 8.507059e+37
        %v3648 = vand.u32 %v3311, 2147483648
        %v3649 = vor.u32 1.1754944e-38, %v3648
        %v3650 = vsel %vm3647, %v3649, %v3645
        %v3651 = vmul.f32 1.0, %v3650
        %v3652 = vrcp.pop %v3312
        %v3653 = vmul.f32 %v3312, %v3652
        %v3654 = vsub.f32 1.0, %v3653
        %v3655 = vmul.f32 %v3652, %v3654
        %v3656 = vadd.f32 %v3652, %v3655
        %vm3657 = vweird.f32 %v3312
        %vm3658 = vweird.f32 %v3652
        %vm3659 = vmor %vm3657, %vm3658
        %v3660 = vsel %vm3659, %v3652, %v3656
        %v3661 = vand.u32 2147483647, %v3312
        %vm3662 = vcmp.eq.f32.partialorder %v3661, 8.507059e+37
        %v3663 = vand.u32 %v3312, 2147483648
        %v3664 = vor.u32 1.1754944e-38, %v3663
        %v3665 = vsel %vm3662, %v3664, %v3660
        %v3666 = vmul.f32 1.0, %v3665
        %v3667 = vrcp.pop %v3313
        %v3668 = vmul.f32 %v3313, %v3667
        %v3669 = vsub.f32 1.0, %v3668
        %v3670 = vmul.f32 %v3667, %v3669
        %v3671 = vadd.f32 %v3667, %v3670
        %vm3672 = vweird.f32 %v3313
        %vm3673 = vweird.f32 %v3667
        %vm3674 = vmor %vm3672, %vm3673
        %v3675 = vsel %vm3674, %v3667, %v3671
        %v3676 = vand.u32 2147483647, %v3313
        %vm3677 = vcmp.eq.f32.partialorder %v3676, 8.507059e+37
        %v3678 = vand.u32 %v3313, 2147483648
        %v3679 = vor.u32 1.1754944e-38, %v3678
        %v3680 = vsel %vm3677, %v3679, %v3675
        %v3681 = vmul.f32 1.0, %v3680
        %v3682 = vrcp.pop %v3314
        %v3683 = vmul.f32 %v3314, %v3682
        %v3684 = vsub.f32 1.0, %v3683
        %v3685 = vmul.f32 %v3682, %v3684
        %v3686 = vadd.f32 %v3682, %v3685
        %vm3687 = vweird.f32 %v3314
        %vm3688 = vweird.f32 %v3682
        %vm3689 = vmor %vm3687, %vm3688
        %v3690 = vsel %vm3689, %v3682, %v3686
        %v3691 = vand.u32 2147483647, %v3314
        %vm3692 = vcmp.eq.f32.partialorder %v3691, 8.507059e+37
        %v3693 = vand.u32 %v3314, 2147483648
        %v3694 = vor.u32 1.1754944e-38, %v3693
        %v3695 = vsel %vm3692, %v3694, %v3690
        %v3696 = vmul.f32 1.0, %v3695
        %v3697 = vrcp.pop %v3315
        %v3698 = vmul.f32 %v3315, %v3697
        %v3699 = vsub.f32 1.0, %v3698
        %v3700 = vmul.f32 %v3697, %v3699
        %v3701 = vadd.f32 %v3697, %v3700
        %vm3702 = vweird.f32 %v3315
        %vm3703 = vweird.f32 %v3697
        %vm3704 = vmor %vm3702, %vm3703
        %v3705 = vsel %vm3704, %v3697, %v3701
        %v3706 = vand.u32 2147483647, %v3315
        %vm3707 = vcmp.eq.f32.partialorder %v3706, 8.507059e+37
        %v3708 = vand.u32 %v3315, 2147483648
        %v3709 = vor.u32 1.1754944e-38, %v3708
        %v3710 = vsel %vm3707, %v3709, %v3705
        %v3711 = vmul.f32 1.0, %v3710
        %v3712 = vrcp.pop %v3316
        %v3713 = vmul.f32 %v3316, %v3712
        %v3714 = vsub.f32 1.0, %v3713
        %v3715 = vmul.f32 %v3712, %v3714
        %v3716 = vadd.f32 %v3712, %v3715
        %vm3717 = vweird.f32 %v3316
        %vm3718 = vweird.f32 %v3712
        %vm3719 = vmor %vm3717, %vm3718
        %v3720 = vsel %vm3719, %v3712, %v3716
        %v3721 = vand.u32 2147483647, %v3316
        %vm3722 = vcmp.eq.f32.partialorder %v3721, 8.507059e+37
        %v3723 = vand.u32 %v3316, 2147483648
        %v3724 = vor.u32 1.1754944e-38, %v3723
        %v3725 = vsel %vm3722, %v3724, %v3720
        %v3726 = vmul.f32 1.0, %v3725
        %v3727 = vrcp.pop %v3317
        %v3728 = vmul.f32 %v3317, %v3727
        %v3729 = vsub.f32 1.0, %v3728
        %v3730 = vmul.f32 %v3727, %v3729
        %v3731 = vadd.f32 %v3727, %v3730
        %vm3732 = vweird.f32 %v3317
        %vm3733 = vweird.f32 %v3727
        %vm3734 = vmor %vm3732, %vm3733
        %v3735 = vsel %vm3734, %v3727, %v3731
        %v3736 = vand.u32 2147483647, %v3317
        %vm3737 = vcmp.eq.f32.partialorder %v3736, 8.507059e+37
        %v3738 = vand.u32 %v3317, 2147483648
        %v3739 = vor.u32 1.1754944e-38, %v3738
        %v3740 = vsel %vm3737, %v3739, %v3735
        %v3741 = vmul.f32 1.0, %v3740
        %v3742 = vrcp.pop %v3318
        %v3743 = vmul.f32 %v3318, %v3742
        %v3744 = vsub.f32 1.0, %v3743
        %v3745 = vmul.f32 %v3742, %v3744
        %v3746 = vadd.f32 %v3742, %v3745
        %vm3747 = vweird.f32 %v3318
        %vm3748 = vweird.f32 %v3742
        %vm3749 = vmor %vm3747, %vm3748
        %v3750 = vsel %vm3749, %v3742, %v3746
        %v3751 = vand.u32 2147483647, %v3318
        %vm3752 = vcmp.eq.f32.partialorder %v3751, 8.507059e+37
        %v3753 = vand.u32 %v3318, 2147483648
        %v3754 = vor.u32 1.1754944e-38, %v3753
        %v3755 = vsel %vm3752, %v3754, %v3750
        %v3756 = vmul.f32 1.0, %v3755
        %v3757 = vrcp.pop %v3319
        %v3758 = vmul.f32 %v3319, %v3757
        %v3759 = vsub.f32 1.0, %v3758
        %v3760 = vmul.f32 %v3757, %v3759
        %v3761 = vadd.f32 %v3757, %v3760
        %vm3762 = vweird.f32 %v3319
        %vm3763 = vweird.f32 %v3757
        %vm3764 = vmor %vm3762, %vm3763
        %v3765 = vsel %vm3764, %v3757, %v3761
        %v3766 = vand.u32 2147483647, %v3319
        %vm3767 = vcmp.eq.f32.partialorder %v3766, 8.507059e+37
        %v3768 = vand.u32 %v3319, 2147483648
        %v3769 = vor.u32 1.1754944e-38, %v3768
        %v3770 = vsel %vm3767, %v3769, %v3765
        %v3771 = vmul.f32 1.0, %v3770
        %v3772 = vrcp.pop %v3320
        %v3773 = vmul.f32 %v3320, %v3772
        %v3774 = vsub.f32 1.0, %v3773
        %v3775 = vmul.f32 %v3772, %v3774
        %v3776 = vadd.f32 %v3772, %v3775
        %vm3777 = vweird.f32 %v3320
        %vm3778 = vweird.f32 %v3772
        %vm3779 = vmor %vm3777, %vm3778
        %v3780 = vsel %vm3779, %v3772, %v3776
        %v3781 = vand.u32 2147483647, %v3320
        %vm3782 = vcmp.eq.f32.partialorder %v3781, 8.507059e+37
        %v3783 = vand.u32 %v3320, 2147483648
        %v3784 = vor.u32 1.1754944e-38, %v3783
        %v3785 = vsel %vm3782, %v3784, %v3780
        %v3786 = vmul.f32 1.0, %v3785
        %v3787 = vrcp.pop %v3321
        %v3788 = vmul.f32 %v3321, %v3787
        %v3789 = vsub.f32 1.0, %v3788
        %v3790 = vmul.f32 %v3787, %v3789
        %v3791 = vadd.f32 %v3787, %v3790
        %vm3792 = vweird.f32 %v3321
        %vm3793 = vweird.f32 %v3787
        %vm3794 = vmor %vm3792, %vm3793
        %v3795 = vsel %vm3794, %v3787, %v3791
        %v3796 = vand.u32 2147483647, %v3321
        %vm3797 = vcmp.eq.f32.partialorder %v3796, 8.507059e+37
        %v3798 = vand.u32 %v3321, 2147483648
        %v3799 = vor.u32 1.1754944e-38, %v3798
        %v3800 = vsel %vm3797, %v3799, %v3795
        %v3801 = vmul.f32 1.0, %v3800
        %3803 = vset.pattern.permute.xlu0 0
        %3804 = vperm.xlu0 %3803, %v3336
        %v3805 = vpop.permute.xlu0 %3804
        %3808 = vset.pattern.permute.xlu0 0
        %3809 = vperm.xlu0 %3808, %v3351
        %v3810 = vpop.permute.xlu0 %3809
        %3813 = vset.pattern.permute.xlu0 0
        %3814 = vperm.xlu0 %3813, %v3366
        %v3815 = vpop.permute.xlu0 %3814
        %3818 = vset.pattern.permute.xlu0 0
        %3819 = vperm.xlu0 %3818, %v3381
        %v3820 = vpop.permute.xlu0 %3819
        %3823 = vset.pattern.permute.xlu0 0
        %3824 = vperm.xlu0 %3823, %v3396
        %v3825 = vpop.permute.xlu0 %3824
        %3828 = vset.pattern.permute.xlu0 0
        %3829 = vperm.xlu0 %3828, %v3411
        %v3830 = vpop.permute.xlu0 %3829
        %3833 = vset.pattern.permute.xlu0 0
        %3834 = vperm.xlu0 %3833, %v3426
        %v3835 = vpop.permute.xlu0 %3834
        %3838 = vset.pattern.permute.xlu0 0
        %3839 = vperm.xlu0 %3838, %v3441
        %v3840 = vpop.permute.xlu0 %3839
        %3843 = vset.pattern.permute.xlu0 0
        %3844 = vperm.xlu0 %3843, %v3456
        %v3845 = vpop.permute.xlu0 %3844
        %3848 = vset.pattern.permute.xlu0 0
        %3849 = vperm.xlu0 %3848, %v3471
        %v3850 = vpop.permute.xlu0 %3849
        %3853 = vset.pattern.permute.xlu0 0
        %3854 = vperm.xlu0 %3853, %v3486
        %v3855 = vpop.permute.xlu0 %3854
        %3858 = vset.pattern.permute.xlu0 0
        %3859 = vperm.xlu0 %3858, %v3501
        %v3860 = vpop.permute.xlu0 %3859
        %3863 = vset.pattern.permute.xlu0 0
        %3864 = vperm.xlu0 %3863, %v3516
        %v3865 = vpop.permute.xlu0 %3864
        %3868 = vset.pattern.permute.xlu0 0
        %3869 = vperm.xlu0 %3868, %v3531
        %v3870 = vpop.permute.xlu0 %3869
        %3873 = vset.pattern.permute.xlu0 0
        %3874 = vperm.xlu0 %3873, %v3546
        %v3875 = vpop.permute.xlu0 %3874
        %3878 = vset.pattern.permute.xlu0 0
        %3879 = vperm.xlu0 %3878, %v3561
        %v3880 = vpop.permute.xlu0 %3879
        %3883 = vset.pattern.permute.xlu0 0
        %3884 = vperm.xlu0 %3883, %v3576
        %v3885 = vpop.permute.xlu0 %3884
        %3888 = vset.pattern.permute.xlu0 0
        %3889 = vperm.xlu0 %3888, %v3591
        %v3890 = vpop.permute.xlu0 %3889
        %3893 = vset.pattern.permute.xlu0 0
        %3894 = vperm.xlu0 %3893, %v3606
        %v3895 = vpop.permute.xlu0 %3894
        %3898 = vset.pattern.permute.xlu0 0
        %3899 = vperm.xlu0 %3898, %v3621
        %v3900 = vpop.permute.xlu0 %3899
        %3903 = vset.pattern.permute.xlu0 0
        %3904 = vperm.xlu0 %3903, %v3636
        %v3905 = vpop.permute.xlu0 %3904
        %3908 = vset.pattern.permute.xlu0 0
        %3909 = vperm.xlu0 %3908, %v3651
        %v3910 = vpop.permute.xlu0 %3909
        %3913 = vset.pattern.permute.xlu0 0
        %3914 = vperm.xlu0 %3913, %v3666
        %v3915 = vpop.permute.xlu0 %3914
        %3918 = vset.pattern.permute.xlu0 0
        %3919 = vperm.xlu0 %3918, %v3681
        %v3920 = vpop.permute.xlu0 %3919
        %3923 = vset.pattern.permute.xlu0 0
        %3924 = vperm.xlu0 %3923, %v3696
        %v3925 = vpop.permute.xlu0 %3924
        %3928 = vset.pattern.permute.xlu0 0
        %3929 = vperm.xlu0 %3928, %v3711
        %v3930 = vpop.permute.xlu0 %3929
        %3933 = vset.pattern.permute.xlu0 0
        %3934 = vperm.xlu0 %3933, %v3726
        %v3935 = vpop.permute.xlu0 %3934
        %3938 = vset.pattern.permute.xlu0 0
        %3939 = vperm.xlu0 %3938, %v3741
        %v3940 = vpop.permute.xlu0 %3939
        %3943 = vset.pattern.permute.xlu0 0
        %3944 = vperm.xlu0 %3943, %v3756
        %v3945 = vpop.permute.xlu0 %3944
        %3948 = vset.pattern.permute.xlu0 0
        %3949 = vperm.xlu0 %3948, %v3771
        %v3950 = vpop.permute.xlu0 %3949
        %3953 = vset.pattern.permute.xlu0 0
        %3954 = vperm.xlu0 %3953, %v3786
        %v3955 = vpop.permute.xlu0 %3954
        %3958 = vset.pattern.permute.xlu0 0
        %3959 = vperm.xlu0 %3958, %v3801
        %v3960 = vpop.permute.xlu0 %3959
        %v3962 = vmul.f32 %v3098, %v3805
        %v3963 = vmul.f32 %v3099, %v3805
        %v3964 = vmul.f32 %v3100, %v3810
        %v3965 = vmul.f32 %v3101, %v3810
        %v3966 = vmul.f32 %v3102, %v3815
        %v3967 = vmul.f32 %v3103, %v3815
        %v3968 = vmul.f32 %v3104, %v3820
        %v3969 = vmul.f32 %v3105, %v3820
        %v3970 = vmul.f32 %v3106, %v3825
        %v3971 = vmul.f32 %v3107, %v3825
        %v3972 = vmul.f32 %v3108, %v3830
        %v3973 = vmul.f32 %v3109, %v3830
        %v3974 = vmul.f32 %v3110, %v3835
        %v3975 = vmul.f32 %v3111, %v3835
        %v3976 = vmul.f32 %v3112, %v3840
        %v3977 = vmul.f32 %v3113, %v3840
        %v3978 = vmul.f32 %v3114, %v3845
        %v3979 = vmul.f32 %v3115, %v3845
        %v3980 = vmul.f32 %v3116, %v3850
        %v3981 = vmul.f32 %v3117, %v3850
        %v3982 = vmul.f32 %v3118, %v3855
        %v3983 = vmul.f32 %v3119, %v3855
        %v3984 = vmul.f32 %v3120, %v3860
        %v3985 = vmul.f32 %v3121, %v3860
        %v3986 = vmul.f32 %v3122, %v3865
        %v3987 = vmul.f32 %v3123, %v3865
        %v3988 = vmul.f32 %v3124, %v3870
        %v3989 = vmul.f32 %v3125, %v3870
        %v3990 = vmul.f32 %v3126, %v3875
        %v3991 = vmul.f32 %v3127, %v3875
        %v3992 = vmul.f32 %v3128, %v3880
        %v3993 = vmul.f32 %v3129, %v3880
        %v3994 = vmul.f32 %v3130, %v3885
        %v3995 = vmul.f32 %v3131, %v3885
        %v3996 = vmul.f32 %v3132, %v3890
        %v3997 = vmul.f32 %v3133, %v3890
        %v3998 = vmul.f32 %v3134, %v3895
        %v3999 = vmul.f32 %v3135, %v3895
        %v4000 = vmul.f32 %v3136, %v3900
        %v4001 = vmul.f32 %v3137, %v3900
        %v4002 = vmul.f32 %v3138, %v3905
        %v4003 = vmul.f32 %v3139, %v3905
        %v4004 = vmul.f32 %v3140, %v3910
        %v4005 = vmul.f32 %v3141, %v3910
        %v4006 = vmul.f32 %v3142, %v3915
        %v4007 = vmul.f32 %v3143, %v3915
        %v4008 = vmul.f32 %v3144, %v3920
        %v4009 = vmul.f32 %v3145, %v3920
        %v4010 = vmul.f32 %v3146, %v3925
        %v4011 = vmul.f32 %v3147, %v3925
        %v4012 = vmul.f32 %v3148, %v3930
        %v4013 = vmul.f32 %v3149, %v3930
        %v4014 = vmul.f32 %v3150, %v3935
        %v4015 = vmul.f32 %v3151, %v3935
        %v4016 = vmul.f32 %v3152, %v3940
        %v4017 = vmul.f32 %v3153, %v3940
        %v4018 = vmul.f32 %v3154, %v3945
        %v4019 = vmul.f32 %v3155, %v3945
        %v4020 = vmul.f32 %v3156, %v3950
        %v4021 = vmul.f32 %v3157, %v3950
        %v4022 = vmul.f32 %v3158, %v3955
        %v4023 = vmul.f32 %v3159, %v3955
        %v4024 = vmul.f32 %v3160, %v3960
        %v4025 = vmul.f32 %v3161, %v3960
        %v4026 = vpack.c.bf16 %v3963, %v3962
        %v4027 = vpack.c.bf16 %v3965, %v3964
        %v4028 = vpack.c.bf16 %v3967, %v3966
        %v4029 = vpack.c.bf16 %v3969, %v3968
        %v4030 = vpack.c.bf16 %v3971, %v3970
        %v4031 = vpack.c.bf16 %v3973, %v3972
        %v4032 = vpack.c.bf16 %v3975, %v3974
        %v4033 = vpack.c.bf16 %v3977, %v3976
        %v4034 = vpack.c.bf16 %v3979, %v3978
        %v4035 = vpack.c.bf16 %v3981, %v3980
        %v4036 = vpack.c.bf16 %v3983, %v3982
        %v4037 = vpack.c.bf16 %v3985, %v3984
        %v4038 = vpack.c.bf16 %v3987, %v3986
        %v4039 = vpack.c.bf16 %v3989, %v3988
        %v4040 = vpack.c.bf16 %v3991, %v3990
        %v4041 = vpack.c.bf16 %v3993, %v3992
        %v4042 = vpack.c.bf16 %v3995, %v3994
        %v4043 = vpack.c.bf16 %v3997, %v3996
        %v4044 = vpack.c.bf16 %v3999, %v3998
        %v4045 = vpack.c.bf16 %v4001, %v4000
        %v4046 = vpack.c.bf16 %v4003, %v4002
        %v4047 = vpack.c.bf16 %v4005, %v4004
        %v4048 = vpack.c.bf16 %v4007, %v4006
        %v4049 = vpack.c.bf16 %v4009, %v4008
        %v4050 = vpack.c.bf16 %v4011, %v4010
        %v4051 = vpack.c.bf16 %v4013, %v4012
        %v4052 = vpack.c.bf16 %v4015, %v4014
        %v4053 = vpack.c.bf16 %v4017, %v4016
        %v4054 = vpack.c.bf16 %v4019, %v4018
        %v4055 = vpack.c.bf16 %v4021, %v4020
        %v4056 = vpack.c.bf16 %v4023, %v4022
        %v4057 = vpack.c.bf16 %v4025, %v4024
        %4058 = vst [vmem:[%s474] sm:$0xff] %v4026
        %4059 = vst [vmem:[%s474 + $0x8] sm:$0xff] %v4027
        %4060 = vst [vmem:[%s474 + $0x10] sm:$0xff] %v4028
        %4061 = vst [vmem:[%s474 + $0x18] sm:$0xff] %v4029
        %4062 = vst [vmem:[%s474 + $0x20] sm:$0xff] %v4030
        %4063 = vst [vmem:[%s474 + $0x28] sm:$0xff] %v4031
        %4064 = vst [vmem:[%s474 + $0x30] sm:$0xff] %v4032
        %4065 = vst [vmem:[%s474 + $0x38] sm:$0xff] %v4033
        %4066 = vst [vmem:[%s474 + $0x40] sm:$0xff] %v4034
        %4067 = vst [vmem:[%s474 + $0x48] sm:$0xff] %v4035
        %4068 = vst [vmem:[%s474 + $0x50] sm:$0xff] %v4036
        %4069 = vst [vmem:[%s474 + $0x58] sm:$0xff] %v4037
        %4070 = vst [vmem:[%s474 + $0x60] sm:$0xff] %v4038
        %4071 = vst [vmem:[%s474 + $0x68] sm:$0xff] %v4039
        %4072 = vst [vmem:[%s474 + $0x70] sm:$0xff] %v4040
        %4073 = vst [vmem:[%s474 + $0x78] sm:$0xff] %v4041
        %4074 = vst [vmem:[%s474 + $0x80] sm:$0xff] %v4042
        %4075 = vst [vmem:[%s474 + $0x88] sm:$0xff] %v4043
        %4076 = vst [vmem:[%s474 + $0x90] sm:$0xff] %v4044
        %4077 = vst [vmem:[%s474 + $0x98] sm:$0xff] %v4045
        %4078 = vst [vmem:[%s474 + $0xa0] sm:$0xff] %v4046
        %4079 = vst [vmem:[%s474 + $0xa8] sm:$0xff] %v4047
        %4080 = vst [vmem:[%s474 + $0xb0] sm:$0xff] %v4048
        %4081 = vst [vmem:[%s474 + $0xb8] sm:$0xff] %v4049
        %4082 = vst [vmem:[%s474 + $0xc0] sm:$0xff] %v4050
        %4083 = vst [vmem:[%s474 + $0xc8] sm:$0xff] %v4051
        %4084 = vst [vmem:[%s474 + $0xd0] sm:$0xff] %v4052
        %4085 = vst [vmem:[%s474 + $0xd8] sm:$0xff] %v4053
        %4086 = vst [vmem:[%s474 + $0xe0] sm:$0xff] %v4054
        %4087 = vst [vmem:[%s474 + $0xe8] sm:$0xff] %v4055
        %4088 = vst [vmem:[%s474 + $0xf0] sm:$0xff] %v4056
        %4089 = vst [vmem:[%s474 + $0xf8] sm:$0xff] %v4057
        %v4090 = vld [vmem:[%s10] sm:$0xf]
        %v4091 = vld [vmem:[%s10 + $0x4] sm:$0xf]
        %v4092 = vld [vmem:[%s10 + $0x8] sm:$0xf]
        %v4093 = vld [vmem:[%s10 + $0xc] sm:$0xf]
        %v4094 = vld [vmem:[%s10 + $0x10] sm:$0xf]
        %v4095 = vld [vmem:[%s10 + $0x14] sm:$0xf]
        %v4096 = vld [vmem:[%s10 + $0x18] sm:$0xf]
        %v4097 = vld [vmem:[%s10 + $0x1c] sm:$0xf]
        %v4098 = vld [vmem:[%s10 + $0x20] sm:$0xf]
        %v4099 = vld [vmem:[%s10 + $0x24] sm:$0xf]
        %v4100 = vld [vmem:[%s10 + $0x28] sm:$0xf]
        %v4101 = vld [vmem:[%s10 + $0x2c] sm:$0xf]
        %v4102 = vld [vmem:[%s10 + $0x30] sm:$0xf]
        %v4103 = vld [vmem:[%s10 + $0x34] sm:$0xf]
        %v4104 = vld [vmem:[%s10 + $0x38] sm:$0xf]
        %v4105 = vld [vmem:[%s10 + $0x3c] sm:$0xf]
        %v4106 = vld [vmem:[%s10 + $0x40] sm:$0xf]
        %v4107 = vld [vmem:[%s10 + $0x44] sm:$0xf]
        %v4108 = vld [vmem:[%s10 + $0x48] sm:$0xf]
        %v4109 = vld [vmem:[%s10 + $0x4c] sm:$0xf]
        %v4110 = vld [vmem:[%s10 + $0x50] sm:$0xf]
        %v4111 = vld [vmem:[%s10 + $0x54] sm:$0xf]
        %v4112 = vld [vmem:[%s10 + $0x58] sm:$0xf]
        %v4113 = vld [vmem:[%s10 + $0x5c] sm:$0xf]
        %v4114 = vld [vmem:[%s10 + $0x60] sm:$0xf]
        %v4115 = vld [vmem:[%s10 + $0x64] sm:$0xf]
        %v4116 = vld [vmem:[%s10 + $0x68] sm:$0xf]
        %v4117 = vld [vmem:[%s10 + $0x6c] sm:$0xf]
        %v4118 = vld [vmem:[%s10 + $0x70] sm:$0xf]
        %v4119 = vld [vmem:[%s10 + $0x74] sm:$0xf]
        %v4120 = vld [vmem:[%s10 + $0x78] sm:$0xf]
        %v4121 = vld [vmem:[%s10 + $0x7c] sm:$0xf]
        %v4122 = vld [vmem:[%s11] sm:$0x1]
        %v4124 = vperm.slane %v4122, 0
        %v4158 = vunpack.c.l.b16 %v4026
        %v4159 = vunpack.c.h.b16 %v4026
        %v4160 = vunpack.c.l.b16 %v4027
        %v4161 = vunpack.c.h.b16 %v4027
        %v4162 = vunpack.c.l.b16 %v4028
        %v4163 = vunpack.c.h.b16 %v4028
        %v4164 = vunpack.c.l.b16 %v4029
        %v4165 = vunpack.c.h.b16 %v4029
        %v4166 = vunpack.c.l.b16 %v4030
        %v4167 = vunpack.c.h.b16 %v4030
        %v4168 = vunpack.c.l.b16 %v4031
        %v4169 = vunpack.c.h.b16 %v4031
        %v4170 = vunpack.c.l.b16 %v4032
        %v4171 = vunpack.c.h.b16 %v4032
        %v4172 = vunpack.c.l.b16 %v4033
        %v4173 = vunpack.c.h.b16 %v4033
        %v4174 = vunpack.c.l.b16 %v4034
        %v4175 = vunpack.c.h.b16 %v4034
        %v4176 = vunpack.c.l.b16 %v4035
        %v4177 = vunpack.c.h.b16 %v4035
        %v4178 = vunpack.c.l.b16 %v4036
        %v4179 = vunpack.c.h.b16 %v4036
        %v4180 = vunpack.c.l.b16 %v4037
        %v4181 = vunpack.c.h.b16 %v4037
        %v4182 = vunpack.c.l.b16 %v4038
        %v4183 = vunpack.c.h.b16 %v4038
        %v4184 = vunpack.c.l.b16 %v4039
        %v4185 = vunpack.c.h.b16 %v4039
        %v4186 = vunpack.c.l.b16 %v4040
        %v4187 = vunpack.c.h.b16 %v4040
        %v4188 = vunpack.c.l.b16 %v4041
        %v4189 = vunpack.c.h.b16 %v4041
        %v4190 = vunpack.c.l.b16 %v4042
        %v4191 = vunpack.c.h.b16 %v4042
        %v4192 = vunpack.c.l.b16 %v4043
        %v4193 = vunpack.c.h.b16 %v4043
        %v4194 = vunpack.c.l.b16 %v4044
        %v4195 = vunpack.c.h.b16 %v4044
        %v4196 = vunpack.c.l.b16 %v4045
        %v4197 = vunpack.c.h.b16 %v4045
        %v4198 = vunpack.c.l.b16 %v4046
        %v4199 = vunpack.c.h.b16 %v4046
        %v4200 = vunpack.c.l.b16 %v4047
        %v4201 = vunpack.c.h.b16 %v4047
        %v4202 = vunpack.c.l.b16 %v4048
        %v4203 = vunpack.c.h.b16 %v4048
        %v4204 = vunpack.c.l.b16 %v4049
        %v4205 = vunpack.c.h.b16 %v4049
        %v4206 = vunpack.c.l.b16 %v4050
        %v4207 = vunpack.c.h.b16 %v4050
        %v4208 = vunpack.c.l.b16 %v4051
        %v4209 = vunpack.c.h.b16 %v4051
        %v4210 = vunpack.c.l.b16 %v4052
        %v4211 = vunpack.c.h.b16 %v4052
        %v4212 = vunpack.c.l.b16 %v4053
        %v4213 = vunpack.c.h.b16 %v4053
        %v4214 = vunpack.c.l.b16 %v4054
        %v4215 = vunpack.c.h.b16 %v4054
        %v4216 = vunpack.c.l.b16 %v4055
        %v4217 = vunpack.c.h.b16 %v4055
        %v4218 = vunpack.c.l.b16 %v4056
        %v4219 = vunpack.c.h.b16 %v4056
        %v4220 = vunpack.c.l.b16 %v4057
        %v4221 = vunpack.c.h.b16 %v4057
        %v4222 = vpack.c.b16 %v4160, %v4158
        %v4223 = vpack.c.b16 %v4161, %v4159
        %v4224 = vpack.c.b16 %v4164, %v4162
        %v4225 = vpack.c.b16 %v4165, %v4163
        %v4226 = vpack.c.b16 %v4168, %v4166
        %v4227 = vpack.c.b16 %v4169, %v4167
        %v4228 = vpack.c.b16 %v4172, %v4170
        %v4229 = vpack.c.b16 %v4173, %v4171
        %v4230 = vpack.c.b16 %v4176, %v4174
        %v4231 = vpack.c.b16 %v4177, %v4175
        %v4232 = vpack.c.b16 %v4180, %v4178
        %v4233 = vpack.c.b16 %v4181, %v4179
        %v4234 = vpack.c.b16 %v4184, %v4182
        %v4235 = vpack.c.b16 %v4185, %v4183
        %v4236 = vpack.c.b16 %v4188, %v4186
        %v4237 = vpack.c.b16 %v4189, %v4187
        %v4238 = vpack.c.b16 %v4192, %v4190
        %v4239 = vpack.c.b16 %v4193, %v4191
        %v4240 = vpack.c.b16 %v4196, %v4194
        %v4241 = vpack.c.b16 %v4197, %v4195
        %v4242 = vpack.c.b16 %v4200, %v4198
        %v4243 = vpack.c.b16 %v4201, %v4199
        %v4244 = vpack.c.b16 %v4204, %v4202
        %v4245 = vpack.c.b16 %v4205, %v4203
        %v4246 = vpack.c.b16 %v4208, %v4206
        %v4247 = vpack.c.b16 %v4209, %v4207
        %v4248 = vpack.c.b16 %v4212, %v4210
        %v4249 = vpack.c.b16 %v4213, %v4211
        %v4250 = vpack.c.b16 %v4216, %v4214
        %v4251 = vpack.c.b16 %v4217, %v4215
        %v4252 = vpack.c.b16 %v4220, %v4218
        %v4253 = vpack.c.b16 %v4221, %v4219
        %v4318 = vunpack.c.l.b16 %v4090
        %v4319 = vunpack.c.l.b16 %v4091
        %v4320 = vunpack.c.l.b16 %v4092
        %v4321 = vunpack.c.l.b16 %v4093
        %v4322 = vunpack.c.l.b16 %v4094
        %v4323 = vunpack.c.l.b16 %v4095
        %v4324 = vunpack.c.l.b16 %v4096
        %v4325 = vunpack.c.l.b16 %v4097
        %v4326 = vunpack.c.l.b16 %v4098
        %v4327 = vunpack.c.l.b16 %v4099
        %v4328 = vunpack.c.l.b16 %v4100
        %v4329 = vunpack.c.l.b16 %v4101
        %v4330 = vunpack.c.l.b16 %v4102
        %v4331 = vunpack.c.l.b16 %v4103
        %v4332 = vunpack.c.l.b16 %v4104
        %v4333 = vunpack.c.l.b16 %v4105
        %v4334 = vunpack.c.l.b16 %v4106
        %v4335 = vunpack.c.l.b16 %v4107
        %v4336 = vunpack.c.l.b16 %v4108
        %v4337 = vunpack.c.l.b16 %v4109
        %v4338 = vunpack.c.l.b16 %v4110
        %v4339 = vunpack.c.l.b16 %v4111
        %v4340 = vunpack.c.l.b16 %v4112
        %v4341 = vunpack.c.l.b16 %v4113
        %v4342 = vunpack.c.l.b16 %v4114
        %v4343 = vunpack.c.l.b16 %v4115
        %v4344 = vunpack.c.l.b16 %v4116
        %v4345 = vunpack.c.l.b16 %v4117
        %v4346 = vunpack.c.l.b16 %v4118
        %v4347 = vunpack.c.l.b16 %v4119
        %v4348 = vunpack.c.l.b16 %v4120
        %v4349 = vunpack.c.l.b16 %v4121
        %v4350 = vpack.c.b16 %v4319, %v4318
        %v4351 = vpack.c.b16 %v4321, %v4320
        %v4352 = vpack.c.b16 %v4323, %v4322
        %v4353 = vpack.c.b16 %v4325, %v4324
        %v4354 = vpack.c.b16 %v4327, %v4326
        %v4355 = vpack.c.b16 %v4329, %v4328
        %v4356 = vpack.c.b16 %v4331, %v4330
        %v4357 = vpack.c.b16 %v4333, %v4332
        %v4358 = vpack.c.b16 %v4335, %v4334
        %v4359 = vpack.c.b16 %v4337, %v4336
        %v4360 = vpack.c.b16 %v4339, %v4338
        %v4361 = vpack.c.b16 %v4341, %v4340
        %v4362 = vpack.c.b16 %v4343, %v4342
        %v4363 = vpack.c.b16 %v4345, %v4344
        %v4364 = vpack.c.b16 %v4347, %v4346
        %v4365 = vpack.c.b16 %v4349, %v4348
        %4382 = vmatpush.bf16.msra.mxu0 %v4357
        %4383 = vmatpush.bf16.msra.mxu0 %v4356
        %4384 = vmatpush.bf16.msra.mxu0 %v4355
        %4385 = vmatpush.bf16.msra.mxu0 %v4354
        %4386 = vmatpush.bf16.msra.mxu0 %v4353
        %4387 = vmatpush.bf16.msra.mxu0 %v4352
        %4388 = vmatpush.bf16.msra.mxu0 %v4351
        %4389 = vmatpush.bf16.msra.mxu0 %v4350
        %4390 = vmatmul.bf16.gmra.mxu0 %v4222
        %v4391 = vpop.f32.mrf.mxu0
        %v4392 = vadd.f32 %v4124, %v4391
        %v4393 = vpop.f32.mrf.mxu0
        %v4394 = vadd.f32 %v4124, %v4393
        %4395 = vmatmul.bf16.gmra.mxu0 %v4224
        %v4396 = vpop.f32.mrf.mxu0
        %v4397 = vadd.f32 %v4124, %v4396
        %v4398 = vpop.f32.mrf.mxu0
        %v4399 = vadd.f32 %v4124, %v4398
        %4400 = vmatmul.bf16.gmra.mxu0 %v4226
        %v4401 = vpop.f32.mrf.mxu0
        %v4402 = vadd.f32 %v4124, %v4401
        %v4403 = vpop.f32.mrf.mxu0
        %v4404 = vadd.f32 %v4124, %v4403
        %4405 = vmatmul.bf16.gmra.mxu0 %v4228
        %v4406 = vpop.f32.mrf.mxu0
        %v4407 = vadd.f32 %v4124, %v4406
        %v4408 = vpop.f32.mrf.mxu0
        %v4409 = vadd.f32 %v4124, %v4408
        %4410 = vmatmul.bf16.gmra.mxu0 %v4230
        %v4411 = vpop.f32.mrf.mxu0
        %v4412 = vadd.f32 %v4124, %v4411
        %v4413 = vpop.f32.mrf.mxu0
        %v4414 = vadd.f32 %v4124, %v4413
        %4415 = vmatmul.bf16.gmra.mxu0 %v4232
        %v4416 = vpop.f32.mrf.mxu0
        %v4417 = vadd.f32 %v4124, %v4416
        %v4418 = vpop.f32.mrf.mxu0
        %v4419 = vadd.f32 %v4124, %v4418
        %4420 = vmatmul.bf16.gmra.mxu0 %v4234
        %v4421 = vpop.f32.mrf.mxu0
        %v4422 = vadd.f32 %v4124, %v4421
        %v4423 = vpop.f32.mrf.mxu0
        %v4424 = vadd.f32 %v4124, %v4423
        %4425 = vmatmul.bf16.gmra.mxu0 %v4236
        %v4426 = vpop.f32.mrf.mxu0
        %v4427 = vadd.f32 %v4124, %v4426
        %v4428 = vpop.f32.mrf.mxu0
        %v4429 = vadd.f32 %v4124, %v4428
        %4430 = vmatmul.bf16.gmra.mxu0 %v4238
        %v4431 = vpop.f32.mrf.mxu0
        %v4432 = vadd.f32 %v4124, %v4431
        %v4433 = vpop.f32.mrf.mxu0
        %v4434 = vadd.f32 %v4124, %v4433
        %4435 = vmatmul.bf16.gmra.mxu0 %v4240
        %v4436 = vpop.f32.mrf.mxu0
        %v4437 = vadd.f32 %v4124, %v4436
        %v4438 = vpop.f32.mrf.mxu0
        %v4439 = vadd.f32 %v4124, %v4438
        %4440 = vmatmul.bf16.gmra.mxu0 %v4242
        %v4441 = vpop.f32.mrf.mxu0
        %v4442 = vadd.f32 %v4124, %v4441
        %v4443 = vpop.f32.mrf.mxu0
        %v4444 = vadd.f32 %v4124, %v4443
        %4445 = vmatmul.bf16.gmra.mxu0 %v4244
        %v4446 = vpop.f32.mrf.mxu0
        %v4447 = vadd.f32 %v4124, %v4446
        %v4448 = vpop.f32.mrf.mxu0
        %v4449 = vadd.f32 %v4124, %v4448
        %4450 = vmatmul.bf16.gmra.mxu0 %v4246
        %v4451 = vpop.f32.mrf.mxu0
        %v4452 = vadd.f32 %v4124, %v4451
        %v4453 = vpop.f32.mrf.mxu0
        %v4454 = vadd.f32 %v4124, %v4453
        %4455 = vmatmul.bf16.gmra.mxu0 %v4248
        %v4456 = vpop.f32.mrf.mxu0
        %v4457 = vadd.f32 %v4124, %v4456
        %v4458 = vpop.f32.mrf.mxu0
        %v4459 = vadd.f32 %v4124, %v4458
        %4460 = vmatmul.bf16.gmra.mxu0 %v4250
        %v4461 = vpop.f32.mrf.mxu0
        %v4462 = vadd.f32 %v4124, %v4461
        %v4463 = vpop.f32.mrf.mxu0
        %v4464 = vadd.f32 %v4124, %v4463
        %4465 = vmatmul.bf16.gmra.mxu0 %v4252
        %v4466 = vpop.f32.mrf.mxu0
        %v4467 = vadd.f32 %v4124, %v4466
        %v4468 = vpop.f32.mrf.mxu0
        %v4469 = vadd.f32 %v4124, %v4468
        %4470 = vdwg.mxu0
        %4471 = vmatpush.bf16.msra.mxu0 %v4365
        %4472 = vmatpush.bf16.msra.mxu0 %v4364
        %4473 = vmatpush.bf16.msra.mxu0 %v4363
        %4474 = vmatpush.bf16.msra.mxu0 %v4362
        %4475 = vmatpush.bf16.msra.mxu0 %v4361
        %4476 = vmatpush.bf16.msra.mxu0 %v4360
        %4477 = vmatpush.bf16.msra.mxu0 %v4359
        %4478 = vmatpush.bf16.msra.mxu0 %v4358
        %4479 = vmatmul.bf16.gmra.mxu0 %v4223
        %v4480 = vpop.f32.mrf.mxu0
        %v4481 = vadd.f32 %v4392, %v4480
        %v4482 = vpop.f32.mrf.mxu0
        %v4483 = vadd.f32 %v4394, %v4482
        %4484 = vmatmul.bf16.gmra.mxu0 %v4225
        %v4485 = vpop.f32.mrf.mxu0
        %v4486 = vadd.f32 %v4397, %v4485
        %v4487 = vpop.f32.mrf.mxu0
        %v4488 = vadd.f32 %v4399, %v4487
        %4489 = vmatmul.bf16.gmra.mxu0 %v4227
        %v4490 = vpop.f32.mrf.mxu0
        %v4491 = vadd.f32 %v4402, %v4490
        %v4492 = vpop.f32.mrf.mxu0
        %v4493 = vadd.f32 %v4404, %v4492
        %4494 = vmatmul.bf16.gmra.mxu0 %v4229
        %v4495 = vpop.f32.mrf.mxu0
        %v4496 = vadd.f32 %v4407, %v4495
        %v4497 = vpop.f32.mrf.mxu0
        %v4498 = vadd.f32 %v4409, %v4497
        %4499 = vmatmul.bf16.gmra.mxu0 %v4231
        %v4500 = vpop.f32.mrf.mxu0
        %v4501 = vadd.f32 %v4412, %v4500
        %v4502 = vpop.f32.mrf.mxu0
        %v4503 = vadd.f32 %v4414, %v4502
        %4504 = vmatmul.bf16.gmra.mxu0 %v4233
        %v4505 = vpop.f32.mrf.mxu0
        %v4506 = vadd.f32 %v4417, %v4505
        %v4507 = vpop.f32.mrf.mxu0
        %v4508 = vadd.f32 %v4419, %v4507
        %4509 = vmatmul.bf16.gmra.mxu0 %v4235
        %v4510 = vpop.f32.mrf.mxu0
        %v4511 = vadd.f32 %v4422, %v4510
        %v4512 = vpop.f32.mrf.mxu0
        %v4513 = vadd.f32 %v4424, %v4512
        %4514 = vmatmul.bf16.gmra.mxu0 %v4237
        %v4515 = vpop.f32.mrf.mxu0
        %v4516 = vadd.f32 %v4427, %v4515
        %v4517 = vpop.f32.mrf.mxu0
        %v4518 = vadd.f32 %v4429, %v4517
        %4519 = vmatmul.bf16.gmra.mxu0 %v4239
        %v4520 = vpop.f32.mrf.mxu0
        %v4521 = vadd.f32 %v4432, %v4520
        %v4522 = vpop.f32.mrf.mxu0
        %v4523 = vadd.f32 %v4434, %v4522
        %4524 = vmatmul.bf16.gmra.mxu0 %v4241
        %v4525 = vpop.f32.mrf.mxu0
        %v4526 = vadd.f32 %v4437, %v4525
        %v4527 = vpop.f32.mrf.mxu0
        %v4528 = vadd.f32 %v4439, %v4527
        %4529 = vmatmul.bf16.gmra.mxu0 %v4243
        %v4530 = vpop.f32.mrf.mxu0
        %v4531 = vadd.f32 %v4442, %v4530
        %v4532 = vpop.f32.mrf.mxu0
        %v4533 = vadd.f32 %v4444, %v4532
        %4534 = vmatmul.bf16.gmra.mxu0 %v4245
        %v4535 = vpop.f32.mrf.mxu0
        %v4536 = vadd.f32 %v4447, %v4535
        %v4537 = vpop.f32.mrf.mxu0
        %v4538 = vadd.f32 %v4449, %v4537
        %4539 = vmatmul.bf16.gmra.mxu0 %v4247
        %v4540 = vpop.f32.mrf.mxu0
        %v4541 = vadd.f32 %v4452, %v4540
        %v4542 = vpop.f32.mrf.mxu0
        %v4543 = vadd.f32 %v4454, %v4542
        %4544 = vmatmul.bf16.gmra.mxu0 %v4249
        %v4545 = vpop.f32.mrf.mxu0
        %v4546 = vadd.f32 %v4457, %v4545
        %v4547 = vpop.f32.mrf.mxu0
        %v4548 = vadd.f32 %v4459, %v4547
        %4549 = vmatmul.bf16.gmra.mxu0 %v4251
        %v4550 = vpop.f32.mrf.mxu0
        %v4551 = vadd.f32 %v4462, %v4550
        %v4552 = vpop.f32.mrf.mxu0
        %v4553 = vadd.f32 %v4464, %v4552
        %4554 = vmatmul.bf16.gmra.mxu0 %v4253
        %v4555 = vpop.f32.mrf.mxu0
        %v4556 = vadd.f32 %v4467, %v4555
        %v4557 = vpop.f32.mrf.mxu0
        %v4558 = vadd.f32 %v4469, %v4557
        %4559 = vdwg.mxu0
        %v4560 = vpack.c.bf16 %v4481, %v4481
        %v4561 = vpack.c.bf16 %v4483, %v4483
        %v4562 = vpack.c.bf16 %v4486, %v4486
        %v4563 = vpack.c.bf16 %v4488, %v4488
        %v4564 = vpack.c.bf16 %v4491, %v4491
        %v4565 = vpack.c.bf16 %v4493, %v4493
        %v4566 = vpack.c.bf16 %v4496, %v4496
        %v4567 = vpack.c.bf16 %v4498, %v4498
        %v4568 = vpack.c.bf16 %v4501, %v4501
        %v4569 = vpack.c.bf16 %v4503, %v4503
        %v4570 = vpack.c.bf16 %v4506, %v4506
        %v4571 = vpack.c.bf16 %v4508, %v4508
        %v4572 = vpack.c.bf16 %v4511, %v4511
        %v4573 = vpack.c.bf16 %v4513, %v4513
        %v4574 = vpack.c.bf16 %v4516, %v4516
        %v4575 = vpack.c.bf16 %v4518, %v4518
        %v4576 = vpack.c.bf16 %v4521, %v4521
        %v4577 = vpack.c.bf16 %v4523, %v4523
        %v4578 = vpack.c.bf16 %v4526, %v4526
        %v4579 = vpack.c.bf16 %v4528, %v4528
        %v4580 = vpack.c.bf16 %v4531, %v4531
        %v4581 = vpack.c.bf16 %v4533, %v4533
        %v4582 = vpack.c.bf16 %v4536, %v4536
        %v4583 = vpack.c.bf16 %v4538, %v4538
        %v4584 = vpack.c.bf16 %v4541, %v4541
        %v4585 = vpack.c.bf16 %v4543, %v4543
        %v4586 = vpack.c.bf16 %v4546, %v4546
        %v4587 = vpack.c.bf16 %v4548, %v4548
        %v4588 = vpack.c.bf16 %v4551, %v4551
        %v4589 = vpack.c.bf16 %v4553, %v4553
        %v4590 = vpack.c.bf16 %v4556, %v4556
        %v4591 = vpack.c.bf16 %v4558, %v4558
        %4592 = vst [vmem:[%s481] sm:$0xf] %v4560
        %4593 = vst [vmem:[%s481 + $0x4] sm:$0xf] %v4561
        %4594 = vst [vmem:[%s481 + $0x8] sm:$0xf] %v4562
        %4595 = vst [vmem:[%s481 + $0xc] sm:$0xf] %v4563
        %4596 = vst [vmem:[%s481 + $0x10] sm:$0xf] %v4564
        %4597 = vst [vmem:[%s481 + $0x14] sm:$0xf] %v4565
        %4598 = vst [vmem:[%s481 + $0x18] sm:$0xf] %v4566
        %4599 = vst [vmem:[%s481 + $0x1c] sm:$0xf] %v4567
        %4600 = vst [vmem:[%s481 + $0x20] sm:$0xf] %v4568
        %4601 = vst [vmem:[%s481 + $0x24] sm:$0xf] %v4569
        %4602 = vst [vmem:[%s481 + $0x28] sm:$0xf] %v4570
        %4603 = vst [vmem:[%s481 + $0x2c] sm:$0xf] %v4571
        %4604 = vst [vmem:[%s481 + $0x30] sm:$0xf] %v4572
        %4605 = vst [vmem:[%s481 + $0x34] sm:$0xf] %v4573
        %4606 = vst [vmem:[%s481 + $0x38] sm:$0xf] %v4574
        %4607 = vst [vmem:[%s481 + $0x3c] sm:$0xf] %v4575
        %4608 = vst [vmem:[%s481 + $0x40] sm:$0xf] %v4576
        %4609 = vst [vmem:[%s481 + $0x44] sm:$0xf] %v4577
        %4610 = vst [vmem:[%s481 + $0x48] sm:$0xf] %v4578
        %4611 = vst [vmem:[%s481 + $0x4c] sm:$0xf] %v4579
        %4612 = vst [vmem:[%s481 + $0x50] sm:$0xf] %v4580
        %4613 = vst [vmem:[%s481 + $0x54] sm:$0xf] %v4581
        %4614 = vst [vmem:[%s481 + $0x58] sm:$0xf] %v4582
        %4615 = vst [vmem:[%s481 + $0x5c] sm:$0xf] %v4583
        %4616 = vst [vmem:[%s481 + $0x60] sm:$0xf] %v4584
        %4617 = vst [vmem:[%s481 + $0x64] sm:$0xf] %v4585
        %4618 = vst [vmem:[%s481 + $0x68] sm:$0xf] %v4586
        %4619 = vst [vmem:[%s481 + $0x6c] sm:$0xf] %v4587
        %4620 = vst [vmem:[%s481 + $0x70] sm:$0xf] %v4588
        %4621 = vst [vmem:[%s481 + $0x74] sm:$0xf] %v4589
        %4622 = vst [vmem:[%s481 + $0x78] sm:$0xf] %v4590
        %4623 = vst [vmem:[%s481 + $0x7c] sm:$0xf] %v4591
        %s4624 = sand.u32 %s306, 1
        %s4625 = scalar_lea.sflag [#allocation3], %s4624
        %s4626 = sand.u32 %s306, 1
        %s4627 = smul.addr %s4626, 256
        %s4628 = scalar_lea.vmem [#allocation2], %s4627
        %s4629 = sand.u32 %s332, 1
        %s4630 = scalar_lea.sflag [#allocation5], %s4629
        %s4631 = sand.u32 %s332, 1
        %s4632 = smul.addr %s4631, 128
        %s4633 = scalar_lea.vmem [#allocation4], %s4632
        // Predicated region
        $region69: #{decoder_forward.3} parent=67 // pred_check
          %p4634 = pneg %p316
        $region70: #{decoder_forward.3} parent=67 // pred_check_branch
          %4636 = sbr.rel (%p4634) target = $region72
        $region71: #{decoder_forward.3} parent=67 // pred_region
          %s4637 = smul.u32 32, %s31
          %4639 = vsyncadd %s4625, 0
          %s4640 = smul.addr %s4637, 2
          %s4641 = smul.addr %s4640, 4
          %s4642 = scalar_lea.hbm %s12, %s4641
          %s4643 = sshll.u32 %s4628, 4
          %s4644 = int_to_ptr.vmem [resolvable:$true] %s4643
          %s4645 = sshll.u32 %s4642, 4
          %s4646 = int_to_ptr.hbm [resolvable:$true] %s4645
          %4651 = dma.vmem_to_hbm [thread:$0]  %s4644, 4096, %s4646, %s4625, 128, 128, 8
        $region72: #{decoder_forward.3} parent=67 // pred_fallthru
          _
        // Predicated region
        $region73: #{decoder_forward.3} parent=67 // pred_check
          %p4652 = pneg %p342
        $region74: #{decoder_forward.3} parent=67 // pred_check_branch
          %4654 = sbr.rel (%p4652) target = $region76
        $region75: #{decoder_forward.3} parent=67 // pred_region
          %s4655 = smul.u32 32, %s31
          %4657 = vsyncadd %s4630, 0
          %s4658 = smul.addr %s4655, 4
          %s4659 = scalar_lea.hbm %s13, %s4658
          %s4660 = sshll.u32 %s4633, 4
          %s4661 = int_to_ptr.vmem [resolvable:$true] %s4660
          %s4662 = sshll.u32 %s4659, 4
          %s4663 = int_to_ptr.hbm [resolvable:$true] %s4662
          %4668 = dma.vmem_to_hbm [thread:$0]  %s4661, 2048, %s4663, %s4630, 64, 64, 4
        $region76: #{decoder_forward.3} parent=67 // pred_fallthru
          _
      $region68: #{decoder_forward.3} parent=5 // pred_fallthru
        _
      %p4669 = scmp.le.s32.totalorder 2, %s26
      // Predicated region
      $region77: #{decoder_forward.3} parent=5 // pred_check
        %p4670 = pneg %p4669
      $region78: #{decoder_forward.3} parent=5 // pred_check_branch
        %4672 = sbr.rel (%p4670) target = $region80
      $region79: #{decoder_forward.3} parent=5 // pred_region
        %s4673 = ssub.s32 %s26, 2
        // Predicated region
        $region81: #{decoder_forward.3} parent=79 // pred_check
          %p4674 = pneg %p322
        $region82: #{decoder_forward.3} parent=79 // pred_check_branch
          %4676 = sbr.rel (%p4674) target = $region84
        $region83: #{decoder_forward.3} parent=79 // pred_region
          %s4677 = sand.u32 %s307, 1
          %s4678 = scalar_lea.sflag [#allocation3], %s4677
          %s4679 = sand.u32 %s307, 1
          %s4680 = smul.addr %s4679, 256
          %s4681 = scalar_lea.vmem [#allocation2], %s4680
          %4683 = dma.done %s4678, 4096
        $region84: #{decoder_forward.3} parent=79 // pred_fallthru
          _
        // Predicated region
        $region85: #{decoder_forward.3} parent=79 // pred_check
          %p4684 = pneg %p348
        $region86: #{decoder_forward.3} parent=79 // pred_check_branch
          %4686 = sbr.rel (%p4684) target = $region88
        $region87: #{decoder_forward.3} parent=79 // pred_region
          %s4687 = sand.u32 %s333, 1
          %s4688 = scalar_lea.sflag [#allocation5], %s4687
          %s4689 = sand.u32 %s333, 1
          %s4690 = smul.addr %s4689, 128
          %s4691 = scalar_lea.vmem [#allocation4], %s4690
          %4693 = dma.done %s4688, 2048
        $region88: #{decoder_forward.3} parent=79 // pred_fallthru
          _
      $region80: #{decoder_forward.3} parent=5 // pred_fallthru
        _
    $region6: #{decoder_forward.3} parent=1 // loop_footer
      %s30 = sadd.s32 1, %s26
    $region7: #{decoder_forward.3} parent=1 // loop_footer_branch
      %25 = sbr.rel target = $region3
    $region8: #{decoder_forward.3} parent=1 // loop_exit
      _
    %4694 = vsyncpa [#allocation3], 1
    %s4695 = scalar_lea.sflag [#allocation3], 1
    %4696 = vsyncpa %s4695, 1
    %4697 = vsyncpa [#allocation5], 1
    %s4698 = scalar_lea.sflag [#allocation5], 1
    %4699 = vsyncpa %s4698, 1

</llo_original>
